<compile_context>
chip_gen: v6e
topology: v6e:2x2x1
jax: 0.10.0
libtpu: 0.0.40
codegen_flags: <defaults>
</compile_context>

<pallas_src>
import jax
import jax.numpy as jnp
from jax.experimental import pallas as pl
from jax.experimental.pallas import tpu as pltpu


# ---------------------------------------------------------------------------
# Pallas kernels
# ---------------------------------------------------------------------------
def conv_relu_pool_kernel(p_ref, w_ref, b_ref, o_ref):
    """Fused 3x3 conv (packed im2col matmul) + bias + ReLU + 2x2/stride-2 max-pool.

    p_ref: (tm, q*36*Cin)       bf16 packed patches: q adjacent pooled pixels x
                                4 pool-window positions x 9-tap patch on lanes.
    w_ref: (q*36*Cin, 4*q*Cout) bf16 block-diagonal conv weight; column group
                                (p*q + j) = pool position p of packed pixel j,
                                so the 4 position groups are 128-lane-aligned
                                slices of the matmul result.
    b_ref: (1, q*Cout)          f32 bias tiled q times.
    o_ref: (tm, q*Cout)         bf16 pooled + ReLU output (128 lanes -> dense store).
    """
    qc = o_ref.shape[-1]
    y = jnp.dot(p_ref[...], w_ref[...], preferred_element_type=jnp.float32)
    m = jnp.maximum(jnp.maximum(y[:, 0 * qc:1 * qc], y[:, 1 * qc:2 * qc]),
                    jnp.maximum(y[:, 2 * qc:3 * qc], y[:, 3 * qc:4 * qc]))
    # Bias is shared by the 4 window positions and ReLU is monotone, so
    # relu(max_p(conv_p) + b) == maxpool2x2(relu(conv + b)).
    o_ref[...] = jnp.maximum(m + b_ref[...], 0.0).astype(o_ref.dtype)


def fc_head_kernel(x_ref, w1_ref, b1_ref, w2_ref, b2_ref, w3_ref, b3_ref, o_ref):
    """Fused fc1 -> fc2 -> fc3 (padded to 128 cols) -> Softmax over one B-tile."""
    h = jnp.dot(x_ref[...], w1_ref[...], preferred_element_type=jnp.float32) + b1_ref[...]
    h = jnp.dot(h.astype(w2_ref.dtype), w2_ref[...],
                preferred_element_type=jnp.float32) + b2_ref[...]
    logits = jnp.dot(h.astype(w3_ref.dtype), w3_ref[...],
                     preferred_element_type=jnp.float32) + b3_ref[...]
    m = jnp.max(logits, axis=-1, keepdims=True)
    e = jnp.exp(logits - m)                    # padded cols: exp(-1e30 - m) == 0
    # Exact divide (f32): keeps row sums == 1 (the approx reciprocal did not).
    o_ref[...] = (e / jnp.sum(e, axis=-1, keepdims=True)).astype(o_ref.dtype)


# ---------------------------------------------------------------------------
# Small helpers
# ---------------------------------------------------------------------------
def _round_up(x, m):
    return ((x + m - 1) // m) * m


def _pick_tile(rows, target):
    """rows: multiple of 8.  Prefer an exact divisor (no padded rows / no
    epilogue slice) and >=2 grid steps (v7x has 2 TensorCores)."""
    cap = max(8, min(target, (rows // 16) * 8 if rows >= 16 else rows))
    t = (cap // 8) * 8
    while t > 8 and rows % t:
        t -= 8
    return t


# ---------------------------------------------------------------------------
# Pallas wrappers
# ---------------------------------------------------------------------------
def conv_relu_pool(x, w_blk, b_tiled, *, q, cout, max_rows=1024):
    """Conv2d(3x3, pad=1) + ReLU + MaxPool2d(2) on NHWC in one fused Pallas kernel.

    The only HBM-materializing glue is a single strided-slice concat (the packed
    im2col, built already in bf16); every other regrouping is a free reshape.
    """
    x = x.astype(jnp.bfloat16)
    B, H, W, Cin = x.shape
    Hp, Wp = H // 2, W // 2
    xp = jnp.pad(x, ((0, 0), (1, 1), (1, 1), (0, 0)))
    # packed patch of pooled pixel (b, hp, wp):
    #   lane ((dh*2+dw)*9 + kh*3+kw)*Cin + ci = xp[b, 2*hp+dh+kh, 2*wp+dw+kw, ci]
    slabs = [xp[:, dh + kh:dh + kh + H:2, dw + kw:dw + kw + W:2, :]
             for dh in range(2) for dw in range(2)
             for kh in range(3) for kw in range(3)]
    p4 = jnp.concatenate(slabs, axis=-1)                 # (B, Hp, Wp, 36*Cin)

    m = B * Hp * Wp
    mq = _round_up(m, q)
    p2 = p4.reshape(m, 36 * Cin)
    if mq != m:
        p2 = jnp.pad(p2, ((0, mq - m), (0, 0)))
    rows = mq // q
    packed = p2.reshape(rows, q * 36 * Cin)              # free contiguous reshape
    rows_p = _round_up(rows, 8)
    if rows_p != rows:
        packed = jnp.pad(packed, ((0, rows_p - rows), (0, 0)))

    tm = _pick_tile(rows_p, max_rows)
    kq = packed.shape[1]
    nq = w_blk.shape[1]
    qc = q * cout

    out = pl.pallas_call(
        conv_relu_pool_kernel,
        out_shape=jax.ShapeDtypeStruct((rows_p, qc), jnp.bfloat16),
        grid=(rows_p // tm,),
        in_specs=[
            pl.BlockSpec((tm, kq), lambda i: (i, 0)),
            pl.BlockSpec((kq, nq), lambda i: (0, 0)),
            pl.BlockSpec((1, qc), lambda i: (0, 0)),
        ],
        out_specs=pl.BlockSpec((tm, qc), lambda i: (i, 0)),
        compiler_params=pltpu.CompilerParams(dimension_semantics=("parallel",)),
    )(packed, w_blk, b_tiled)

    y = out.reshape(rows_p * q, cout)[:m]                # free reshape; slice is a
    return y.reshape(B, Hp, Wp, cout)                    # no-op for aligned batches


def fc_head(x, w1, b1, w2, b2, w3p, b3p, *, max_rows=512):
    """Fused fc1 + fc2 + fc3 + Softmax. Returns (B, 10) probabilities (f32)."""
    B, K = x.shape
    H1 = w1.shape[1]
    H2 = w2.shape[1]
    N = w3p.shape[1]                                     # 128 (lane-dense, padded)
    rows_p = _round_up(B, 8)
    xq = x.astype(jnp.bfloat16)
    if rows_p != B:
        xq = jnp.pad(xq, ((0, rows_p - B), (0, 0)))
    tb = _pick_tile(rows_p, max_rows)

    out = pl.pallas_call(
        fc_head_kernel,
        out_shape=jax.ShapeDtypeStruct((rows_p, N), jnp.float32),
        grid=(rows_p // tb,),
        in_specs=[
            pl.BlockSpec((tb, K), lambda i: (i, 0)),
            pl.BlockSpec((K, H1), lambda i: (0, 0)),
            pl.BlockSpec((1, H1), lambda i: (0, 0)),
            pl.BlockSpec((H1, H2), lambda i: (0, 0)),
            pl.BlockSpec((1, H2), lambda i: (0, 0)),
            pl.BlockSpec((H2, N), lambda i: (0, 0)),
            pl.BlockSpec((1, N), lambda i: (0, 0)),
        ],
        out_specs=pl.BlockSpec((tb, N), lambda i: (i, 0)),
        compiler_params=pltpu.CompilerParams(dimension_semantics=("parallel",)),
    )(xq, w1, b1.reshape(1, -1), w2, b2.reshape(1, -1), w3p, b3p.reshape(1, N))
    return out[:B, :10]


# ---------------------------------------------------------------------------
# Parameters
# ---------------------------------------------------------------------------
def init_params(key):
    ks = jax.random.split(key, 10)
    s = 0.05
    return {
        "w1": s * jax.random.normal(ks[0], (3, 3, 1, 32), jnp.float32),   # HWIO
        "b1": s * jax.random.normal(ks[1], (32,), jnp.float32),
        "w2": s * jax.random.normal(ks[2], (3, 3, 32, 64), jnp.float32),  # HWIO
        "b2": s * jax.random.normal(ks[3], (64,), jnp.float32),
        # fc1 rows are in HWC-flatten order (to load PyTorch weights, permute the
        # 3136 rows CHW->HWC and transpose). Equivalent under random init; avoids
        # an HBM transpose of the conv2 output.
        "wfc1": s * jax.random.normal(ks[4], (7 * 7 * 64, 128), jnp.float32),
        "bfc1": s * jax.random.normal(ks[5], (128,), jnp.float32),
        "wfc2": s * jax.random.normal(ks[6], (128, 64), jnp.float32),
        "bfc2": s * jax.random.normal(ks[7], (64,), jnp.float32),
        "wfc3": s * jax.random.normal(ks[8], (64, 10), jnp.float32),
        "bfc3": s * jax.random.normal(ks[9], (10,), jnp.float32),
    }


def _pool_packed_weight(w_hwio, q):
    """(3,3,Cin,Cout) HWIO -> (q*36*Cin, 4*q*Cout) block-diagonal conv weight
    matching the packed-patch lane layout and the kernel's aligned max slices."""
    _, _, cin, cout = w_hwio.shape
    k = 9 * cin
    wm = w_hwio.reshape(k, cout)                     # rows ordered (kh, kw, ci)
    blk = jnp.zeros((q * 4 * k, 4 * q * cout), w_hwio.dtype)
    for j in range(q):
        for p in range(4):
            r0 = (j * 4 + p) * k
            c0 = (p * q + j) * cout
            blk = blk.at[r0:r0 + k, c0:c0 + cout].set(wm)
    return blk


def prepare_kernel_params(p):
    """One-time packing / padding / bf16 cast of the weights for the kernels."""
    w3p = jnp.zeros((64, 128), jnp.float32).at[:, :10].set(p["wfc3"])
    b3p = jnp.full((128,), -1e30, jnp.float32).at[:10].set(p["bfc3"])
    return {
        "w1_blk": _pool_packed_weight(p["w1"], q=4).astype(jnp.bfloat16),
        "b1_t": jnp.tile(p["b1"], 4),                       # f32
        "w2_blk": _pool_packed_weight(p["w2"], q=2).astype(jnp.bfloat16),
        "b2_t": jnp.tile(p["b2"], 2),                       # f32
        "wfc1": p["wfc1"].astype(jnp.bfloat16),
        "bfc1": p["bfc1"],
        "wfc2": p["wfc2"].astype(jnp.bfloat16),
        "bfc2": p["bfc2"],
        "wfc3p": w3p.astype(jnp.bfloat16),
        "bfc3p": b3p,                                        # f32 (-1e30 padding)
    }


# ---------------------------------------------------------------------------
# Model
# ---------------------------------------------------------------------------
@jax.jit
def forward(x_nchw, kp):
    # Accept NCHW like PyTorch, compute in NHWC (channels on the lane axis).
    x = jnp.transpose(x_nchw, (0, 2, 3, 1)).astype(jnp.bfloat16)   # (B, 28, 28, 1)
    B = x.shape[0]
    # layer1: Conv2d(1, 32, 3, pad=1) + ReLU + MaxPool2d(2)   -> (B, 14, 14, 32)
    y1 = conv_relu_pool(x, kp["w1_blk"], kp["b1_t"].reshape(1, -1), q=4, cout=32)
    # layer2: Conv2d(32, 64, 3, pad=1) + ReLU + MaxPool2d(2)  -> (B, 7, 7, 64)
    y2 = conv_relu_pool(y1, kp["w2_blk"], kp["b2_t"].reshape(1, -1), q=2, cout=64)
    # Flatten in HWC order (fc1 weight rows are laid out to match).
    flat = y2.reshape(B, 7 * 7 * 64)
    # fc1 -> fc2 -> fc3 -> Softmax(dim=1), one fused kernel.
    return fc_head(flat, kp["wfc1"], kp["bfc1"], kp["wfc2"], kp["bfc2"],
                   kp["wfc3p"], kp["bfc3p"])


def reference_forward(x_nchw, p):
    """Pure-JAX f32 reference of the same model (validates the Pallas path)."""
    x = jnp.transpose(x_nchw, (0, 2, 3, 1)).astype(jnp.float32)

    def conv_block(x, w, b):
        y = jax.lax.conv_general_dilated(
            x, w, window_strides=(1, 1), padding="SAME",
            dimension_numbers=("NHWC", "HWIO", "NHWC"))
        y = jax.nn.relu(y + b)
        return jax.lax.reduce_window(y, -jnp.inf, jax.lax.max,
                                     (1, 2, 2, 1), (1, 2, 2, 1), "VALID")

    y = conv_block(x, p["w1"], p["b1"])
    y = conv_block(y, p["w2"], p["b2"])
    flat = y.reshape(x.shape[0], -1)
    h = flat @ p["wfc1"] + p["bfc1"]
    h = h @ p["wfc2"] + p["bfc2"]
    logits = h @ p["wfc3"] + p["bfc3"]
    return jax.nn.softmax(logits, axis=-1)


if __name__ == "__main__":
    key = jax.random.PRNGKey(0)
    pkey, xkey = jax.random.split(key)
    params = init_params(pkey)
    kparams = prepare_kernel_params(params)
    # The module implies 28x28 single-channel inputs (fc1 expects 64*7*7).
    x = jax.random.normal(xkey, (2, 1, 28, 28), dtype=jnp.float32)

    probs = jax.block_until_ready(forward(x, kparams))

    assert probs.shape == (2, 10)
    row_sums = jnp.sum(probs, axis=1)
    assert bool(jnp.all(jnp.abs(row_sums - 1.0) < 1e-4)), row_sums
    assert bool(jnp.all(probs >= 0.0))
    ref = reference_forward(x, params)
    err = jnp.max(jnp.abs(probs - ref))
    assert bool(err < 2e-2), float(err)     # bf16 matmuls vs f32 reference
    print("KERNEL_OK")
</pallas_src>

<mosaic_0001>
module attributes {stable_mosaic.version = 11 : i64} {
  func.func @conv_relu_pool_kernel(%arg0: i32, %arg1: memref<8x144xbf16, #tpu.memory_space<vmem>>, %arg2: memref<144x512xbf16, #tpu.memory_space<vmem>>, %arg3: memref<1x128xf32, #tpu.memory_space<vmem>>, %arg4: memref<8x128xbf16, #tpu.memory_space<vmem>>) attributes {dimension_semantics = [#tpu.dimension_semantics<parallel>], iteration_bounds = array<i64: 13>, scalar_prefetch = 0 : i64, scratch_operands = 0 : i64, tpu.core_type = #tpu.core_type<tc>, window_params = [{transform_indices = @transform_0, window_bounds = array<i64: 8, 144>}, {pipeline_mode = #tpu.pipeline_mode<synchronous>, transform_indices = @transform_1, window_bounds = array<i64: 144, 512>}, {pipeline_mode = #tpu.pipeline_mode<synchronous>, transform_indices = @transform_2, window_bounds = array<i64: 1, 128>}, {transform_indices = @transform_3, window_bounds = array<i64: 8, 128>}]} {
    %c0 = arith.constant 0 : index
    %c0_0 = arith.constant 0 : index
    %0 = vector.load %arg1[%c0, %c0_0] : memref<8x144xbf16, #tpu.memory_space<vmem>>, vector<8x144xbf16>
    %c0_1 = arith.constant 0 : index
    %c0_2 = arith.constant 0 : index
    %1 = vector.load %arg2[%c0_1, %c0_2] : memref<144x512xbf16, #tpu.memory_space<vmem>>, vector<144x512xbf16>
    %cst = arith.constant dense<0.000000e+00> : vector<8x512xf32>
    %2 = tpu.matmul %0, %1, %cst {dimension_numbers = #tpu.dot_dimension_numbers<[1], [0], [0], [1], [0, 0, 1, 1], [], []>} : vector<8x144xbf16>, vector<144x512xbf16>, vector<8x512xf32> -> vector<8x512xf32>
    %3 = vector.extract_strided_slice %2 {offsets = [0, 0], sizes = [8, 128], strides = [1, 1]} : vector<8x512xf32> to vector<8x128xf32>
    %4 = vector.extract_strided_slice %2 {offsets = [0, 128], sizes = [8, 128], strides = [1, 1]} : vector<8x512xf32> to vector<8x128xf32>
    %5 = arith.maximumf %3, %4 : vector<8x128xf32>
    %6 = vector.extract_strided_slice %2 {offsets = [0, 256], sizes = [8, 128], strides = [1, 1]} : vector<8x512xf32> to vector<8x128xf32>
    %7 = vector.extract_strided_slice %2 {offsets = [0, 384], sizes = [8, 128], strides = [1, 1]} : vector<8x512xf32> to vector<8x128xf32>
    %8 = arith.maximumf %6, %7 : vector<8x128xf32>
    %9 = arith.maximumf %5, %8 : vector<8x128xf32>
    %c0_3 = arith.constant 0 : index
    %c0_4 = arith.constant 0 : index
    %10 = vector.load %arg3[%c0_3, %c0_4] : memref<1x128xf32, #tpu.memory_space<vmem>>, vector<1x128xf32>
    %11 = vector.broadcast %10 : vector<1x128xf32> to vector<8x128xf32>
    %12 = arith.addf %9, %11 : vector<8x128xf32>
    %cst_5 = arith.constant 0.000000e+00 : f32
    %13 = vector.broadcast %cst_5 : f32 to vector<8x128xf32>
    %14 = arith.maximumf %12, %13 : vector<8x128xf32>
    %15 = arith.truncf %14 : vector<8x128xf32> to vector<8x128xbf16>
    %c0_6 = arith.constant 0 : index
    %c0_7 = arith.constant 0 : index
    %16 = vector.load %arg4[%c0_6, %c0_7] : memref<8x128xbf16, #tpu.memory_space<vmem>>, vector<8x128xbf16>
    tpu.vector_store %arg4[%c0_6, %c0_7], %15 {strides = array<i32>} : memref<8x128xbf16, #tpu.memory_space<vmem>>, vector<8x128xbf16>,
    return
  }
  func.func @transform_0(%arg0: i32) -> (i32, i32) {
    %c0_i32 = arith.constant 0 : i32
    %c0_i32_0 = arith.constant 0 : i32
    return %arg0, %c0_i32 : i32, i32
  }
  func.func @transform_1(%arg0: i32) -> (i32, i32) {
    %c0_i32 = arith.constant 0 : i32
    %c0_i32_0 = arith.constant 0 : i32
    %c0_i32_1 = arith.constant 0 : i32
    return %c0_i32, %c0_i32_0 : i32, i32
  }
  func.func @transform_2(%arg0: i32) -> (i32, i32) {
    %c0_i32 = arith.constant 0 : i32
    %c0_i32_0 = arith.constant 0 : i32
    %c0_i32_1 = arith.constant 0 : i32
    return %c0_i32, %c0_i32_0 : i32, i32
  }
  func.func @transform_3(%arg0: i32) -> (i32, i32) {
    %c0_i32 = arith.constant 0 : i32
    %c0_i32_0 = arith.constant 0 : i32
    return %arg0, %c0_i32 : i32, i32
  }
}

module attributes {stable_mosaic.version = 11 : i64} {
  func.func @conv_relu_pool_kernel(%arg0: i32, %arg1: memref<8x2304xbf16, #tpu.memory_space<vmem>>, %arg2: memref<2304x512xbf16, #tpu.memory_space<vmem>>, %arg3: memref<1x128xf32, #tpu.memory_space<vmem>>, %arg4: memref<8x128xbf16, #tpu.memory_space<vmem>>) attributes {dimension_semantics = [#tpu.dimension_semantics<parallel>], iteration_bounds = array<i64: 7>, scalar_prefetch = 0 : i64, scratch_operands = 0 : i64, tpu.core_type = #tpu.core_type<tc>, window_params = [{transform_indices = @transform_0, window_bounds = array<i64: 8, 2304>}, {pipeline_mode = #tpu.pipeline_mode<synchronous>, transform_indices = @transform_1, window_bounds = array<i64: 2304, 512>}, {pipeline_mode = #tpu.pipeline_mode<synchronous>, transform_indices = @transform_2, window_bounds = array<i64: 1, 128>}, {transform_indices = @transform_3, window_bounds = array<i64: 8, 128>}]} {
    %c0 = arith.constant 0 : index
    %c0_0 = arith.constant 0 : index
    %0 = vector.load %arg1[%c0, %c0_0] : memref<8x2304xbf16, #tpu.memory_space<vmem>>, vector<8x2304xbf16>
    %c0_1 = arith.constant 0 : index
    %c0_2 = arith.constant 0 : index
    %1 = vector.load %arg2[%c0_1, %c0_2] : memref<2304x512xbf16, #tpu.memory_space<vmem>>, vector<2304x512xbf16>
    %cst = arith.constant dense<0.000000e+00> : vector<8x512xf32>
    %2 = tpu.matmul %0, %1, %cst {dimension_numbers = #tpu.dot_dimension_numbers<[1], [0], [0], [1], [0, 0, 1, 1], [], []>} : vector<8x2304xbf16>, vector<2304x512xbf16>, vector<8x512xf32> -> vector<8x512xf32>
    %3 = vector.extract_strided_slice %2 {offsets = [0, 0], sizes = [8, 128], strides = [1, 1]} : vector<8x512xf32> to vector<8x128xf32>
    %4 = vector.extract_strided_slice %2 {offsets = [0, 128], sizes = [8, 128], strides = [1, 1]} : vector<8x512xf32> to vector<8x128xf32>
    %5 = arith.maximumf %3, %4 : vector<8x128xf32>
    %6 = vector.extract_strided_slice %2 {offsets = [0, 256], sizes = [8, 128], strides = [1, 1]} : vector<8x512xf32> to vector<8x128xf32>
    %7 = vector.extract_strided_slice %2 {offsets = [0, 384], sizes = [8, 128], strides = [1, 1]} : vector<8x512xf32> to vector<8x128xf32>
    %8 = arith.maximumf %6, %7 : vector<8x128xf32>
    %9 = arith.maximumf %5, %8 : vector<8x128xf32>
    %c0_3 = arith.constant 0 : index
    %c0_4 = arith.constant 0 : index
    %10 = vector.load %arg3[%c0_3, %c0_4] : memref<1x128xf32, #tpu.memory_space<vmem>>, vector<1x128xf32>
    %11 = vector.broadcast %10 : vector<1x128xf32> to vector<8x128xf32>
    %12 = arith.addf %9, %11 : vector<8x128xf32>
    %cst_5 = arith.constant 0.000000e+00 : f32
    %13 = vector.broadcast %cst_5 : f32 to vector<8x128xf32>
    %14 = arith.maximumf %12, %13 : vector<8x128xf32>
    %15 = arith.truncf %14 : vector<8x128xf32> to vector<8x128xbf16>
    %c0_6 = arith.constant 0 : index
    %c0_7 = arith.constant 0 : index
    %16 = vector.load %arg4[%c0_6, %c0_7] : memref<8x128xbf16, #tpu.memory_space<vmem>>, vector<8x128xbf16>
    tpu.vector_store %arg4[%c0_6, %c0_7], %15 {strides = array<i32>} : memref<8x128xbf16, #tpu.memory_space<vmem>>, vector<8x128xbf16>,
    return
  }
  func.func @transform_0(%arg0: i32) -> (i32, i32) {
    %c0_i32 = arith.constant 0 : i32
    %c0_i32_0 = arith.constant 0 : i32
    return %arg0, %c0_i32 : i32, i32
  }
  func.func @transform_1(%arg0: i32) -> (i32, i32) {
    %c0_i32 = arith.constant 0 : i32
    %c0_i32_0 = arith.constant 0 : i32
    %c0_i32_1 = arith.constant 0 : i32
    return %c0_i32, %c0_i32_0 : i32, i32
  }
  func.func @transform_2(%arg0: i32) -> (i32, i32) {
    %c0_i32 = arith.constant 0 : i32
    %c0_i32_0 = arith.constant 0 : i32
    %c0_i32_1 = arith.constant 0 : i32
    return %c0_i32, %c0_i32_0 : i32, i32
  }
  func.func @transform_3(%arg0: i32) -> (i32, i32) {
    %c0_i32 = arith.constant 0 : i32
    %c0_i32_0 = arith.constant 0 : i32
    return %arg0, %c0_i32 : i32, i32
  }
}

module attributes {stable_mosaic.version = 11 : i64} {
  func.func @fc_head_kernel(%arg0: i32, %arg1: memref<8x3136xbf16, #tpu.memory_space<vmem>>, %arg2: memref<3136x128xbf16, #tpu.memory_space<vmem>>, %arg3: memref<1x128xf32, #tpu.memory_space<vmem>>, %arg4: memref<128x64xbf16, #tpu.memory_space<vmem>>, %arg5: memref<1x64xf32, #tpu.memory_space<vmem>>, %arg6: memref<64x128xbf16, #tpu.memory_space<vmem>>, %arg7: memref<1x128xf32, #tpu.memory_space<vmem>>, %arg8: memref<8x128xf32, #tpu.memory_space<vmem>>) attributes {dimension_semantics = [#tpu.dimension_semantics<parallel>], iteration_bounds = array<i64: 1>, scalar_prefetch = 0 : i64, scratch_operands = 0 : i64, tpu.core_type = #tpu.core_type<tc>, window_params = [{transform_indices = @transform_0, window_bounds = array<i64: 8, 3136>}, {pipeline_mode = #tpu.pipeline_mode<synchronous>, transform_indices = @transform_1, window_bounds = array<i64: 3136, 128>}, {pipeline_mode = #tpu.pipeline_mode<synchronous>, transform_indices = @transform_2, window_bounds = array<i64: 1, 128>}, {pipeline_mode = #tpu.pipeline_mode<synchronous>, transform_indices = @transform_3, window_bounds = array<i64: 128, 64>}, {pipeline_mode = #tpu.pipeline_mode<synchronous>, transform_indices = @transform_4, window_bounds = array<i64: 1, 64>}, {pipeline_mode = #tpu.pipeline_mode<synchronous>, transform_indices = @transform_5, window_bounds = array<i64: 64, 128>}, {pipeline_mode = #tpu.pipeline_mode<synchronous>, transform_indices = @transform_6, window_bounds = array<i64: 1, 128>}, {transform_indices = @transform_7, window_bounds = array<i64: 8, 128>}]} {
    %c0 = arith.constant 0 : index
    %c0_0 = arith.constant 0 : index
    %0 = vector.load %arg1[%c0, %c0_0] : memref<8x3136xbf16, #tpu.memory_space<vmem>>, vector<8x3136xbf16>
    %c0_1 = arith.constant 0 : index
    %c0_2 = arith.constant 0 : index
    %1 = vector.load %arg2[%c0_1, %c0_2] : memref<3136x128xbf16, #tpu.memory_space<vmem>>, vector<3136x128xbf16>
    %cst = arith.constant dense<0.000000e+00> : vector<8x128xf32>
    %2 = tpu.matmul %0, %1, %cst {dimension_numbers = #tpu.dot_dimension_numbers<[1], [0], [0], [1], [0, 0, 1, 1], [], []>} : vector<8x3136xbf16>, vector<3136x128xbf16>, vector<8x128xf32> -> vector<8x128xf32>
    %c0_3 = arith.constant 0 : index
    %c0_4 = arith.constant 0 : index
    %3 = vector.load %arg3[%c0_3, %c0_4] : memref<1x128xf32, #tpu.memory_space<vmem>>, vector<1x128xf32>
    %4 = vector.broadcast %3 : vector<1x128xf32> to vector<8x128xf32>
    %5 = arith.addf %2, %4 : vector<8x128xf32>
    %6 = arith.truncf %5 : vector<8x128xf32> to vector<8x128xbf16>
    %c0_5 = arith.constant 0 : index
    %c0_6 = arith.constant 0 : index
    %7 = vector.load %arg4[%c0_5, %c0_6] : memref<128x64xbf16, #tpu.memory_space<vmem>>, vector<128x64xbf16>
    %cst_7 = arith.constant dense<0.000000e+00> : vector<8x64xf32>
    %8 = tpu.matmul %6, %7, %cst_7 {dimension_numbers = #tpu.dot_dimension_numbers<[1], [0], [0], [1], [0, 0, 1, 1], [], []>} : vector<8x128xbf16>, vector<128x64xbf16>, vector<8x64xf32> -> vector<8x64xf32>
    %c0_8 = arith.constant 0 : index
    %c0_9 = arith.constant 0 : index
    %9 = vector.load %arg5[%c0_8, %c0_9] : memref<1x64xf32, #tpu.memory_space<vmem>>, vector<1x64xf32>
    %10 = vector.broadcast %9 : vector<1x64xf32> to vector<8x64xf32>
    %11 = arith.addf %8, %10 : vector<8x64xf32>
    %12 = arith.truncf %11 : vector<8x64xf32> to vector<8x64xbf16>
    %c0_10 = arith.constant 0 : index
    %c0_11 = arith.constant 0 : index
    %13 = vector.load %arg6[%c0_10, %c0_11] : memref<64x128xbf16, #tpu.memory_space<vmem>>, vector<64x128xbf16>
    %cst_12 = arith.constant dense<0.000000e+00> : vector<8x128xf32>
    %14 = tpu.matmul %12, %13, %cst_12 {dimension_numbers = #tpu.dot_dimension_numbers<[1], [0], [0], [1], [0, 0, 1, 1], [], []>} : vector<8x64xbf16>, vector<64x128xbf16>, vector<8x128xf32> -> vector<8x128xf32>
    %c0_13 = arith.constant 0 : index
    %c0_14 = arith.constant 0 : index
    %15 = vector.load %arg7[%c0_13, %c0_14] : memref<1x128xf32, #tpu.memory_space<vmem>>, vector<1x128xf32>
    %16 = vector.broadcast %15 : vector<1x128xf32> to vector<8x128xf32>
    %17 = arith.addf %14, %16 : vector<8x128xf32>
    %cst_15 = arith.constant dense<0xFF800000> : vector<8xf32>
    %18 = vector.multi_reduction <maximumf>, %17, %cst_15 [1] : vector<8x128xf32> to vector<8xf32>
    %19 = vector.shape_cast %18 : vector<8xf32> to vector<8x1xf32>
    %20 = vector.broadcast %19 : vector<8x1xf32> to vector<8x128xf32>
    %21 = arith.subf %17, %20 : vector<8x128xf32>
    %22 = math.exp %21 : vector<8x128xf32>
    %cst_16 = arith.constant dense<0.000000e+00> : vector<8xf32>
    %23 = vector.multi_reduction <add>, %22, %cst_16 [1] : vector<8x128xf32> to vector<8xf32>
    %24 = vector.shape_cast %23 : vector<8xf32> to vector<8x1xf32>
    %25 = vector.broadcast %24 : vector<8x1xf32> to vector<8x128xf32>
    %26 = arith.divf %22, %25 : vector<8x128xf32>
    %c0_17 = arith.constant 0 : index
    %c0_18 = arith.constant 0 : index
    %27 = vector.load %arg8[%c0_17, %c0_18] : memref<8x128xf32, #tpu.memory_space<vmem>>, vector<8x128xf32>
    tpu.vector_store %arg8[%c0_17, %c0_18], %26 {strides = array<i32>} : memref<8x128xf32, #tpu.memory_space<vmem>>, vector<8x128xf32>,
    return
  }
  func.func @transform_0(%arg0: i32) -> (i32, i32) {
    %c0_i32 = arith.constant 0 : i32
    %c0_i32_0 = arith.constant 0 : i32
    return %arg0, %c0_i32 : i32, i32
  }
  func.func @transform_1(%arg0: i32) -> (i32, i32) {
    %c0_i32 = arith.constant 0 : i32
    %c0_i32_0 = arith.constant 0 : i32
    %c0_i32_1 = arith.constant 0 : i32
    return %c0_i32, %c0_i32_0 : i32, i32
  }
  func.func @transform_2(%arg0: i32) -> (i32, i32) {
    %c0_i32 = arith.constant 0 : i32
    %c0_i32_0 = arith.constant 0 : i32
    %c0_i32_1 = arith.constant 0 : i32
    return %c0_i32, %c0_i32_0 : i32, i32
  }
  func.func @transform_3(%arg0: i32) -> (i32, i32) {
    %c0_i32 = arith.constant 0 : i32
    %c0_i32_0 = arith.constant 0 : i32
    %c0_i32_1 = arith.constant 0 : i32
    return %c0_i32, %c0_i32_0 : i32, i32
  }
  func.func @transform_4(%arg0: i32) -> (i32, i32) {
    %c0_i32 = arith.constant 0 : i32
    %c0_i32_0 = arith.constant 0 : i32
    %c0_i32_1 = arith.constant 0 : i32
    return %c0_i32, %c0_i32_0 : i32, i32
  }
  func.func @transform_5(%arg0: i32) -> (i32, i32) {
    %c0_i32 = arith.constant 0 : i32
    %c0_i32_0 = arith.constant 0 : i32
    %c0_i32_1 = arith.constant 0 : i32
    return %c0_i32, %c0_i32_0 : i32, i32
  }
  func.func @transform_6(%arg0: i32) -> (i32, i32) {
    %c0_i32 = arith.constant 0 : i32
    %c0_i32_0 = arith.constant 0 : i32
    %c0_i32_1 = arith.constant 0 : i32
    return %c0_i32, %c0_i32_0 : i32, i32
  }
  func.func @transform_7(%arg0: i32) -> (i32, i32) {
    %c0_i32 = arith.constant 0 : i32
    %c0_i32_0 = arith.constant 0 : i32
    return %arg0, %c0_i32 : i32, i32
  }
}

</mosaic_0001>

<llo_original>
// kernel: forward.3
$region0: #{forward.3}
  #allocation0 [shape = 'u32[]', space=smem, size = 0x4, offset = 0x4, fixed_abs, tag = 'smem constant byte address 0x4 - core index']
  #allocation1 [shape = 'u32[144,128]{1,0:T(1,128)}', space=vmem, size = 0x12000, scoped, tag = 'internal scratch']
  %s0 = inlined_call_operand.vmem [shape: bf16[104,144], index: 0, kind: input, shape index: {}]
  %s1 = inlined_call_operand.hbm [shape: bf16[144,512], index: 1, kind: input, shape index: {}]
  %s2 = inlined_call_operand.hbm [shape: f32[1,128], index: 2, kind: input, shape index: {}]
  %s3 = inlined_call_operand.vmem [shape: bf16[104,128], index: 3, kind: output, shape index: {}]
  %s4 = sld [smem:[#allocation0]]
  $region53: #{forward.3} parent=0
    _
  %s6 = ssub.s32 1, %s4
  %s7 = scalar_select 0, %s6, %s4
  $region1: #{forward.3} parent=0
    #allocation2 [shape = 'u8[147456]{0}', space=vmem, size = 0x24000, scoped, tag = 'input window, operand 1, single buffered']
    #allocation3 [shape = 's32[2]{0}', space=sflag, size = 0x8, scoped, tag = 'scoped memory for forward.3']
    #allocation4 [shape = 'u8[512]{0}', space=vmem, size = 0x400, scoped, tag = 'input window, operand 2, single buffered']
    #allocation5 [shape = 's32[1]{0}', space=sflag, size = 0x4, scoped, tag = 'scoped memory for forward.3']
    %8 = vsyncpa [#allocation3], 0
    %9 = vsyncpa [#allocation5], 0
    loop: start=0, step=1, limit=15
    $region2: #{forward.3} parent=1 // loop_pre_header
      _
    $region3: #{forward.3} parent=1 // loop_header
      %s11 = sphi 0, %s15
      %p12 = scmp.ge.s32.totalorder %s11, 15
      %s21 = sphi 0, %s23
      %s24 = sphi 0, %s21
      %s25 = sphi 0, %s24
      %s41 = sphi 0, %s25
      %s45 = sphi 0, %s45
      %s47 = sphi 0, %s45
      %s48 = sphi 0, %s47
      %s62 = sphi 0, %s48
      %s66 = sphi 0, %s66
      %s68 = sphi 0, %s66
      %s69 = sphi 0, %s68
      %s83 = sphi 0, %s69
      %s89 = sphi 0, %s91
      %s92 = sphi 0, %s89
      %s93 = sphi 0, %s92
      %s109 = sphi 0, %s93
    $region4: #{forward.3} parent=1 // loop_header_branch
      %14 = sbr.rel (%p12) target = $region8
    $region5: #{forward.3} parent=1 // loop_body
      %s16 = ssub.s32 %s11, 1
      %s17 = ssub.s32 %s11, 2
      %s18 = sadd.s32 %s11, 1
      %s19 = ssub.s32 %s11, %s18
      %p20 = scmp.eq.s32.totalorder %s19, 0
      %s22 = sadd.s32 %s21, 1
      %s23 = scalar_select %p20, %s21, %s22
      %p26 = pneg %p20
      %p27 = scmp.eq.s32.totalorder %s11, 12
      %p28 = por %p26, %p27
      %p29 = scmp.ne.s32.totalorder %s21, %s24
      %p30 = scmp.eq.s32.totalorder %s11, 0
      %p31 = por %p29, %p30
      %p32 = scmp.ne.s32.totalorder %s21, %s24
      %p33 = scmp.eq.s32.totalorder %s16, 12
      %p34 = por %p32, %p33
      %p35 = scmp.ne.s32.totalorder %s24, %s25
      %p36 = scmp.eq.s32.totalorder %s16, 0
      %p37 = por %p35, %p36
      %p38 = scmp.ne.s32.totalorder %s24, %s25
      %p39 = scmp.eq.s32.totalorder %s17, 12
      %p40 = por %p38, %p39
      %p42 = scmp.ne.s32.totalorder %s25, %s41
      %p43 = scmp.eq.s32.totalorder %s17, 0
      %p44 = por %p42, %p43
      %s46 = sadd.s32 %s45, 1
      %p49 = scmp.eq.s32.totalorder %s11, 12
      %p50 = scmp.ne.s32.totalorder %s45, %s47
      %p51 = scmp.eq.s32.totalorder %s11, 0
      %p52 = por %p50, %p51
      %p53 = scmp.ne.s32.totalorder %s45, %s47
      %p54 = scmp.eq.s32.totalorder %s16, 12
      %p55 = por %p53, %p54
      %p56 = scmp.ne.s32.totalorder %s47, %s48
      %p57 = scmp.eq.s32.totalorder %s16, 0
      %p58 = por %p56, %p57
      %p59 = scmp.ne.s32.totalorder %s47, %s48
      %p60 = scmp.eq.s32.totalorder %s17, 12
      %p61 = por %p59, %p60
      %p63 = scmp.ne.s32.totalorder %s48, %s62
      %p64 = scmp.eq.s32.totalorder %s17, 0
      %p65 = por %p63, %p64
      %s67 = sadd.s32 %s66, 1
      %p70 = scmp.eq.s32.totalorder %s11, 12
      %p71 = scmp.ne.s32.totalorder %s66, %s68
      %p72 = scmp.eq.s32.totalorder %s11, 0
      %p73 = por %p71, %p72
      %p74 = scmp.ne.s32.totalorder %s66, %s68
      %p75 = scmp.eq.s32.totalorder %s16, 12
      %p76 = por %p74, %p75
      %p77 = scmp.ne.s32.totalorder %s68, %s69
      %p78 = scmp.eq.s32.totalorder %s16, 0
      %p79 = por %p77, %p78
      %p80 = scmp.ne.s32.totalorder %s68, %s69
      %p81 = scmp.eq.s32.totalorder %s17, 12
      %p82 = por %p80, %p81
      %p84 = scmp.ne.s32.totalorder %s69, %s83
      %p85 = scmp.eq.s32.totalorder %s17, 0
      %p86 = por %p84, %p85
      %s87 = ssub.s32 %s11, %s18
      %p88 = scmp.eq.s32.totalorder %s87, 0
      %s90 = sadd.s32 %s89, 1
      %s91 = scalar_select %p88, %s89, %s90
      %p94 = pneg %p88
      %p95 = scmp.eq.s32.totalorder %s11, 12
      %p96 = por %p94, %p95
      %p97 = scmp.ne.s32.totalorder %s89, %s92
      %p98 = scmp.eq.s32.totalorder %s11, 0
      %p99 = por %p97, %p98
      %p100 = scmp.ne.s32.totalorder %s89, %s92
      %p101 = scmp.eq.s32.totalorder %s16, 12
      %p102 = por %p100, %p101
      %p103 = scmp.ne.s32.totalorder %s92, %s93
      %p104 = scmp.eq.s32.totalorder %s16, 0
      %p105 = por %p103, %p104
      %p106 = scmp.ne.s32.totalorder %s92, %s93
      %p107 = scmp.eq.s32.totalorder %s17, 12
      %p108 = por %p106, %p107
      %p110 = scmp.ne.s32.totalorder %s93, %s109
      %p111 = scmp.eq.s32.totalorder %s17, 0
      %p112 = por %p110, %p111
      %p113 = scmp.le.s32.totalorder 1, %s11
      %p114 = scmp.lt.s32.totalorder %s11, 14
      %p115 = pnand %p113, %p114
      %p116 = pneg %p115
      // Predicated region
      $region9: #{forward.3} parent=5 // pred_check
        _
      $region10: #{forward.3} parent=5 // pred_check_branch
        %118 = sbr.rel (%p115) target = $region12
      $region11: #{forward.3} parent=5 // pred_region
        %s119 = ssub.s32 %s11, 1
        // Predicated region
        $region13: #{forward.3} parent=11 // pred_check
          %p120 = pneg %p58
        $region14: #{forward.3} parent=11 // pred_check_branch
          %122 = sbr.rel (%p120) target = $region16
        $region15: #{forward.3} parent=11 // pred_region
          %s124 = ssub.s32 4608, 4608
          %125 = vsyncadd [#allocation3], %s124
          %s126 = sshll.u32 [#allocation2], 4
          %s127 = int_to_ptr.vmem [resolvable:$true] %s126
          %132 = dma.hbm_to_vmem [thread:$0]  %s1, 4608, %s127, [#allocation3], 256, 256, 16
        $region16: #{forward.3} parent=11 // pred_fallthru
          _
        // Predicated region
        $region17: #{forward.3} parent=11 // pred_check
          %p133 = pneg %p79
        $region18: #{forward.3} parent=11 // pred_check_branch
          %135 = sbr.rel (%p133) target = $region20
        $region19: #{forward.3} parent=11 // pred_region
          %s137 = ssub.s32 16, 16
          %138 = vsyncadd [#allocation5], %s137
          %s140 = sshll.u32 [#allocation4], 4
          %s141 = int_to_ptr.vmem [resolvable:$true] %s140
          %143 = dma.hbm_to_vmem [thread:$0]  %s2, 16, %s141, [#allocation5]
        $region20: #{forward.3} parent=11 // pred_fallthru
          _
      $region12: #{forward.3} parent=5 // pred_fallthru
        _
      %p144 = scmp.lt.s32.totalorder %s11, 13
      // Predicated region
      $region21: #{forward.3} parent=5 // pred_check
        %p145 = pneg %p144
      $region22: #{forward.3} parent=5 // pred_check_branch
        %147 = sbr.rel (%p145) target = $region24
      $region23: #{forward.3} parent=5 // pred_region
        // Predicated region
        $region25: #{forward.3} parent=23 // pred_check
          %p148 = pneg %p31
        $region26: #{forward.3} parent=23 // pred_check_branch
          %150 = sbr.rel (%p148) target = $region28
        $region27: #{forward.3} parent=23 // pred_region
          %p151 = scmp.lt.s32.totalorder %s11, 12
          %s152 = scalar_select %p151, %s11, 12
          %s153 = smul.addr %s152, 2
          %s154 = smul.addr %s153, 4
          %s155 = scalar_lea.vmem %s0, %s154
        $region28: #{forward.3} parent=23 // pred_fallthru
          _
      $region24: #{forward.3} parent=5 // pred_fallthru
        _
      %p156 = scmp.le.s32.totalorder 1, %s11
      %p157 = scmp.lt.s32.totalorder %s11, 14
      %p158 = pnand %p156, %p157
      %p159 = pneg %p158
      // Predicated region
      $region29: #{forward.3} parent=5 // pred_check
        _
      $region30: #{forward.3} parent=5 // pred_check_branch
        %161 = sbr.rel (%p158) target = $region32
      $region31: #{forward.3} parent=5 // pred_region
        %s162 = ssub.s32 %s11, 1
        // Predicated region
        $region33: #{forward.3} parent=31 // pred_check
          %p163 = pneg %p58
        $region34: #{forward.3} parent=31 // pred_check_branch
          %165 = sbr.rel (%p163) target = $region36
        $region35: #{forward.3} parent=31 // pred_region
          %166 = dma.done [#allocation3], 4608
        $region36: #{forward.3} parent=31 // pred_fallthru
          _
        // Predicated region
        $region37: #{forward.3} parent=31 // pred_check
          %p167 = pneg %p79
        $region38: #{forward.3} parent=31 // pred_check_branch
          %169 = sbr.rel (%p167) target = $region40
        $region39: #{forward.3} parent=31 // pred_region
          %170 = dma.done [#allocation5], 16
        $region40: #{forward.3} parent=31 // pred_fallthru
          _
        %p171 = scmp.lt.s32.totalorder %s16, 12
        %s172 = scalar_select %p171, %s16, 12
        %s173 = smul.addr %s172, 2
        %s174 = smul.addr %s173, 4
        %s175 = scalar_lea.vmem %s0, %s174
        %p176 = pneg %p37
        %p177 = pneg %p34
        %p178 = pneg %p58
        %p179 = pneg %p55
        %p180 = pneg %p79
        %p181 = pneg %p76
        %p182 = pneg %p105
        %p183 = pneg %p102
        %p184 = scmp.lt.s32.totalorder %s16, 12
        %s185 = scalar_select %p184, %s16, 12
        %s186 = smul.addr %s185, 4
        %s187 = scalar_lea.vmem %s3, %s186
        %p188 = scmp.lt.s32.totalorder %s16, 12
        %s189 = scalar_select %p188, %s16, 12
        %s190 = smul.addr %s189, 2
        %s191 = smul.addr %s190, 4
        %s192 = scalar_lea.vmem %s0, %s191
        %p193 = scmp.lt.s32.totalorder %s16, 12
        %s194 = scalar_select %p193, %s16, 12
        %s195 = smul.addr %s194, 4
        %s196 = scalar_lea.vmem %s3, %s195
        %v198 = vld [vmem:[%s192] sm:$0xff]
        %v199 = vld [vmem:[#allocation2] sm:$0xff]
        %v200 = vld [vmem:[#allocation2 + $0x8] sm:$0xff]
        %v201 = vld [vmem:[#allocation2 + $0x10] sm:$0xff]
        %v202 = vld [vmem:[#allocation2 + $0x18] sm:$0xff]
        %v203 = vld [vmem:[#allocation2 + $0x20] sm:$0xff]
        %v204 = vld [vmem:[#allocation2 + $0x28] sm:$0xff]
        %v205 = vld [vmem:[#allocation2 + $0x30] sm:$0xff]
        %v206 = vld [vmem:[#allocation2 + $0x38] sm:$0xff]
        %v207 = vld [vmem:[#allocation2 + $0x40] sm:$0xff]
        %v208 = vld [vmem:[#allocation2 + $0x48] sm:$0xff]
        %v209 = vld [vmem:[#allocation2 + $0x50] sm:$0xff]
        %v210 = vld [vmem:[#allocation2 + $0x58] sm:$0xff]
        %v211 = vld [vmem:[#allocation2 + $0x60] sm:$0xff]
        %v212 = vld [vmem:[#allocation2 + $0x68] sm:$0xff]
        %v213 = vld [vmem:[#allocation2 + $0x70] sm:$0xff]
        %v214 = vld [vmem:[#allocation2 + $0x78] sm:$0xff]
        %v215 = vld [vmem:[#allocation2 + $0x80] sm:$0xff]
        %v216 = vld [vmem:[#allocation2 + $0x88] sm:$0xff]
        %v217 = vld [vmem:[#allocation2 + $0x90] sm:$0xff]
        %v218 = vld [vmem:[#allocation2 + $0x98] sm:$0xff]
        %v219 = vld [vmem:[#allocation2 + $0xa0] sm:$0xff]
        %v220 = vld [vmem:[#allocation2 + $0xa8] sm:$0xff]
        %v221 = vld [vmem:[#allocation2 + $0xb0] sm:$0xff]
        %v222 = vld [vmem:[#allocation2 + $0xb8] sm:$0xff]
        %v223 = vld [vmem:[#allocation2 + $0xc0] sm:$0xff]
        %v224 = vld [vmem:[#allocation2 + $0xc8] sm:$0xff]
        %v225 = vld [vmem:[#allocation2 + $0xd0] sm:$0xff]
        %v226 = vld [vmem:[#allocation2 + $0xd8] sm:$0xff]
        %v227 = vld [vmem:[#allocation2 + $0xe0] sm:$0xff]
        %v228 = vld [vmem:[#allocation2 + $0xe8] sm:$0xff]
        %v229 = vld [vmem:[#allocation2 + $0xf0] sm:$0xff]
        %v230 = vld [vmem:[#allocation2 + $0xf8] sm:$0xff]
        %v231 = vld [vmem:[#allocation2 + $0x100] sm:$0xff]
        %v232 = vld [vmem:[#allocation2 + $0x108] sm:$0xff]
        %v233 = vld [vmem:[#allocation2 + $0x110] sm:$0xff]
        %v234 = vld [vmem:[#allocation2 + $0x118] sm:$0xff]
        %v236 = vunpack.c.l.b16 %v198
        %v237 = vunpack.c.h.b16 %v198
        %v238 = vpack.c.b16 %v236, %v236
        %v239 = vpack.c.b16 %v237, %v237
        %v277 = vunpack.c.l.b16 %v199
        %v278 = vunpack.c.h.b16 %v199
        %v279 = vunpack.c.l.b16 %v200
        %v280 = vunpack.c.h.b16 %v200
        %v281 = vunpack.c.l.b16 %v201
        %v282 = vunpack.c.h.b16 %v201
        %v283 = vunpack.c.l.b16 %v202
        %v284 = vunpack.c.h.b16 %v202
        %v285 = vunpack.c.l.b16 %v203
        %v286 = vunpack.c.h.b16 %v203
        %v287 = vunpack.c.l.b16 %v204
        %v288 = vunpack.c.h.b16 %v204
        %v289 = vunpack.c.l.b16 %v205
        %v290 = vunpack.c.h.b16 %v205
        %v291 = vunpack.c.l.b16 %v206
        %v292 = vunpack.c.h.b16 %v206
        %v293 = vunpack.c.l.b16 %v207
        %v294 = vunpack.c.h.b16 %v207
        %v295 = vunpack.c.l.b16 %v208
        %v296 = vunpack.c.h.b16 %v208
        %v297 = vunpack.c.l.b16 %v209
        %v298 = vunpack.c.h.b16 %v209
        %v299 = vunpack.c.l.b16 %v210
        %v300 = vunpack.c.h.b16 %v210
        %v301 = vunpack.c.l.b16 %v211
        %v302 = vunpack.c.h.b16 %v211
        %v303 = vunpack.c.l.b16 %v212
        %v304 = vunpack.c.h.b16 %v212
        %v305 = vunpack.c.l.b16 %v213
        %v306 = vunpack.c.h.b16 %v213
        %v307 = vunpack.c.l.b16 %v214
        %v308 = vunpack.c.h.b16 %v214
        %v309 = vunpack.c.l.b16 %v215
        %v310 = vunpack.c.h.b16 %v215
        %v311 = vunpack.c.l.b16 %v216
        %v312 = vunpack.c.h.b16 %v216
        %v313 = vunpack.c.l.b16 %v217
        %v314 = vunpack.c.h.b16 %v217
        %v315 = vunpack.c.l.b16 %v218
        %v316 = vunpack.c.h.b16 %v218
        %v317 = vunpack.c.l.b16 %v219
        %v318 = vunpack.c.h.b16 %v219
        %v319 = vunpack.c.l.b16 %v220
        %v320 = vunpack.c.h.b16 %v220
        %v321 = vunpack.c.l.b16 %v221
        %v322 = vunpack.c.h.b16 %v221
        %v323 = vunpack.c.l.b16 %v222
        %v324 = vunpack.c.h.b16 %v222
        %v325 = vunpack.c.l.b16 %v223
        %v326 = vunpack.c.h.b16 %v223
        %v327 = vunpack.c.l.b16 %v224
        %v328 = vunpack.c.h.b16 %v224
        %v329 = vunpack.c.l.b16 %v225
        %v330 = vunpack.c.h.b16 %v225
        %v331 = vunpack.c.l.b16 %v226
        %v332 = vunpack.c.h.b16 %v226
        %v333 = vunpack.c.l.b16 %v227
        %v334 = vunpack.c.h.b16 %v227
        %v335 = vunpack.c.l.b16 %v228
        %v336 = vunpack.c.h.b16 %v228
        %v337 = vunpack.c.l.b16 %v229
        %v338 = vunpack.c.h.b16 %v229
        %v339 = vunpack.c.l.b16 %v230
        %v340 = vunpack.c.h.b16 %v230
        %v341 = vunpack.c.l.b16 %v231
        %v342 = vunpack.c.h.b16 %v231
        %v343 = vunpack.c.l.b16 %v232
        %v344 = vunpack.c.h.b16 %v232
        %v345 = vunpack.c.l.b16 %v233
        %v346 = vunpack.c.h.b16 %v233
        %v347 = vunpack.c.l.b16 %v234
        %v348 = vunpack.c.h.b16 %v234
        %v349 = vpack.c.b16 %v281, %v277
        %v350 = vpack.c.b16 %v282, %v278
        %v351 = vpack.c.b16 %v283, %v279
        %v352 = vpack.c.b16 %v284, %v280
        %v353 = vpack.c.b16 %v289, %v285
        %v354 = vpack.c.b16 %v290, %v286
        %v355 = vpack.c.b16 %v291, %v287
        %v356 = vpack.c.b16 %v292, %v288
        %v357 = vpack.c.b16 %v297, %v293
        %v358 = vpack.c.b16 %v298, %v294
        %v359 = vpack.c.b16 %v299, %v295
        %v360 = vpack.c.b16 %v300, %v296
        %v361 = vpack.c.b16 %v305, %v301
        %v362 = vpack.c.b16 %v306, %v302
        %v363 = vpack.c.b16 %v307, %v303
        %v364 = vpack.c.b16 %v308, %v304
        %v365 = vpack.c.b16 %v313, %v309
        %v366 = vpack.c.b16 %v314, %v310
        %v367 = vpack.c.b16 %v315, %v311
        %v368 = vpack.c.b16 %v316, %v312
        %v369 = vpack.c.b16 %v321, %v317
        %v370 = vpack.c.b16 %v322, %v318
        %v371 = vpack.c.b16 %v323, %v319
        %v372 = vpack.c.b16 %v324, %v320
        %v373 = vpack.c.b16 %v329, %v325
        %v374 = vpack.c.b16 %v330, %v326
        %v375 = vpack.c.b16 %v331, %v327
        %v376 = vpack.c.b16 %v332, %v328
        %v377 = vpack.c.b16 %v337, %v333
        %v378 = vpack.c.b16 %v338, %v334
        %v379 = vpack.c.b16 %v339, %v335
        %v380 = vpack.c.b16 %v340, %v336
        %v381 = vpack.c.b16 %v345, %v341
        %v382 = vpack.c.b16 %v346, %v342
        %v383 = vpack.c.b16 %v347, %v343
        %v384 = vpack.c.b16 %v348, %v344
        %vm421 = vcmask 130048
        %v423 = vsel %vm421, %v239, 0
        %425 = vmatprep.subr.bf16.mxu0 %v378
        %426 = vmatpush1.bf16.msra.mxu0 %v377
        %427 = vmatprep.subr.bf16.mxu0 %v374
        %428 = vmatpush1.bf16.msra.mxu0 %v373
        %429 = vmatprep.subr.bf16.mxu0 %v370
        %430 = vmatpush1.bf16.msra.mxu0 %v369
        %431 = vmatprep.subr.bf16.mxu0 %v366
        %432 = vmatpush1.bf16.msra.mxu0 %v365
        %433 = vmatprep.subr.bf16.mxu0 %v362
        %434 = vmatpush1.bf16.msra.mxu0 %v361
        %435 = vmatprep.subr.bf16.mxu0 %v358
        %436 = vmatpush1.bf16.msra.mxu0 %v357
        %437 = vmatprep.subr.bf16.mxu0 %v354
        %438 = vmatpush1.bf16.msra.mxu0 %v353
        %439 = vmatprep.subr.bf16.mxu0 %v350
        %440 = vmatpush1.bf16.msra.mxu0 %v349
        %441 = vmatprep.subr.bf16.mxu0 0
        %442 = vmatpush2.bf16.msra.mxu0 0
        %443 = vmatprep.subr.bf16.mxu0 0
        %444 = vmatpush2.bf16.msra.mxu0 0
        %445 = vmatprep.subr.bf16.mxu0 0
        %446 = vmatpush2.bf16.msra.mxu0 0
        %447 = vmatprep.subr.bf16.mxu0 0
        %448 = vmatpush2.bf16.msra.mxu0 0
        %449 = vmatprep.subr.bf16.mxu0 0
        %450 = vmatpush2.bf16.msra.mxu0 0
        %451 = vmatprep.subr.bf16.mxu0 0
        %452 = vmatpush2.bf16.msra.mxu0 0
        %453 = vmatprep.subr.bf16.mxu0 0
        %454 = vmatpush2.bf16.msra.mxu0 0
        %455 = vmatprep.subr.bf16.mxu0 %v382
        %456 = vmatpush2.bf16.msra.mxu0 %v381
        %457 = vmatprep.mubr.bf16.mxu0 %v423
        %458 = vmatmul.mubr.bf16.gmra.mxu0 %v238
        %v459 = vpop.f32.mrf.mxu0
        %v460 = vadd.f32 0.0, %v459
        %v461 = vpop.f32.mrf.mxu0
        %v462 = vadd.f32 0.0, %v461
        %v463 = vpop.f32.mrf.mxu0
        %v464 = vpop.f32.mrf.mxu0
        %465 = vdwg.mxu0
        %466 = vmatprep.subr.bf16.mxu0 %v380
        %467 = vmatpush1.bf16.msra.mxu0 %v379
        %468 = vmatprep.subr.bf16.mxu0 %v376
        %469 = vmatpush1.bf16.msra.mxu0 %v375
        %470 = vmatprep.subr.bf16.mxu0 %v372
        %471 = vmatpush1.bf16.msra.mxu0 %v371
        %472 = vmatprep.subr.bf16.mxu0 %v368
        %473 = vmatpush1.bf16.msra.mxu0 %v367
        %474 = vmatprep.subr.bf16.mxu0 %v364
        %475 = vmatpush1.bf16.msra.mxu0 %v363
        %476 = vmatprep.subr.bf16.mxu0 %v360
        %477 = vmatpush1.bf16.msra.mxu0 %v359
        %478 = vmatprep.subr.bf16.mxu0 %v356
        %479 = vmatpush1.bf16.msra.mxu0 %v355
        %480 = vmatprep.subr.bf16.mxu0 %v352
        %481 = vmatpush1.bf16.msra.mxu0 %v351
        %482 = vmatprep.subr.bf16.mxu0 0
        %483 = vmatpush2.bf16.msra.mxu0 0
        %484 = vmatprep.subr.bf16.mxu0 0
        %485 = vmatpush2.bf16.msra.mxu0 0
        %486 = vmatprep.subr.bf16.mxu0 0
        %487 = vmatpush2.bf16.msra.mxu0 0
        %488 = vmatprep.subr.bf16.mxu0 0
        %489 = vmatpush2.bf16.msra.mxu0 0
        %490 = vmatprep.subr.bf16.mxu0 0
        %491 = vmatpush2.bf16.msra.mxu0 0
        %492 = vmatprep.subr.bf16.mxu0 0
        %493 = vmatpush2.bf16.msra.mxu0 0
        %494 = vmatprep.subr.bf16.mxu0 0
        %495 = vmatpush2.bf16.msra.mxu0 0
        %496 = vmatprep.subr.bf16.mxu0 %v384
        %497 = vmatpush2.bf16.msra.mxu0 %v383
        %498 = vmatprep.mubr.bf16.mxu0 %v423
        %499 = vmatmul.mubr.bf16.gmra.mxu0 %v238
        %v500 = vpop.f32.mrf.mxu0
        %v501 = vadd.f32 0.0, %v500
        %v502 = vpop.f32.mrf.mxu0
        %v503 = vadd.f32 0.0, %v502
        %v504 = vpop.f32.mrf.mxu0
        %v505 = vpop.f32.mrf.mxu0
        %506 = vdwg.mxu0
        %v507 = vmax.f32 %v460, %v462
        %v508 = vmax.f32 %v501, %v503
        %v509 = vmax.f32 %v507, %v508
        %v510 = vld [vmem:[#allocation4] sm:$0x1]
        %v512 = vlaneseq
        %v513 = vshrl.u32 %v512, 7
        %v514 = vsub.s32 0, %v513
        %v515 = vrot.slane %v510, %v514
        %v517 = vadd.f32 %v509, %v515
        %v518 = vmax.f32 %v517, 0.0
        %v519 = vpack.c.bf16 %v518, %v518
        %520 = vst [vmem:[%s196] sm:$0xf] %v519
        %p521 = scmp.lt.s32.totalorder %s16, 12
        %s522 = scalar_select %p521, %s16, 12
        %s523 = smul.addr %s522, 4
        %s524 = scalar_lea.vmem %s3, %s523
        // Predicated region
        $region41: #{forward.3} parent=31 // pred_check
          %p525 = pneg %p102
        $region42: #{forward.3} parent=31 // pred_check_branch
          %527 = sbr.rel (%p525) target = $region44
        $region43: #{forward.3} parent=31 // pred_region
          _
        $region44: #{forward.3} parent=31 // pred_fallthru
          _
      $region32: #{forward.3} parent=5 // pred_fallthru
        _
      %p528 = scmp.le.s32.totalorder 2, %s11
      // Predicated region
      $region45: #{forward.3} parent=5 // pred_check
        %p529 = pneg %p528
      $region46: #{forward.3} parent=5 // pred_check_branch
        %531 = sbr.rel (%p529) target = $region48
      $region47: #{forward.3} parent=5 // pred_region
        %s532 = ssub.s32 %s11, 2
        // Predicated region
        $region49: #{forward.3} parent=47 // pred_check
          %p533 = pneg %p108
        $region50: #{forward.3} parent=47 // pred_check_branch
          %535 = sbr.rel (%p533) target = $region52
        $region51: #{forward.3} parent=47 // pred_region
          %p536 = scmp.lt.s32.totalorder %s17, 12
          %s537 = scalar_select %p536, %s17, 12
          %s538 = smul.addr %s537, 4
          %s539 = scalar_lea.vmem %s3, %s538
        $region52: #{forward.3} parent=47 // pred_fallthru
          _
      $region48: #{forward.3} parent=5 // pred_fallthru
        _
    $region6: #{forward.3} parent=1 // loop_footer
      %s15 = sadd.s32 1, %s11
    $region7: #{forward.3} parent=1 // loop_footer_branch
      %10 = sbr.rel target = $region3
    $region8: #{forward.3} parent=1 // loop_exit
      _
    %540 = vsyncpa [#allocation3], 1
    %s541 = scalar_lea.sflag [#allocation3], 1
    %542 = vsyncpa %s541, 1
    %543 = vsyncpa [#allocation5], 1

// kernel: forward.5
$region0: #{forward.5}
  #allocation0 [shape = 'u32[]', space=smem, size = 0x4, offset = 0x4, fixed_abs, tag = 'smem constant byte address 0x4 - core index']
  #allocation1 [shape = 'u32[144,128]{1,0:T(1,128)}', space=vmem, size = 0x12000, scoped, tag = 'internal scratch']
  %s0 = inlined_call_operand.vmem [shape: bf16[8,3136], index: 0, kind: input, shape index: {}]
  %s1 = inlined_call_operand.vmem [shape: bf16[3136,128], index: 1, kind: input, shape index: {}]
  %s2 = inlined_call_operand.vmem [shape: f32[1,128], index: 2, kind: input, shape index: {}]
  %s3 = inlined_call_operand.vmem [shape: bf16[128,64], index: 3, kind: input, shape index: {}]
  %s4 = inlined_call_operand.vmem [shape: f32[1,64], index: 4, kind: input, shape index: {}]
  %s5 = inlined_call_operand.vmem [shape: bf16[64,128], index: 5, kind: input, shape index: {}]
  %s6 = inlined_call_operand.vmem [shape: f32[1,128], index: 6, kind: input, shape index: {}]
  %s7 = inlined_call_operand.vmem [shape: f32[8,128], index: 7, kind: output, shape index: {}]
  %s8 = sld [smem:[#allocation0]]
  $region38: #{forward.5} parent=0
    _
  %s10 = ssub.s32 1, %s8
  %s11 = scalar_select 0, %s10, %s8
  // Predicated region
  $region2: #{forward.5} parent=0 // pred_check
    _
  $region3: #{forward.5} parent=0 // pred_check_branch
    %13 = sbr.rel (0) target = $region5
  $region4: #{forward.5} parent=0 // pred_region
    _
  $region5: #{forward.5} parent=0 // pred_fallthru
    _
  // Predicated region
  $region6: #{forward.5} parent=0 // pred_check
    _
  $region7: #{forward.5} parent=0 // pred_check_branch
    %15 = sbr.rel (0) target = $region9
  $region8: #{forward.5} parent=0 // pred_region
    _
  $region9: #{forward.5} parent=0 // pred_fallthru
    _
  // Predicated region
  $region10: #{forward.5} parent=0 // pred_check
    _
  $region11: #{forward.5} parent=0 // pred_check_branch
    %17 = sbr.rel (0) target = $region13
  $region12: #{forward.5} parent=0 // pred_region
    _
  $region13: #{forward.5} parent=0 // pred_fallthru
    _
  // Predicated region
  $region14: #{forward.5} parent=0 // pred_check
    _
  $region15: #{forward.5} parent=0 // pred_check_branch
    %19 = sbr.rel (0) target = $region17
  $region16: #{forward.5} parent=0 // pred_region
    _
  $region17: #{forward.5} parent=0 // pred_fallthru
    _
  // Predicated region
  $region18: #{forward.5} parent=0 // pred_check
    _
  $region19: #{forward.5} parent=0 // pred_check_branch
    %21 = sbr.rel (0) target = $region21
  $region20: #{forward.5} parent=0 // pred_region
    _
  $region21: #{forward.5} parent=0 // pred_fallthru
    _
  // Predicated region
  $region22: #{forward.5} parent=0 // pred_check
    _
  $region23: #{forward.5} parent=0 // pred_check_branch
    %23 = sbr.rel (0) target = $region25
  $region24: #{forward.5} parent=0 // pred_region
    _
  $region25: #{forward.5} parent=0 // pred_fallthru
    _
  // Predicated region
  $region26: #{forward.5} parent=0 // pred_check
    _
  $region27: #{forward.5} parent=0 // pred_check_branch
    %25 = sbr.rel (0) target = $region29
  $region28: #{forward.5} parent=0 // pred_region
    _
  $region29: #{forward.5} parent=0 // pred_fallthru
    _
  %v27 = vld [vmem:[%s0] sm:$0xff]
  %v28 = vld [vmem:[%s0 + $0x8] sm:$0xff]
  %v29 = vld [vmem:[%s0 + $0x10] sm:$0xff]
  %v30 = vld [vmem:[%s0 + $0x18] sm:$0xff]
  %v31 = vld [vmem:[%s0 + $0x20] sm:$0xff]
  %v32 = vld [vmem:[%s0 + $0x28] sm:$0xff]
  %v33 = vld [vmem:[%s0 + $0x30] sm:$0xff]
  %v34 = vld [vmem:[%s0 + $0x38] sm:$0xff]
  %v35 = vld [vmem:[%s0 + $0x40] sm:$0xff]
  %v36 = vld [vmem:[%s0 + $0x48] sm:$0xff]
  %v37 = vld [vmem:[%s0 + $0x50] sm:$0xff]
  %v38 = vld [vmem:[%s0 + $0x58] sm:$0xff]
  %v39 = vld [vmem:[%s0 + $0x60] sm:$0xf]
  %v40 = vld [vmem:[%s1] sm:$0xf]
  %v41 = vld [vmem:[%s1 + $0x4] sm:$0xf]
  %v42 = vld [vmem:[%s1 + $0x8] sm:$0xf]
  %v43 = vld [vmem:[%s1 + $0xc] sm:$0xf]
  %v44 = vld [vmem:[%s1 + $0x10] sm:$0xf]
  %v45 = vld [vmem:[%s1 + $0x14] sm:$0xf]
  %v46 = vld [vmem:[%s1 + $0x18] sm:$0xf]
  %v47 = vld [vmem:[%s1 + $0x1c] sm:$0xf]
  %v48 = vld [vmem:[%s1 + $0x20] sm:$0xf]
  %v49 = vld [vmem:[%s1 + $0x24] sm:$0xf]
  %v50 = vld [vmem:[%s1 + $0x28] sm:$0xf]
  %v51 = vld [vmem:[%s1 + $0x2c] sm:$0xf]
  %v52 = vld [vmem:[%s1 + $0x30] sm:$0xf]
  %v53 = vld [vmem:[%s1 + $0x34] sm:$0xf]
  %v54 = vld [vmem:[%s1 + $0x38] sm:$0xf]
  %v55 = vld [vmem:[%s1 + $0x3c] sm:$0xf]
  %v56 = vld [vmem:[%s1 + $0x40] sm:$0xf]
  %v57 = vld [vmem:[%s1 + $0x44] sm:$0xf]
  %v58 = vld [vmem:[%s1 + $0x48] sm:$0xf]
  %v59 = vld [vmem:[%s1 + $0x4c] sm:$0xf]
  %v60 = vld [vmem:[%s1 + $0x50] sm:$0xf]
  %v61 = vld [vmem:[%s1 + $0x54] sm:$0xf]
  %v62 = vld [vmem:[%s1 + $0x58] sm:$0xf]
  %v63 = vld [vmem:[%s1 + $0x5c] sm:$0xf]
  %v64 = vld [vmem:[%s1 + $0x60] sm:$0xf]
  %v65 = vld [vmem:[%s1 + $0x64] sm:$0xf]
  %v66 = vld [vmem:[%s1 + $0x68] sm:$0xf]
  %v67 = vld [vmem:[%s1 + $0x6c] sm:$0xf]
  %v68 = vld [vmem:[%s1 + $0x70] sm:$0xf]
  %v69 = vld [vmem:[%s1 + $0x74] sm:$0xf]
  %v70 = vld [vmem:[%s1 + $0x78] sm:$0xf]
  %v71 = vld [vmem:[%s1 + $0x7c] sm:$0xf]
  %v72 = vld [vmem:[%s1 + $0x80] sm:$0xf]
  %v73 = vld [vmem:[%s1 + $0x84] sm:$0xf]
  %v74 = vld [vmem:[%s1 + $0x88] sm:$0xf]
  %v75 = vld [vmem:[%s1 + $0x8c] sm:$0xf]
  %v76 = vld [vmem:[%s1 + $0x90] sm:$0xf]
  %v77 = vld [vmem:[%s1 + $0x94] sm:$0xf]
  %v78 = vld [vmem:[%s1 + $0x98] sm:$0xf]
  %v79 = vld [vmem:[%s1 + $0x9c] sm:$0xf]
  %v80 = vld [vmem:[%s1 + $0xa0] sm:$0xf]
  %v81 = vld [vmem:[%s1 + $0xa4] sm:$0xf]
  %v82 = vld [vmem:[%s1 + $0xa8] sm:$0xf]
  %v83 = vld [vmem:[%s1 + $0xac] sm:$0xf]
  %v84 = vld [vmem:[%s1 + $0xb0] sm:$0xf]
  %v85 = vld [vmem:[%s1 + $0xb4] sm:$0xf]
  %v86 = vld [vmem:[%s1 + $0xb8] sm:$0xf]
  %v87 = vld [vmem:[%s1 + $0xbc] sm:$0xf]
  %v88 = vld [vmem:[%s1 + $0xc0] sm:$0xf]
  %v89 = vld [vmem:[%s1 + $0xc4] sm:$0xf]
  %v90 = vld [vmem:[%s1 + $0xc8] sm:$0xf]
  %v91 = vld [vmem:[%s1 + $0xcc] sm:$0xf]
  %v92 = vld [vmem:[%s1 + $0xd0] sm:$0xf]
  %v93 = vld [vmem:[%s1 + $0xd4] sm:$0xf]
  %v94 = vld [vmem:[%s1 + $0xd8] sm:$0xf]
  %v95 = vld [vmem:[%s1 + $0xdc] sm:$0xf]
  %v96 = vld [vmem:[%s1 + $0xe0] sm:$0xf]
  %v97 = vld [vmem:[%s1 + $0xe4] sm:$0xf]
  %v98 = vld [vmem:[%s1 + $0xe8] sm:$0xf]
  %v99 = vld [vmem:[%s1 + $0xec] sm:$0xf]
  %v100 = vld [vmem:[%s1 + $0xf0] sm:$0xf]
  %v101 = vld [vmem:[%s1 + $0xf4] sm:$0xf]
  %v102 = vld [vmem:[%s1 + $0xf8] sm:$0xf]
  %v103 = vld [vmem:[%s1 + $0xfc] sm:$0xf]
  %v104 = vld [vmem:[%s1 + $0x100] sm:$0xf]
  %v105 = vld [vmem:[%s1 + $0x104] sm:$0xf]
  %v106 = vld [vmem:[%s1 + $0x108] sm:$0xf]
  %v107 = vld [vmem:[%s1 + $0x10c] sm:$0xf]
  %v108 = vld [vmem:[%s1 + $0x110] sm:$0xf]
  %v109 = vld [vmem:[%s1 + $0x114] sm:$0xf]
  %v110 = vld [vmem:[%s1 + $0x118] sm:$0xf]
  %v111 = vld [vmem:[%s1 + $0x11c] sm:$0xf]
  %v112 = vld [vmem:[%s1 + $0x120] sm:$0xf]
  %v113 = vld [vmem:[%s1 + $0x124] sm:$0xf]
  %v114 = vld [vmem:[%s1 + $0x128] sm:$0xf]
  %v115 = vld [vmem:[%s1 + $0x12c] sm:$0xf]
  %v116 = vld [vmem:[%s1 + $0x130] sm:$0xf]
  %v117 = vld [vmem:[%s1 + $0x134] sm:$0xf]
  %v118 = vld [vmem:[%s1 + $0x138] sm:$0xf]
  %v119 = vld [vmem:[%s1 + $0x13c] sm:$0xf]
  %v120 = vld [vmem:[%s1 + $0x140] sm:$0xf]
  %v121 = vld [vmem:[%s1 + $0x144] sm:$0xf]
  %v122 = vld [vmem:[%s1 + $0x148] sm:$0xf]
  %v123 = vld [vmem:[%s1 + $0x14c] sm:$0xf]
  %v124 = vld [vmem:[%s1 + $0x150] sm:$0xf]
  %v125 = vld [vmem:[%s1 + $0x154] sm:$0xf]
  %v126 = vld [vmem:[%s1 + $0x158] sm:$0xf]
  %v127 = vld [vmem:[%s1 + $0x15c] sm:$0xf]
  %v128 = vld [vmem:[%s1 + $0x160] sm:$0xf]
  %v129 = vld [vmem:[%s1 + $0x164] sm:$0xf]
  %v130 = vld [vmem:[%s1 + $0x168] sm:$0xf]
  %v131 = vld [vmem:[%s1 + $0x16c] sm:$0xf]
  %v132 = vld [vmem:[%s1 + $0x170] sm:$0xf]
  %v133 = vld [vmem:[%s1 + $0x174] sm:$0xf]
  %v134 = vld [vmem:[%s1 + $0x178] sm:$0xf]
  %v135 = vld [vmem:[%s1 + $0x17c] sm:$0xf]
  %v136 = vld [vmem:[%s1 + $0x180] sm:$0xf]
  %v137 = vld [vmem:[%s1 + $0x184] sm:$0xf]
  %v138 = vld [vmem:[%s1 + $0x188] sm:$0xf]
  %v139 = vld [vmem:[%s1 + $0x18c] sm:$0xf]
  %v140 = vld [vmem:[%s1 + $0x190] sm:$0xf]
  %v141 = vld [vmem:[%s1 + $0x194] sm:$0xf]
  %v142 = vld [vmem:[%s1 + $0x198] sm:$0xf]
  %v143 = vld [vmem:[%s1 + $0x19c] sm:$0xf]
  %v144 = vld [vmem:[%s1 + $0x1a0] sm:$0xf]
  %v145 = vld [vmem:[%s1 + $0x1a4] sm:$0xf]
  %v146 = vld [vmem:[%s1 + $0x1a8] sm:$0xf]
  %v147 = vld [vmem:[%s1 + $0x1ac] sm:$0xf]
  %v148 = vld [vmem:[%s1 + $0x1b0] sm:$0xf]
  %v149 = vld [vmem:[%s1 + $0x1b4] sm:$0xf]
  %v150 = vld [vmem:[%s1 + $0x1b8] sm:$0xf]
  %v151 = vld [vmem:[%s1 + $0x1bc] sm:$0xf]
  %v152 = vld [vmem:[%s1 + $0x1c0] sm:$0xf]
  %v153 = vld [vmem:[%s1 + $0x1c4] sm:$0xf]
  %v154 = vld [vmem:[%s1 + $0x1c8] sm:$0xf]
  %v155 = vld [vmem:[%s1 + $0x1cc] sm:$0xf]
  %v156 = vld [vmem:[%s1 + $0x1d0] sm:$0xf]
  %v157 = vld [vmem:[%s1 + $0x1d4] sm:$0xf]
  %v158 = vld [vmem:[%s1 + $0x1d8] sm:$0xf]
  %v159 = vld [vmem:[%s1 + $0x1dc] sm:$0xf]
  %v160 = vld [vmem:[%s1 + $0x1e0] sm:$0xf]
  %v161 = vld [vmem:[%s1 + $0x1e4] sm:$0xf]
  %v162 = vld [vmem:[%s1 + $0x1e8] sm:$0xf]
  %v163 = vld [vmem:[%s1 + $0x1ec] sm:$0xf]
  %v164 = vld [vmem:[%s1 + $0x1f0] sm:$0xf]
  %v165 = vld [vmem:[%s1 + $0x1f4] sm:$0xf]
  %v166 = vld [vmem:[%s1 + $0x1f8] sm:$0xf]
  %v167 = vld [vmem:[%s1 + $0x1fc] sm:$0xf]
  %v168 = vld [vmem:[%s1 + $0x200] sm:$0xf]
  %v169 = vld [vmem:[%s1 + $0x204] sm:$0xf]
  %v170 = vld [vmem:[%s1 + $0x208] sm:$0xf]
  %v171 = vld [vmem:[%s1 + $0x20c] sm:$0xf]
  %v172 = vld [vmem:[%s1 + $0x210] sm:$0xf]
  %v173 = vld [vmem:[%s1 + $0x214] sm:$0xf]
  %v174 = vld [vmem:[%s1 + $0x218] sm:$0xf]
  %v175 = vld [vmem:[%s1 + $0x21c] sm:$0xf]
  %v176 = vld [vmem:[%s1 + $0x220] sm:$0xf]
  %v177 = vld [vmem:[%s1 + $0x224] sm:$0xf]
  %v178 = vld [vmem:[%s1 + $0x228] sm:$0xf]
  %v179 = vld [vmem:[%s1 + $0x22c] sm:$0xf]
  %v180 = vld [vmem:[%s1 + $0x230] sm:$0xf]
  %v181 = vld [vmem:[%s1 + $0x234] sm:$0xf]
  %v182 = vld [vmem:[%s1 + $0x238] sm:$0xf]
  %v183 = vld [vmem:[%s1 + $0x23c] sm:$0xf]
  %v184 = vld [vmem:[%s1 + $0x240] sm:$0xf]
  %v185 = vld [vmem:[%s1 + $0x244] sm:$0xf]
  %v186 = vld [vmem:[%s1 + $0x248] sm:$0xf]
  %v187 = vld [vmem:[%s1 + $0x24c] sm:$0xf]
  %v188 = vld [vmem:[%s1 + $0x250] sm:$0xf]
  %v189 = vld [vmem:[%s1 + $0x254] sm:$0xf]
  %v190 = vld [vmem:[%s1 + $0x258] sm:$0xf]
  %v191 = vld [vmem:[%s1 + $0x25c] sm:$0xf]
  %v192 = vld [vmem:[%s1 + $0x260] sm:$0xf]
  %v193 = vld [vmem:[%s1 + $0x264] sm:$0xf]
  %v194 = vld [vmem:[%s1 + $0x268] sm:$0xf]
  %v195 = vld [vmem:[%s1 + $0x26c] sm:$0xf]
  %v196 = vld [vmem:[%s1 + $0x270] sm:$0xf]
  %v197 = vld [vmem:[%s1 + $0x274] sm:$0xf]
  %v198 = vld [vmem:[%s1 + $0x278] sm:$0xf]
  %v199 = vld [vmem:[%s1 + $0x27c] sm:$0xf]
  %v200 = vld [vmem:[%s1 + $0x280] sm:$0xf]
  %v201 = vld [vmem:[%s1 + $0x284] sm:$0xf]
  %v202 = vld [vmem:[%s1 + $0x288] sm:$0xf]
  %v203 = vld [vmem:[%s1 + $0x28c] sm:$0xf]
  %v204 = vld [vmem:[%s1 + $0x290] sm:$0xf]
  %v205 = vld [vmem:[%s1 + $0x294] sm:$0xf]
  %v206 = vld [vmem:[%s1 + $0x298] sm:$0xf]
  %v207 = vld [vmem:[%s1 + $0x29c] sm:$0xf]
  %v208 = vld [vmem:[%s1 + $0x2a0] sm:$0xf]
  %v209 = vld [vmem:[%s1 + $0x2a4] sm:$0xf]
  %v210 = vld [vmem:[%s1 + $0x2a8] sm:$0xf]
  %v211 = vld [vmem:[%s1 + $0x2ac] sm:$0xf]
  %v212 = vld [vmem:[%s1 + $0x2b0] sm:$0xf]
  %v213 = vld [vmem:[%s1 + $0x2b4] sm:$0xf]
  %v214 = vld [vmem:[%s1 + $0x2b8] sm:$0xf]
  %v215 = vld [vmem:[%s1 + $0x2bc] sm:$0xf]
  %v216 = vld [vmem:[%s1 + $0x2c0] sm:$0xf]
  %v217 = vld [vmem:[%s1 + $0x2c4] sm:$0xf]
  %v218 = vld [vmem:[%s1 + $0x2c8] sm:$0xf]
  %v219 = vld [vmem:[%s1 + $0x2cc] sm:$0xf]
  %v220 = vld [vmem:[%s1 + $0x2d0] sm:$0xf]
  %v221 = vld [vmem:[%s1 + $0x2d4] sm:$0xf]
  %v222 = vld [vmem:[%s1 + $0x2d8] sm:$0xf]
  %v223 = vld [vmem:[%s1 + $0x2dc] sm:$0xf]
  %v224 = vld [vmem:[%s1 + $0x2e0] sm:$0xf]
  %v225 = vld [vmem:[%s1 + $0x2e4] sm:$0xf]
  %v226 = vld [vmem:[%s1 + $0x2e8] sm:$0xf]
  %v227 = vld [vmem:[%s1 + $0x2ec] sm:$0xf]
  %v228 = vld [vmem:[%s1 + $0x2f0] sm:$0xf]
  %v229 = vld [vmem:[%s1 + $0x2f4] sm:$0xf]
  %v230 = vld [vmem:[%s1 + $0x2f8] sm:$0xf]
  %v231 = vld [vmem:[%s1 + $0x2fc] sm:$0xf]
  %v232 = vld [vmem:[%s1 + $0x300] sm:$0xf]
  %v233 = vld [vmem:[%s1 + $0x304] sm:$0xf]
  %v234 = vld [vmem:[%s1 + $0x308] sm:$0xf]
  %v235 = vld [vmem:[%s1 + $0x30c] sm:$0xf]
  %v236 = vld [vmem:[%s1 + $0x310] sm:$0xf]
  %v237 = vld [vmem:[%s1 + $0x314] sm:$0xf]
  %v238 = vld [vmem:[%s1 + $0x318] sm:$0xf]
  %v239 = vld [vmem:[%s1 + $0x31c] sm:$0xf]
  %v240 = vld [vmem:[%s1 + $0x320] sm:$0xf]
  %v241 = vld [vmem:[%s1 + $0x324] sm:$0xf]
  %v242 = vld [vmem:[%s1 + $0x328] sm:$0xf]
  %v243 = vld [vmem:[%s1 + $0x32c] sm:$0xf]
  %v244 = vld [vmem:[%s1 + $0x330] sm:$0xf]
  %v245 = vld [vmem:[%s1 + $0x334] sm:$0xf]
  %v246 = vld [vmem:[%s1 + $0x338] sm:$0xf]
  %v247 = vld [vmem:[%s1 + $0x33c] sm:$0xf]
  %v248 = vld [vmem:[%s1 + $0x340] sm:$0xf]
  %v249 = vld [vmem:[%s1 + $0x344] sm:$0xf]
  %v250 = vld [vmem:[%s1 + $0x348] sm:$0xf]
  %v251 = vld [vmem:[%s1 + $0x34c] sm:$0xf]
  %v252 = vld [vmem:[%s1 + $0x350] sm:$0xf]
  %v253 = vld [vmem:[%s1 + $0x354] sm:$0xf]
  %v254 = vld [vmem:[%s1 + $0x358] sm:$0xf]
  %v255 = vld [vmem:[%s1 + $0x35c] sm:$0xf]
  %v256 = vld [vmem:[%s1 + $0x360] sm:$0xf]
  %v257 = vld [vmem:[%s1 + $0x364] sm:$0xf]
  %v258 = vld [vmem:[%s1 + $0x368] sm:$0xf]
  %v259 = vld [vmem:[%s1 + $0x36c] sm:$0xf]
  %v260 = vld [vmem:[%s1 + $0x370] sm:$0xf]
  %v261 = vld [vmem:[%s1 + $0x374] sm:$0xf]
  %v262 = vld [vmem:[%s1 + $0x378] sm:$0xf]
  %v263 = vld [vmem:[%s1 + $0x37c] sm:$0xf]
  %v264 = vld [vmem:[%s1 + $0x380] sm:$0xf]
  %v265 = vld [vmem:[%s1 + $0x384] sm:$0xf]
  %v266 = vld [vmem:[%s1 + $0x388] sm:$0xf]
  %v267 = vld [vmem:[%s1 + $0x38c] sm:$0xf]
  %v268 = vld [vmem:[%s1 + $0x390] sm:$0xf]
  %v269 = vld [vmem:[%s1 + $0x394] sm:$0xf]
  %v270 = vld [vmem:[%s1 + $0x398] sm:$0xf]
  %v271 = vld [vmem:[%s1 + $0x39c] sm:$0xf]
  %v272 = vld [vmem:[%s1 + $0x3a0] sm:$0xf]
  %v273 = vld [vmem:[%s1 + $0x3a4] sm:$0xf]
  %v274 = vld [vmem:[%s1 + $0x3a8] sm:$0xf]
  %v275 = vld [vmem:[%s1 + $0x3ac] sm:$0xf]
  %v276 = vld [vmem:[%s1 + $0x3b0] sm:$0xf]
  %v277 = vld [vmem:[%s1 + $0x3b4] sm:$0xf]
  %v278 = vld [vmem:[%s1 + $0x3b8] sm:$0xf]
  %v279 = vld [vmem:[%s1 + $0x3bc] sm:$0xf]
  %v280 = vld [vmem:[%s1 + $0x3c0] sm:$0xf]
  %v281 = vld [vmem:[%s1 + $0x3c4] sm:$0xf]
  %v282 = vld [vmem:[%s1 + $0x3c8] sm:$0xf]
  %v283 = vld [vmem:[%s1 + $0x3cc] sm:$0xf]
  %v284 = vld [vmem:[%s1 + $0x3d0] sm:$0xf]
  %v285 = vld [vmem:[%s1 + $0x3d4] sm:$0xf]
  %v286 = vld [vmem:[%s1 + $0x3d8] sm:$0xf]
  %v287 = vld [vmem:[%s1 + $0x3dc] sm:$0xf]
  %v288 = vld [vmem:[%s1 + $0x3e0] sm:$0xf]
  %v289 = vld [vmem:[%s1 + $0x3e4] sm:$0xf]
  %v290 = vld [vmem:[%s1 + $0x3e8] sm:$0xf]
  %v291 = vld [vmem:[%s1 + $0x3ec] sm:$0xf]
  %v292 = vld [vmem:[%s1 + $0x3f0] sm:$0xf]
  %v293 = vld [vmem:[%s1 + $0x3f4] sm:$0xf]
  %v294 = vld [vmem:[%s1 + $0x3f8] sm:$0xf]
  %v295 = vld [vmem:[%s1 + $0x3fc] sm:$0xf]
  %v296 = vld [vmem:[%s1 + $0x400] sm:$0xf]
  %v297 = vld [vmem:[%s1 + $0x404] sm:$0xf]
  %v298 = vld [vmem:[%s1 + $0x408] sm:$0xf]
  %v299 = vld [vmem:[%s1 + $0x40c] sm:$0xf]
  %v300 = vld [vmem:[%s1 + $0x410] sm:$0xf]
  %v301 = vld [vmem:[%s1 + $0x414] sm:$0xf]
  %v302 = vld [vmem:[%s1 + $0x418] sm:$0xf]
  %v303 = vld [vmem:[%s1 + $0x41c] sm:$0xf]
  %v304 = vld [vmem:[%s1 + $0x420] sm:$0xf]
  %v305 = vld [vmem:[%s1 + $0x424] sm:$0xf]
  %v306 = vld [vmem:[%s1 + $0x428] sm:$0xf]
  %v307 = vld [vmem:[%s1 + $0x42c] sm:$0xf]
  %v308 = vld [vmem:[%s1 + $0x430] sm:$0xf]
  %v309 = vld [vmem:[%s1 + $0x434] sm:$0xf]
  %v310 = vld [vmem:[%s1 + $0x438] sm:$0xf]
  %v311 = vld [vmem:[%s1 + $0x43c] sm:$0xf]
  %v312 = vld [vmem:[%s1 + $0x440] sm:$0xf]
  %v313 = vld [vmem:[%s1 + $0x444] sm:$0xf]
  %v314 = vld [vmem:[%s1 + $0x448] sm:$0xf]
  %v315 = vld [vmem:[%s1 + $0x44c] sm:$0xf]
  %v316 = vld [vmem:[%s1 + $0x450] sm:$0xf]
  %v317 = vld [vmem:[%s1 + $0x454] sm:$0xf]
  %v318 = vld [vmem:[%s1 + $0x458] sm:$0xf]
  %v319 = vld [vmem:[%s1 + $0x45c] sm:$0xf]
  %v320 = vld [vmem:[%s1 + $0x460] sm:$0xf]
  %v321 = vld [vmem:[%s1 + $0x464] sm:$0xf]
  %v322 = vld [vmem:[%s1 + $0x468] sm:$0xf]
  %v323 = vld [vmem:[%s1 + $0x46c] sm:$0xf]
  %v324 = vld [vmem:[%s1 + $0x470] sm:$0xf]
  %v325 = vld [vmem:[%s1 + $0x474] sm:$0xf]
  %v326 = vld [vmem:[%s1 + $0x478] sm:$0xf]
  %v327 = vld [vmem:[%s1 + $0x47c] sm:$0xf]
  %v328 = vld [vmem:[%s1 + $0x480] sm:$0xf]
  %v329 = vld [vmem:[%s1 + $0x484] sm:$0xf]
  %v330 = vld [vmem:[%s1 + $0x488] sm:$0xf]
  %v331 = vld [vmem:[%s1 + $0x48c] sm:$0xf]
  %v332 = vld [vmem:[%s1 + $0x490] sm:$0xf]
  %v333 = vld [vmem:[%s1 + $0x494] sm:$0xf]
  %v334 = vld [vmem:[%s1 + $0x498] sm:$0xf]
  %v335 = vld [vmem:[%s1 + $0x49c] sm:$0xf]
  %v336 = vld [vmem:[%s1 + $0x4a0] sm:$0xf]
  %v337 = vld [vmem:[%s1 + $0x4a4] sm:$0xf]
  %v338 = vld [vmem:[%s1 + $0x4a8] sm:$0xf]
  %v339 = vld [vmem:[%s1 + $0x4ac] sm:$0xf]
  %v340 = vld [vmem:[%s1 + $0x4b0] sm:$0xf]
  %v341 = vld [vmem:[%s1 + $0x4b4] sm:$0xf]
  %v342 = vld [vmem:[%s1 + $0x4b8] sm:$0xf]
  %v343 = vld [vmem:[%s1 + $0x4bc] sm:$0xf]
  %v344 = vld [vmem:[%s1 + $0x4c0] sm:$0xf]
  %v345 = vld [vmem:[%s1 + $0x4c4] sm:$0xf]
  %v346 = vld [vmem:[%s1 + $0x4c8] sm:$0xf]
  %v347 = vld [vmem:[%s1 + $0x4cc] sm:$0xf]
  %v348 = vld [vmem:[%s1 + $0x4d0] sm:$0xf]
  %v349 = vld [vmem:[%s1 + $0x4d4] sm:$0xf]
  %v350 = vld [vmem:[%s1 + $0x4d8] sm:$0xf]
  %v351 = vld [vmem:[%s1 + $0x4dc] sm:$0xf]
  %v352 = vld [vmem:[%s1 + $0x4e0] sm:$0xf]
  %v353 = vld [vmem:[%s1 + $0x4e4] sm:$0xf]
  %v354 = vld [vmem:[%s1 + $0x4e8] sm:$0xf]
  %v355 = vld [vmem:[%s1 + $0x4ec] sm:$0xf]
  %v356 = vld [vmem:[%s1 + $0x4f0] sm:$0xf]
  %v357 = vld [vmem:[%s1 + $0x4f4] sm:$0xf]
  %v358 = vld [vmem:[%s1 + $0x4f8] sm:$0xf]
  %v359 = vld [vmem:[%s1 + $0x4fc] sm:$0xf]
  %v360 = vld [vmem:[%s1 + $0x500] sm:$0xf]
  %v361 = vld [vmem:[%s1 + $0x504] sm:$0xf]
  %v362 = vld [vmem:[%s1 + $0x508] sm:$0xf]
  %v363 = vld [vmem:[%s1 + $0x50c] sm:$0xf]
  %v364 = vld [vmem:[%s1 + $0x510] sm:$0xf]
  %v365 = vld [vmem:[%s1 + $0x514] sm:$0xf]
  %v366 = vld [vmem:[%s1 + $0x518] sm:$0xf]
  %v367 = vld [vmem:[%s1 + $0x51c] sm:$0xf]
  %v368 = vld [vmem:[%s1 + $0x520] sm:$0xf]
  %v369 = vld [vmem:[%s1 + $0x524] sm:$0xf]
  %v370 = vld [vmem:[%s1 + $0x528] sm:$0xf]
  %v371 = vld [vmem:[%s1 + $0x52c] sm:$0xf]
  %v372 = vld [vmem:[%s1 + $0x530] sm:$0xf]
  %v373 = vld [vmem:[%s1 + $0x534] sm:$0xf]
  %v374 = vld [vmem:[%s1 + $0x538] sm:$0xf]
  %v375 = vld [vmem:[%s1 + $0x53c] sm:$0xf]
  %v376 = vld [vmem:[%s1 + $0x540] sm:$0xf]
  %v377 = vld [vmem:[%s1 + $0x544] sm:$0xf]
  %v378 = vld [vmem:[%s1 + $0x548] sm:$0xf]
  %v379 = vld [vmem:[%s1 + $0x54c] sm:$0xf]
  %v380 = vld [vmem:[%s1 + $0x550] sm:$0xf]
  %v381 = vld [vmem:[%s1 + $0x554] sm:$0xf]
  %v382 = vld [vmem:[%s1 + $0x558] sm:$0xf]
  %v383 = vld [vmem:[%s1 + $0x55c] sm:$0xf]
  %v384 = vld [vmem:[%s1 + $0x560] sm:$0xf]
  %v385 = vld [vmem:[%s1 + $0x564] sm:$0xf]
  %v386 = vld [vmem:[%s1 + $0x568] sm:$0xf]
  %v387 = vld [vmem:[%s1 + $0x56c] sm:$0xf]
  %v388 = vld [vmem:[%s1 + $0x570] sm:$0xf]
  %v389 = vld [vmem:[%s1 + $0x574] sm:$0xf]
  %v390 = vld [vmem:[%s1 + $0x578] sm:$0xf]
  %v391 = vld [vmem:[%s1 + $0x57c] sm:$0xf]
  %v392 = vld [vmem:[%s1 + $0x580] sm:$0xf]
  %v393 = vld [vmem:[%s1 + $0x584] sm:$0xf]
  %v394 = vld [vmem:[%s1 + $0x588] sm:$0xf]
  %v395 = vld [vmem:[%s1 + $0x58c] sm:$0xf]
  %v396 = vld [vmem:[%s1 + $0x590] sm:$0xf]
  %v397 = vld [vmem:[%s1 + $0x594] sm:$0xf]
  %v398 = vld [vmem:[%s1 + $0x598] sm:$0xf]
  %v399 = vld [vmem:[%s1 + $0x59c] sm:$0xf]
  %v400 = vld [vmem:[%s1 + $0x5a0] sm:$0xf]
  %v401 = vld [vmem:[%s1 + $0x5a4] sm:$0xf]
  %v402 = vld [vmem:[%s1 + $0x5a8] sm:$0xf]
  %v403 = vld [vmem:[%s1 + $0x5ac] sm:$0xf]
  %v404 = vld [vmem:[%s1 + $0x5b0] sm:$0xf]
  %v405 = vld [vmem:[%s1 + $0x5b4] sm:$0xf]
  %v406 = vld [vmem:[%s1 + $0x5b8] sm:$0xf]
  %v407 = vld [vmem:[%s1 + $0x5bc] sm:$0xf]
  %v408 = vld [vmem:[%s1 + $0x5c0] sm:$0xf]
  %v409 = vld [vmem:[%s1 + $0x5c4] sm:$0xf]
  %v410 = vld [vmem:[%s1 + $0x5c8] sm:$0xf]
  %v411 = vld [vmem:[%s1 + $0x5cc] sm:$0xf]
  %v412 = vld [vmem:[%s1 + $0x5d0] sm:$0xf]
  %v413 = vld [vmem:[%s1 + $0x5d4] sm:$0xf]
  %v414 = vld [vmem:[%s1 + $0x5d8] sm:$0xf]
  %v415 = vld [vmem:[%s1 + $0x5dc] sm:$0xf]
  %v416 = vld [vmem:[%s1 + $0x5e0] sm:$0xf]
  %v417 = vld [vmem:[%s1 + $0x5e4] sm:$0xf]
  %v418 = vld [vmem:[%s1 + $0x5e8] sm:$0xf]
  %v419 = vld [vmem:[%s1 + $0x5ec] sm:$0xf]
  %v420 = vld [vmem:[%s1 + $0x5f0] sm:$0xf]
  %v421 = vld [vmem:[%s1 + $0x5f4] sm:$0xf]
  %v422 = vld [vmem:[%s1 + $0x5f8] sm:$0xf]
  %v423 = vld [vmem:[%s1 + $0x5fc] sm:$0xf]
  %v424 = vld [vmem:[%s1 + $0x600] sm:$0xf]
  %v425 = vld [vmem:[%s1 + $0x604] sm:$0xf]
  %v426 = vld [vmem:[%s1 + $0x608] sm:$0xf]
  %v427 = vld [vmem:[%s1 + $0x60c] sm:$0xf]
  %v428 = vld [vmem:[%s1 + $0x610] sm:$0xf]
  %v429 = vld [vmem:[%s1 + $0x614] sm:$0xf]
  %v430 = vld [vmem:[%s1 + $0x618] sm:$0xf]
  %v431 = vld [vmem:[%s1 + $0x61c] sm:$0xf]
  %v432 = vld [vmem:[%s2] sm:$0x1]
  %v434 = vlaneseq
  %v435 = vshrl.u32 %v434, 7
  %v436 = vsub.s32 0, %v435
  %v437 = vrot.slane %v432, %v436
  %v452 = vunpack.c.l.b16 %v27
  %v453 = vunpack.c.h.b16 %v27
  %v454 = vunpack.c.l.b16 %v28
  %v455 = vunpack.c.h.b16 %v28
  %v456 = vunpack.c.l.b16 %v29
  %v457 = vunpack.c.h.b16 %v29
  %v458 = vunpack.c.l.b16 %v30
  %v459 = vunpack.c.h.b16 %v30
  %v460 = vunpack.c.l.b16 %v31
  %v461 = vunpack.c.h.b16 %v31
  %v462 = vunpack.c.l.b16 %v32
  %v463 = vunpack.c.h.b16 %v32
  %v464 = vunpack.c.l.b16 %v33
  %v465 = vunpack.c.h.b16 %v33
  %v466 = vunpack.c.l.b16 %v34
  %v467 = vunpack.c.h.b16 %v34
  %v468 = vunpack.c.l.b16 %v35
  %v469 = vunpack.c.h.b16 %v35
  %v470 = vunpack.c.l.b16 %v36
  %v471 = vunpack.c.h.b16 %v36
  %v472 = vunpack.c.l.b16 %v37
  %v473 = vunpack.c.h.b16 %v37
  %v474 = vunpack.c.l.b16 %v38
  %v475 = vunpack.c.h.b16 %v38
  %v476 = vunpack.c.l.b16 %v39
  %v477 = vpack.c.b16 %v452, %v452
  %v478 = vpack.c.b16 %v453, %v453
  %v479 = vpack.c.b16 %v454, %v454
  %v480 = vpack.c.b16 %v455, %v455
  %v481 = vpack.c.b16 %v456, %v456
  %v482 = vpack.c.b16 %v457, %v457
  %v483 = vpack.c.b16 %v458, %v458
  %v484 = vpack.c.b16 %v459, %v459
  %v485 = vpack.c.b16 %v460, %v460
  %v486 = vpack.c.b16 %v461, %v461
  %v487 = vpack.c.b16 %v462, %v462
  %v488 = vpack.c.b16 %v463, %v463
  %v489 = vpack.c.b16 %v464, %v464
  %v490 = vpack.c.b16 %v465, %v465
  %v491 = vpack.c.b16 %v466, %v466
  %v492 = vpack.c.b16 %v467, %v467
  %v493 = vpack.c.b16 %v468, %v468
  %v494 = vpack.c.b16 %v469, %v469
  %v495 = vpack.c.b16 %v470, %v470
  %v496 = vpack.c.b16 %v471, %v471
  %v497 = vpack.c.b16 %v472, %v472
  %v498 = vpack.c.b16 %v473, %v473
  %v499 = vpack.c.b16 %v474, %v474
  %v500 = vpack.c.b16 %v475, %v475
  %v501 = vpack.c.b16 %v476, %v476
  %v918 = vunpack.c.l.b16 %v40
  %v919 = vunpack.c.l.b16 %v41
  %v920 = vunpack.c.l.b16 %v42
  %v921 = vunpack.c.l.b16 %v43
  %v922 = vunpack.c.l.b16 %v44
  %v923 = vunpack.c.l.b16 %v45
  %v924 = vunpack.c.l.b16 %v46
  %v925 = vunpack.c.l.b16 %v47
  %v926 = vunpack.c.l.b16 %v48
  %v927 = vunpack.c.l.b16 %v49
  %v928 = vunpack.c.l.b16 %v50
  %v929 = vunpack.c.l.b16 %v51
  %v930 = vunpack.c.l.b16 %v52
  %v931 = vunpack.c.l.b16 %v53
  %v932 = vunpack.c.l.b16 %v54
  %v933 = vunpack.c.l.b16 %v55
  %v934 = vunpack.c.l.b16 %v56
  %v935 = vunpack.c.l.b16 %v57
  %v936 = vunpack.c.l.b16 %v58
  %v937 = vunpack.c.l.b16 %v59
  %v938 = vunpack.c.l.b16 %v60
  %v939 = vunpack.c.l.b16 %v61
  %v940 = vunpack.c.l.b16 %v62
  %v941 = vunpack.c.l.b16 %v63
  %v942 = vunpack.c.l.b16 %v64
  %v943 = vunpack.c.l.b16 %v65
  %v944 = vunpack.c.l.b16 %v66
  %v945 = vunpack.c.l.b16 %v67
  %v946 = vunpack.c.l.b16 %v68
  %v947 = vunpack.c.l.b16 %v69
  %v948 = vunpack.c.l.b16 %v70
  %v949 = vunpack.c.l.b16 %v71
  %v950 = vunpack.c.l.b16 %v72
  %v951 = vunpack.c.l.b16 %v73
  %v952 = vunpack.c.l.b16 %v74
  %v953 = vunpack.c.l.b16 %v75
  %v954 = vunpack.c.l.b16 %v76
  %v955 = vunpack.c.l.b16 %v77
  %v956 = vunpack.c.l.b16 %v78
  %v957 = vunpack.c.l.b16 %v79
  %v958 = vunpack.c.l.b16 %v80
  %v959 = vunpack.c.l.b16 %v81
  %v960 = vunpack.c.l.b16 %v82
  %v961 = vunpack.c.l.b16 %v83
  %v962 = vunpack.c.l.b16 %v84
  %v963 = vunpack.c.l.b16 %v85
  %v964 = vunpack.c.l.b16 %v86
  %v965 = vunpack.c.l.b16 %v87
  %v966 = vunpack.c.l.b16 %v88
  %v967 = vunpack.c.l.b16 %v89
  %v968 = vunpack.c.l.b16 %v90
  %v969 = vunpack.c.l.b16 %v91
  %v970 = vunpack.c.l.b16 %v92
  %v971 = vunpack.c.l.b16 %v93
  %v972 = vunpack.c.l.b16 %v94
  %v973 = vunpack.c.l.b16 %v95
  %v974 = vunpack.c.l.b16 %v96
  %v975 = vunpack.c.l.b16 %v97
  %v976 = vunpack.c.l.b16 %v98
  %v977 = vunpack.c.l.b16 %v99
  %v978 = vunpack.c.l.b16 %v100
  %v979 = vunpack.c.l.b16 %v101
  %v980 = vunpack.c.l.b16 %v102
  %v981 = vunpack.c.l.b16 %v103
  %v982 = vunpack.c.l.b16 %v104
  %v983 = vunpack.c.l.b16 %v105
  %v984 = vunpack.c.l.b16 %v106
  %v985 = vunpack.c.l.b16 %v107
  %v986 = vunpack.c.l.b16 %v108
  %v987 = vunpack.c.l.b16 %v109
  %v988 = vunpack.c.l.b16 %v110
  %v989 = vunpack.c.l.b16 %v111
  %v990 = vunpack.c.l.b16 %v112
  %v991 = vunpack.c.l.b16 %v113
  %v992 = vunpack.c.l.b16 %v114
  %v993 = vunpack.c.l.b16 %v115
  %v994 = vunpack.c.l.b16 %v116
  %v995 = vunpack.c.l.b16 %v117
  %v996 = vunpack.c.l.b16 %v118
  %v997 = vunpack.c.l.b16 %v119
  %v998 = vunpack.c.l.b16 %v120
  %v999 = vunpack.c.l.b16 %v121
  %v1000 = vunpack.c.l.b16 %v122
  %v1001 = vunpack.c.l.b16 %v123
  %v1002 = vunpack.c.l.b16 %v124
  %v1003 = vunpack.c.l.b16 %v125
  %v1004 = vunpack.c.l.b16 %v126
  %v1005 = vunpack.c.l.b16 %v127
  %v1006 = vunpack.c.l.b16 %v128
  %v1007 = vunpack.c.l.b16 %v129
  %v1008 = vunpack.c.l.b16 %v130
  %v1009 = vunpack.c.l.b16 %v131
  %v1010 = vunpack.c.l.b16 %v132
  %v1011 = vunpack.c.l.b16 %v133
  %v1012 = vunpack.c.l.b16 %v134
  %v1013 = vunpack.c.l.b16 %v135
  %v1014 = vunpack.c.l.b16 %v136
  %v1015 = vunpack.c.l.b16 %v137
  %v1016 = vunpack.c.l.b16 %v138
  %v1017 = vunpack.c.l.b16 %v139
  %v1018 = vunpack.c.l.b16 %v140
  %v1019 = vunpack.c.l.b16 %v141
  %v1020 = vunpack.c.l.b16 %v142
  %v1021 = vunpack.c.l.b16 %v143
  %v1022 = vunpack.c.l.b16 %v144
  %v1023 = vunpack.c.l.b16 %v145
  %v1024 = vunpack.c.l.b16 %v146
  %v1025 = vunpack.c.l.b16 %v147
  %v1026 = vunpack.c.l.b16 %v148
  %v1027 = vunpack.c.l.b16 %v149
  %v1028 = vunpack.c.l.b16 %v150
  %v1029 = vunpack.c.l.b16 %v151
  %v1030 = vunpack.c.l.b16 %v152
  %v1031 = vunpack.c.l.b16 %v153
  %v1032 = vunpack.c.l.b16 %v154
  %v1033 = vunpack.c.l.b16 %v155
  %v1034 = vunpack.c.l.b16 %v156
  %v1035 = vunpack.c.l.b16 %v157
  %v1036 = vunpack.c.l.b16 %v158
  %v1037 = vunpack.c.l.b16 %v159
  %v1038 = vunpack.c.l.b16 %v160
  %v1039 = vunpack.c.l.b16 %v161
  %v1040 = vunpack.c.l.b16 %v162
  %v1041 = vunpack.c.l.b16 %v163
  %v1042 = vunpack.c.l.b16 %v164
  %v1043 = vunpack.c.l.b16 %v165
  %v1044 = vunpack.c.l.b16 %v166
  %v1045 = vunpack.c.l.b16 %v167
  %v1046 = vunpack.c.l.b16 %v168
  %v1047 = vunpack.c.l.b16 %v169
  %v1048 = vunpack.c.l.b16 %v170
  %v1049 = vunpack.c.l.b16 %v171
  %v1050 = vunpack.c.l.b16 %v172
  %v1051 = vunpack.c.l.b16 %v173
  %v1052 = vunpack.c.l.b16 %v174
  %v1053 = vunpack.c.l.b16 %v175
  %v1054 = vunpack.c.l.b16 %v176
  %v1055 = vunpack.c.l.b16 %v177
  %v1056 = vunpack.c.l.b16 %v178
  %v1057 = vunpack.c.l.b16 %v179
  %v1058 = vunpack.c.l.b16 %v180
  %v1059 = vunpack.c.l.b16 %v181
  %v1060 = vunpack.c.l.b16 %v182
  %v1061 = vunpack.c.l.b16 %v183
  %v1062 = vunpack.c.l.b16 %v184
  %v1063 = vunpack.c.l.b16 %v185
  %v1064 = vunpack.c.l.b16 %v186
  %v1065 = vunpack.c.l.b16 %v187
  %v1066 = vunpack.c.l.b16 %v188
  %v1067 = vunpack.c.l.b16 %v189
  %v1068 = vunpack.c.l.b16 %v190
  %v1069 = vunpack.c.l.b16 %v191
  %v1070 = vunpack.c.l.b16 %v192
  %v1071 = vunpack.c.l.b16 %v193
  %v1072 = vunpack.c.l.b16 %v194
  %v1073 = vunpack.c.l.b16 %v195
  %v1074 = vunpack.c.l.b16 %v196
  %v1075 = vunpack.c.l.b16 %v197
  %v1076 = vunpack.c.l.b16 %v198
  %v1077 = vunpack.c.l.b16 %v199
  %v1078 = vunpack.c.l.b16 %v200
  %v1079 = vunpack.c.l.b16 %v201
  %v1080 = vunpack.c.l.b16 %v202
  %v1081 = vunpack.c.l.b16 %v203
  %v1082 = vunpack.c.l.b16 %v204
  %v1083 = vunpack.c.l.b16 %v205
  %v1084 = vunpack.c.l.b16 %v206
  %v1085 = vunpack.c.l.b16 %v207
  %v1086 = vunpack.c.l.b16 %v208
  %v1087 = vunpack.c.l.b16 %v209
  %v1088 = vunpack.c.l.b16 %v210
  %v1089 = vunpack.c.l.b16 %v211
  %v1090 = vunpack.c.l.b16 %v212
  %v1091 = vunpack.c.l.b16 %v213
  %v1092 = vunpack.c.l.b16 %v214
  %v1093 = vunpack.c.l.b16 %v215
  %v1094 = vunpack.c.l.b16 %v216
  %v1095 = vunpack.c.l.b16 %v217
  %v1096 = vunpack.c.l.b16 %v218
  %v1097 = vunpack.c.l.b16 %v219
  %v1098 = vunpack.c.l.b16 %v220
  %v1099 = vunpack.c.l.b16 %v221
  %v1100 = vunpack.c.l.b16 %v222
  %v1101 = vunpack.c.l.b16 %v223
  %v1102 = vunpack.c.l.b16 %v224
  %v1103 = vunpack.c.l.b16 %v225
  %v1104 = vunpack.c.l.b16 %v226
  %v1105 = vunpack.c.l.b16 %v227
  %v1106 = vunpack.c.l.b16 %v228
  %v1107 = vunpack.c.l.b16 %v229
  %v1108 = vunpack.c.l.b16 %v230
  %v1109 = vunpack.c.l.b16 %v231
  %v1110 = vunpack.c.l.b16 %v232
  %v1111 = vunpack.c.l.b16 %v233
  %v1112 = vunpack.c.l.b16 %v234
  %v1113 = vunpack.c.l.b16 %v235
  %v1114 = vunpack.c.l.b16 %v236
  %v1115 = vunpack.c.l.b16 %v237
  %v1116 = vunpack.c.l.b16 %v238
  %v1117 = vunpack.c.l.b16 %v239
  %v1118 = vunpack.c.l.b16 %v240
  %v1119 = vunpack.c.l.b16 %v241
  %v1120 = vunpack.c.l.b16 %v242
  %v1121 = vunpack.c.l.b16 %v243
  %v1122 = vunpack.c.l.b16 %v244
  %v1123 = vunpack.c.l.b16 %v245
  %v1124 = vunpack.c.l.b16 %v246
  %v1125 = vunpack.c.l.b16 %v247
  %v1126 = vunpack.c.l.b16 %v248
  %v1127 = vunpack.c.l.b16 %v249
  %v1128 = vunpack.c.l.b16 %v250
  %v1129 = vunpack.c.l.b16 %v251
  %v1130 = vunpack.c.l.b16 %v252
  %v1131 = vunpack.c.l.b16 %v253
  %v1132 = vunpack.c.l.b16 %v254
  %v1133 = vunpack.c.l.b16 %v255
  %v1134 = vunpack.c.l.b16 %v256
  %v1135 = vunpack.c.l.b16 %v257
  %v1136 = vunpack.c.l.b16 %v258
  %v1137 = vunpack.c.l.b16 %v259
  %v1138 = vunpack.c.l.b16 %v260
  %v1139 = vunpack.c.l.b16 %v261
  %v1140 = vunpack.c.l.b16 %v262
  %v1141 = vunpack.c.l.b16 %v263
  %v1142 = vunpack.c.l.b16 %v264
  %v1143 = vunpack.c.l.b16 %v265
  %v1144 = vunpack.c.l.b16 %v266
  %v1145 = vunpack.c.l.b16 %v267
  %v1146 = vunpack.c.l.b16 %v268
  %v1147 = vunpack.c.l.b16 %v269
  %v1148 = vunpack.c.l.b16 %v270
  %v1149 = vunpack.c.l.b16 %v271
  %v1150 = vunpack.c.l.b16 %v272
  %v1151 = vunpack.c.l.b16 %v273
  %v1152 = vunpack.c.l.b16 %v274
  %v1153 = vunpack.c.l.b16 %v275
  %v1154 = vunpack.c.l.b16 %v276
  %v1155 = vunpack.c.l.b16 %v277
  %v1156 = vunpack.c.l.b16 %v278
  %v1157 = vunpack.c.l.b16 %v279
  %v1158 = vunpack.c.l.b16 %v280
  %v1159 = vunpack.c.l.b16 %v281
  %v1160 = vunpack.c.l.b16 %v282
  %v1161 = vunpack.c.l.b16 %v283
  %v1162 = vunpack.c.l.b16 %v284
  %v1163 = vunpack.c.l.b16 %v285
  %v1164 = vunpack.c.l.b16 %v286
  %v1165 = vunpack.c.l.b16 %v287
  %v1166 = vunpack.c.l.b16 %v288
  %v1167 = vunpack.c.l.b16 %v289
  %v1168 = vunpack.c.l.b16 %v290
  %v1169 = vunpack.c.l.b16 %v291
  %v1170 = vunpack.c.l.b16 %v292
  %v1171 = vunpack.c.l.b16 %v293
  %v1172 = vunpack.c.l.b16 %v294
  %v1173 = vunpack.c.l.b16 %v295
  %v1174 = vunpack.c.l.b16 %v296
  %v1175 = vunpack.c.l.b16 %v297
  %v1176 = vunpack.c.l.b16 %v298
  %v1177 = vunpack.c.l.b16 %v299
  %v1178 = vunpack.c.l.b16 %v300
  %v1179 = vunpack.c.l.b16 %v301
  %v1180 = vunpack.c.l.b16 %v302
  %v1181 = vunpack.c.l.b16 %v303
  %v1182 = vunpack.c.l.b16 %v304
  %v1183 = vunpack.c.l.b16 %v305
  %v1184 = vunpack.c.l.b16 %v306
  %v1185 = vunpack.c.l.b16 %v307
  %v1186 = vunpack.c.l.b16 %v308
  %v1187 = vunpack.c.l.b16 %v309
  %v1188 = vunpack.c.l.b16 %v310
  %v1189 = vunpack.c.l.b16 %v311
  %v1190 = vunpack.c.l.b16 %v312
  %v1191 = vunpack.c.l.b16 %v313
  %v1192 = vunpack.c.l.b16 %v314
  %v1193 = vunpack.c.l.b16 %v315
  %v1194 = vunpack.c.l.b16 %v316
  %v1195 = vunpack.c.l.b16 %v317
  %v1196 = vunpack.c.l.b16 %v318
  %v1197 = vunpack.c.l.b16 %v319
  %v1198 = vunpack.c.l.b16 %v320
  %v1199 = vunpack.c.l.b16 %v321
  %v1200 = vunpack.c.l.b16 %v322
  %v1201 = vunpack.c.l.b16 %v323
  %v1202 = vunpack.c.l.b16 %v324
  %v1203 = vunpack.c.l.b16 %v325
  %v1204 = vunpack.c.l.b16 %v326
  %v1205 = vunpack.c.l.b16 %v327
  %v1206 = vunpack.c.l.b16 %v328
  %v1207 = vunpack.c.l.b16 %v329
  %v1208 = vunpack.c.l.b16 %v330
  %v1209 = vunpack.c.l.b16 %v331
  %v1210 = vunpack.c.l.b16 %v332
  %v1211 = vunpack.c.l.b16 %v333
  %v1212 = vunpack.c.l.b16 %v334
  %v1213 = vunpack.c.l.b16 %v335
  %v1214 = vunpack.c.l.b16 %v336
  %v1215 = vunpack.c.l.b16 %v337
  %v1216 = vunpack.c.l.b16 %v338
  %v1217 = vunpack.c.l.b16 %v339
  %v1218 = vunpack.c.l.b16 %v340
  %v1219 = vunpack.c.l.b16 %v341
  %v1220 = vunpack.c.l.b16 %v342
  %v1221 = vunpack.c.l.b16 %v343
  %v1222 = vunpack.c.l.b16 %v344
  %v1223 = vunpack.c.l.b16 %v345
  %v1224 = vunpack.c.l.b16 %v346
  %v1225 = vunpack.c.l.b16 %v347
  %v1226 = vunpack.c.l.b16 %v348
  %v1227 = vunpack.c.l.b16 %v349
  %v1228 = vunpack.c.l.b16 %v350
  %v1229 = vunpack.c.l.b16 %v351
  %v1230 = vunpack.c.l.b16 %v352
  %v1231 = vunpack.c.l.b16 %v353
  %v1232 = vunpack.c.l.b16 %v354
  %v1233 = vunpack.c.l.b16 %v355
  %v1234 = vunpack.c.l.b16 %v356
  %v1235 = vunpack.c.l.b16 %v357
  %v1236 = vunpack.c.l.b16 %v358
  %v1237 = vunpack.c.l.b16 %v359
  %v1238 = vunpack.c.l.b16 %v360
  %v1239 = vunpack.c.l.b16 %v361
  %v1240 = vunpack.c.l.b16 %v362
  %v1241 = vunpack.c.l.b16 %v363
  %v1242 = vunpack.c.l.b16 %v364
  %v1243 = vunpack.c.l.b16 %v365
  %v1244 = vunpack.c.l.b16 %v366
  %v1245 = vunpack.c.l.b16 %v367
  %v1246 = vunpack.c.l.b16 %v368
  %v1247 = vunpack.c.l.b16 %v369
  %v1248 = vunpack.c.l.b16 %v370
  %v1249 = vunpack.c.l.b16 %v371
  %v1250 = vunpack.c.l.b16 %v372
  %v1251 = vunpack.c.l.b16 %v373
  %v1252 = vunpack.c.l.b16 %v374
  %v1253 = vunpack.c.l.b16 %v375
  %v1254 = vunpack.c.l.b16 %v376
  %v1255 = vunpack.c.l.b16 %v377
  %v1256 = vunpack.c.l.b16 %v378
  %v1257 = vunpack.c.l.b16 %v379
  %v1258 = vunpack.c.l.b16 %v380
  %v1259 = vunpack.c.l.b16 %v381
  %v1260 = vunpack.c.l.b16 %v382
  %v1261 = vunpack.c.l.b16 %v383
  %v1262 = vunpack.c.l.b16 %v384
  %v1263 = vunpack.c.l.b16 %v385
  %v1264 = vunpack.c.l.b16 %v386
  %v1265 = vunpack.c.l.b16 %v387
  %v1266 = vunpack.c.l.b16 %v388
  %v1267 = vunpack.c.l.b16 %v389
  %v1268 = vunpack.c.l.b16 %v390
  %v1269 = vunpack.c.l.b16 %v391
  %v1270 = vunpack.c.l.b16 %v392
  %v1271 = vunpack.c.l.b16 %v393
  %v1272 = vunpack.c.l.b16 %v394
  %v1273 = vunpack.c.l.b16 %v395
  %v1274 = vunpack.c.l.b16 %v396
  %v1275 = vunpack.c.l.b16 %v397
  %v1276 = vunpack.c.l.b16 %v398
  %v1277 = vunpack.c.l.b16 %v399
  %v1278 = vunpack.c.l.b16 %v400
  %v1279 = vunpack.c.l.b16 %v401
  %v1280 = vunpack.c.l.b16 %v402
  %v1281 = vunpack.c.l.b16 %v403
  %v1282 = vunpack.c.l.b16 %v404
  %v1283 = vunpack.c.l.b16 %v405
  %v1284 = vunpack.c.l.b16 %v406
  %v1285 = vunpack.c.l.b16 %v407
  %v1286 = vunpack.c.l.b16 %v408
  %v1287 = vunpack.c.l.b16 %v409
  %v1288 = vunpack.c.l.b16 %v410
  %v1289 = vunpack.c.l.b16 %v411
  %v1290 = vunpack.c.l.b16 %v412
  %v1291 = vunpack.c.l.b16 %v413
  %v1292 = vunpack.c.l.b16 %v414
  %v1293 = vunpack.c.l.b16 %v415
  %v1294 = vunpack.c.l.b16 %v416
  %v1295 = vunpack.c.l.b16 %v417
  %v1296 = vunpack.c.l.b16 %v418
  %v1297 = vunpack.c.l.b16 %v419
  %v1298 = vunpack.c.l.b16 %v420
  %v1299 = vunpack.c.l.b16 %v421
  %v1300 = vunpack.c.l.b16 %v422
  %v1301 = vunpack.c.l.b16 %v423
  %v1302 = vunpack.c.l.b16 %v424
  %v1303 = vunpack.c.l.b16 %v425
  %v1304 = vunpack.c.l.b16 %v426
  %v1305 = vunpack.c.l.b16 %v427
  %v1306 = vunpack.c.l.b16 %v428
  %v1307 = vunpack.c.l.b16 %v429
  %v1308 = vunpack.c.l.b16 %v430
  %v1309 = vunpack.c.l.b16 %v431
  %v1310 = vpack.c.b16 %v919, %v918
  %v1311 = vpack.c.b16 %v921, %v920
  %v1312 = vpack.c.b16 %v923, %v922
  %v1313 = vpack.c.b16 %v925, %v924
  %v1314 = vpack.c.b16 %v927, %v926
  %v1315 = vpack.c.b16 %v929, %v928
  %v1316 = vpack.c.b16 %v931, %v930
  %v1317 = vpack.c.b16 %v933, %v932
  %v1318 = vpack.c.b16 %v935, %v934
  %v1319 = vpack.c.b16 %v937, %v936
  %v1320 = vpack.c.b16 %v939, %v938
  %v1321 = vpack.c.b16 %v941, %v940
  %v1322 = vpack.c.b16 %v943, %v942
  %v1323 = vpack.c.b16 %v945, %v944
  %v1324 = vpack.c.b16 %v947, %v946
  %v1325 = vpack.c.b16 %v949, %v948
  %v1326 = vpack.c.b16 %v951, %v950
  %v1327 = vpack.c.b16 %v953, %v952
  %v1328 = vpack.c.b16 %v955, %v954
  %v1329 = vpack.c.b16 %v957, %v956
  %v1330 = vpack.c.b16 %v959, %v958
  %v1331 = vpack.c.b16 %v961, %v960
  %v1332 = vpack.c.b16 %v963, %v962
  %v1333 = vpack.c.b16 %v965, %v964
  %v1334 = vpack.c.b16 %v967, %v966
  %v1335 = vpack.c.b16 %v969, %v968
  %v1336 = vpack.c.b16 %v971, %v970
  %v1337 = vpack.c.b16 %v973, %v972
  %v1338 = vpack.c.b16 %v975, %v974
  %v1339 = vpack.c.b16 %v977, %v976
  %v1340 = vpack.c.b16 %v979, %v978
  %v1341 = vpack.c.b16 %v981, %v980
  %v1342 = vpack.c.b16 %v983, %v982
  %v1343 = vpack.c.b16 %v985, %v984
  %v1344 = vpack.c.b16 %v987, %v986
  %v1345 = vpack.c.b16 %v989, %v988
  %v1346 = vpack.c.b16 %v991, %v990
  %v1347 = vpack.c.b16 %v993, %v992
  %v1348 = vpack.c.b16 %v995, %v994
  %v1349 = vpack.c.b16 %v997, %v996
  %v1350 = vpack.c.b16 %v999, %v998
  %v1351 = vpack.c.b16 %v1001, %v1000
  %v1352 = vpack.c.b16 %v1003, %v1002
  %v1353 = vpack.c.b16 %v1005, %v1004
  %v1354 = vpack.c.b16 %v1007, %v1006
  %v1355 = vpack.c.b16 %v1009, %v1008
  %v1356 = vpack.c.b16 %v1011, %v1010
  %v1357 = vpack.c.b16 %v1013, %v1012
  %v1358 = vpack.c.b16 %v1015, %v1014
  %v1359 = vpack.c.b16 %v1017, %v1016
  %v1360 = vpack.c.b16 %v1019, %v1018
  %v1361 = vpack.c.b16 %v1021, %v1020
  %v1362 = vpack.c.b16 %v1023, %v1022
  %v1363 = vpack.c.b16 %v1025, %v1024
  %v1364 = vpack.c.b16 %v1027, %v1026
  %v1365 = vpack.c.b16 %v1029, %v1028
  %v1366 = vpack.c.b16 %v1031, %v1030
  %v1367 = vpack.c.b16 %v1033, %v1032
  %v1368 = vpack.c.b16 %v1035, %v1034
  %v1369 = vpack.c.b16 %v1037, %v1036
  %v1370 = vpack.c.b16 %v1039, %v1038
  %v1371 = vpack.c.b16 %v1041, %v1040
  %v1372 = vpack.c.b16 %v1043, %v1042
  %v1373 = vpack.c.b16 %v1045, %v1044
  %v1374 = vpack.c.b16 %v1047, %v1046
  %v1375 = vpack.c.b16 %v1049, %v1048
  %v1376 = vpack.c.b16 %v1051, %v1050
  %v1377 = vpack.c.b16 %v1053, %v1052
  %v1378 = vpack.c.b16 %v1055, %v1054
  %v1379 = vpack.c.b16 %v1057, %v1056
  %v1380 = vpack.c.b16 %v1059, %v1058
  %v1381 = vpack.c.b16 %v1061, %v1060
  %v1382 = vpack.c.b16 %v1063, %v1062
  %v1383 = vpack.c.b16 %v1065, %v1064
  %v1384 = vpack.c.b16 %v1067, %v1066
  %v1385 = vpack.c.b16 %v1069, %v1068
  %v1386 = vpack.c.b16 %v1071, %v1070
  %v1387 = vpack.c.b16 %v1073, %v1072
  %v1388 = vpack.c.b16 %v1075, %v1074
  %v1389 = vpack.c.b16 %v1077, %v1076
  %v1390 = vpack.c.b16 %v1079, %v1078
  %v1391 = vpack.c.b16 %v1081, %v1080
  %v1392 = vpack.c.b16 %v1083, %v1082
  %v1393 = vpack.c.b16 %v1085, %v1084
  %v1394 = vpack.c.b16 %v1087, %v1086
  %v1395 = vpack.c.b16 %v1089, %v1088
  %v1396 = vpack.c.b16 %v1091, %v1090
  %v1397 = vpack.c.b16 %v1093, %v1092
  %v1398 = vpack.c.b16 %v1095, %v1094
  %v1399 = vpack.c.b16 %v1097, %v1096
  %v1400 = vpack.c.b16 %v1099, %v1098
  %v1401 = vpack.c.b16 %v1101, %v1100
  %v1402 = vpack.c.b16 %v1103, %v1102
  %v1403 = vpack.c.b16 %v1105, %v1104
  %v1404 = vpack.c.b16 %v1107, %v1106
  %v1405 = vpack.c.b16 %v1109, %v1108
  %v1406 = vpack.c.b16 %v1111, %v1110
  %v1407 = vpack.c.b16 %v1113, %v1112
  %v1408 = vpack.c.b16 %v1115, %v1114
  %v1409 = vpack.c.b16 %v1117, %v1116
  %v1410 = vpack.c.b16 %v1119, %v1118
  %v1411 = vpack.c.b16 %v1121, %v1120
  %v1412 = vpack.c.b16 %v1123, %v1122
  %v1413 = vpack.c.b16 %v1125, %v1124
  %v1414 = vpack.c.b16 %v1127, %v1126
  %v1415 = vpack.c.b16 %v1129, %v1128
  %v1416 = vpack.c.b16 %v1131, %v1130
  %v1417 = vpack.c.b16 %v1133, %v1132
  %v1418 = vpack.c.b16 %v1135, %v1134
  %v1419 = vpack.c.b16 %v1137, %v1136
  %v1420 = vpack.c.b16 %v1139, %v1138
  %v1421 = vpack.c.b16 %v1141, %v1140
  %v1422 = vpack.c.b16 %v1143, %v1142
  %v1423 = vpack.c.b16 %v1145, %v1144
  %v1424 = vpack.c.b16 %v1147, %v1146
  %v1425 = vpack.c.b16 %v1149, %v1148
  %v1426 = vpack.c.b16 %v1151, %v1150
  %v1427 = vpack.c.b16 %v1153, %v1152
  %v1428 = vpack.c.b16 %v1155, %v1154
  %v1429 = vpack.c.b16 %v1157, %v1156
  %v1430 = vpack.c.b16 %v1159, %v1158
  %v1431 = vpack.c.b16 %v1161, %v1160
  %v1432 = vpack.c.b16 %v1163, %v1162
  %v1433 = vpack.c.b16 %v1165, %v1164
  %v1434 = vpack.c.b16 %v1167, %v1166
  %v1435 = vpack.c.b16 %v1169, %v1168
  %v1436 = vpack.c.b16 %v1171, %v1170
  %v1437 = vpack.c.b16 %v1173, %v1172
  %v1438 = vpack.c.b16 %v1175, %v1174
  %v1439 = vpack.c.b16 %v1177, %v1176
  %v1440 = vpack.c.b16 %v1179, %v1178
  %v1441 = vpack.c.b16 %v1181, %v1180
  %v1442 = vpack.c.b16 %v1183, %v1182
  %v1443 = vpack.c.b16 %v1185, %v1184
  %v1444 = vpack.c.b16 %v1187, %v1186
  %v1445 = vpack.c.b16 %v1189, %v1188
  %v1446 = vpack.c.b16 %v1191, %v1190
  %v1447 = vpack.c.b16 %v1193, %v1192
  %v1448 = vpack.c.b16 %v1195, %v1194
  %v1449 = vpack.c.b16 %v1197, %v1196
  %v1450 = vpack.c.b16 %v1199, %v1198
  %v1451 = vpack.c.b16 %v1201, %v1200
  %v1452 = vpack.c.b16 %v1203, %v1202
  %v1453 = vpack.c.b16 %v1205, %v1204
  %v1454 = vpack.c.b16 %v1207, %v1206
  %v1455 = vpack.c.b16 %v1209, %v1208
  %v1456 = vpack.c.b16 %v1211, %v1210
  %v1457 = vpack.c.b16 %v1213, %v1212
  %v1458 = vpack.c.b16 %v1215, %v1214
  %v1459 = vpack.c.b16 %v1217, %v1216
  %v1460 = vpack.c.b16 %v1219, %v1218
  %v1461 = vpack.c.b16 %v1221, %v1220
  %v1462 = vpack.c.b16 %v1223, %v1222
  %v1463 = vpack.c.b16 %v1225, %v1224
  %v1464 = vpack.c.b16 %v1227, %v1226
  %v1465 = vpack.c.b16 %v1229, %v1228
  %v1466 = vpack.c.b16 %v1231, %v1230
  %v1467 = vpack.c.b16 %v1233, %v1232
  %v1468 = vpack.c.b16 %v1235, %v1234
  %v1469 = vpack.c.b16 %v1237, %v1236
  %v1470 = vpack.c.b16 %v1239, %v1238
  %v1471 = vpack.c.b16 %v1241, %v1240
  %v1472 = vpack.c.b16 %v1243, %v1242
  %v1473 = vpack.c.b16 %v1245, %v1244
  %v1474 = vpack.c.b16 %v1247, %v1246
  %v1475 = vpack.c.b16 %v1249, %v1248
  %v1476 = vpack.c.b16 %v1251, %v1250
  %v1477 = vpack.c.b16 %v1253, %v1252
  %v1478 = vpack.c.b16 %v1255, %v1254
  %v1479 = vpack.c.b16 %v1257, %v1256
  %v1480 = vpack.c.b16 %v1259, %v1258
  %v1481 = vpack.c.b16 %v1261, %v1260
  %v1482 = vpack.c.b16 %v1263, %v1262
  %v1483 = vpack.c.b16 %v1265, %v1264
  %v1484 = vpack.c.b16 %v1267, %v1266
  %v1485 = vpack.c.b16 %v1269, %v1268
  %v1486 = vpack.c.b16 %v1271, %v1270
  %v1487 = vpack.c.b16 %v1273, %v1272
  %v1488 = vpack.c.b16 %v1275, %v1274
  %v1489 = vpack.c.b16 %v1277, %v1276
  %v1490 = vpack.c.b16 %v1279, %v1278
  %v1491 = vpack.c.b16 %v1281, %v1280
  %v1492 = vpack.c.b16 %v1283, %v1282
  %v1493 = vpack.c.b16 %v1285, %v1284
  %v1494 = vpack.c.b16 %v1287, %v1286
  %v1495 = vpack.c.b16 %v1289, %v1288
  %v1496 = vpack.c.b16 %v1291, %v1290
  %v1497 = vpack.c.b16 %v1293, %v1292
  %v1498 = vpack.c.b16 %v1295, %v1294
  %v1499 = vpack.c.b16 %v1297, %v1296
  %v1500 = vpack.c.b16 %v1299, %v1298
  %v1501 = vpack.c.b16 %v1301, %v1300
  %v1502 = vpack.c.b16 %v1303, %v1302
  %v1503 = vpack.c.b16 %v1305, %v1304
  %v1504 = vpack.c.b16 %v1307, %v1306
  %v1505 = vpack.c.b16 %v1309, %v1308
  %vm1702 = vcmask 523264
  %v1704 = vsel %vm1702, %v501, 0
  %1706 = vmatprep.subr.bf16.mxu0 0
  %1707 = vmatpush1.bf16.msra.mxu0 %v1317
  %1708 = vmatprep.subr.bf16.mxu0 0
  %1709 = vmatpush1.bf16.msra.mxu0 %v1316
  %1710 = vmatprep.subr.bf16.mxu0 0
  %1711 = vmatpush1.bf16.msra.mxu0 %v1315
  %1712 = vmatprep.subr.bf16.mxu0 0
  %1713 = vmatpush1.bf16.msra.mxu0 %v1314
  %1714 = vmatprep.subr.bf16.mxu0 0
  %1715 = vmatpush1.bf16.msra.mxu0 %v1313
  %1716 = vmatprep.subr.bf16.mxu0 0
  %1717 = vmatpush1.bf16.msra.mxu0 %v1312
  %1718 = vmatprep.subr.bf16.mxu0 0
  %1719 = vmatpush1.bf16.msra.mxu0 %v1311
  %1720 = vmatprep.subr.bf16.mxu0 0
  %1721 = vmatpush1.bf16.msra.mxu0 %v1310
  %1722 = vmatprep.subr.bf16.mxu0 0
  %1723 = vmatpush2.bf16.msra.mxu0 %v1325
  %1724 = vmatprep.subr.bf16.mxu0 0
  %1725 = vmatpush2.bf16.msra.mxu0 %v1324
  %1726 = vmatprep.subr.bf16.mxu0 0
  %1727 = vmatpush2.bf16.msra.mxu0 %v1323
  %1728 = vmatprep.subr.bf16.mxu0 0
  %1729 = vmatpush2.bf16.msra.mxu0 %v1322
  %1730 = vmatprep.subr.bf16.mxu0 0
  %1731 = vmatpush2.bf16.msra.mxu0 %v1321
  %1732 = vmatprep.subr.bf16.mxu0 0
  %1733 = vmatpush2.bf16.msra.mxu0 %v1320
  %1734 = vmatprep.subr.bf16.mxu0 0
  %1735 = vmatpush2.bf16.msra.mxu0 %v1319
  %1736 = vmatprep.subr.bf16.mxu0 0
  %1737 = vmatpush2.bf16.msra.mxu0 %v1318
  %1738 = vmatprep.mubr.bf16.mxu0 %v478
  %1739 = vmatmul.mubr.bf16.gmra.mxu0 %v477
  %v1740 = vpop.f32.mrf.mxu0
  %v1741 = vadd.f32 %v437, %v1740
  %v1742 = vpop.f32.mrf.mxu0
  %v1743 = vpop.f32.mrf.mxu0
  %v1744 = vpop.f32.mrf.mxu0
  %1745 = vdwg.mxu0
  %1746 = vmatprep.subr.bf16.mxu0 0
  %1747 = vmatpush1.bf16.msra.mxu0 %v1333
  %1748 = vmatprep.subr.bf16.mxu0 0
  %1749 = vmatpush1.bf16.msra.mxu0 %v1332
  %1750 = vmatprep.subr.bf16.mxu0 0
  %1751 = vmatpush1.bf16.msra.mxu0 %v1331
  %1752 = vmatprep.subr.bf16.mxu0 0
  %1753 = vmatpush1.bf16.msra.mxu0 %v1330
  %1754 = vmatprep.subr.bf16.mxu0 0
  %1755 = vmatpush1.bf16.msra.mxu0 %v1329
  %1756 = vmatprep.subr.bf16.mxu0 0
  %1757 = vmatpush1.bf16.msra.mxu0 %v1328
  %1758 = vmatprep.subr.bf16.mxu0 0
  %1759 = vmatpush1.bf16.msra.mxu0 %v1327
  %1760 = vmatprep.subr.bf16.mxu0 0
  %1761 = vmatpush1.bf16.msra.mxu0 %v1326
  %1762 = vmatprep.subr.bf16.mxu0 0
  %1763 = vmatpush2.bf16.msra.mxu0 %v1341
  %1764 = vmatprep.subr.bf16.mxu0 0
  %1765 = vmatpush2.bf16.msra.mxu0 %v1340
  %1766 = vmatprep.subr.bf16.mxu0 0
  %1767 = vmatpush2.bf16.msra.mxu0 %v1339
  %1768 = vmatprep.subr.bf16.mxu0 0
  %1769 = vmatpush2.bf16.msra.mxu0 %v1338
  %1770 = vmatprep.subr.bf16.mxu0 0
  %1771 = vmatpush2.bf16.msra.mxu0 %v1337
  %1772 = vmatprep.subr.bf16.mxu0 0
  %1773 = vmatpush2.bf16.msra.mxu0 %v1336
  %1774 = vmatprep.subr.bf16.mxu0 0
  %1775 = vmatpush2.bf16.msra.mxu0 %v1335
  %1776 = vmatprep.subr.bf16.mxu0 0
  %1777 = vmatpush2.bf16.msra.mxu0 %v1334
  %1778 = vmatprep.mubr.bf16.mxu0 %v480
  %1779 = vmatmul.mubr.bf16.gmra.mxu0 %v479
  %v1780 = vpop.f32.mrf.mxu0
  %v1781 = vadd.f32 %v1741, %v1780
  %v1782 = vpop.f32.mrf.mxu0
  %v1783 = vpop.f32.mrf.mxu0
  %v1784 = vpop.f32.mrf.mxu0
  %1785 = vdwg.mxu0
  %1786 = vmatprep.subr.bf16.mxu0 0
  %1787 = vmatpush1.bf16.msra.mxu0 %v1349
  %1788 = vmatprep.subr.bf16.mxu0 0
  %1789 = vmatpush1.bf16.msra.mxu0 %v1348
  %1790 = vmatprep.subr.bf16.mxu0 0
  %1791 = vmatpush1.bf16.msra.mxu0 %v1347
  %1792 = vmatprep.subr.bf16.mxu0 0
  %1793 = vmatpush1.bf16.msra.mxu0 %v1346
  %1794 = vmatprep.subr.bf16.mxu0 0
  %1795 = vmatpush1.bf16.msra.mxu0 %v1345
  %1796 = vmatprep.subr.bf16.mxu0 0
  %1797 = vmatpush1.bf16.msra.mxu0 %v1344
  %1798 = vmatprep.subr.bf16.mxu0 0
  %1799 = vmatpush1.bf16.msra.mxu0 %v1343
  %1800 = vmatprep.subr.bf16.mxu0 0
  %1801 = vmatpush1.bf16.msra.mxu0 %v1342
  %1802 = vmatprep.subr.bf16.mxu0 0
  %1803 = vmatpush2.bf16.msra.mxu0 %v1357
  %1804 = vmatprep.subr.bf16.mxu0 0
  %1805 = vmatpush2.bf16.msra.mxu0 %v1356
  %1806 = vmatprep.subr.bf16.mxu0 0
  %1807 = vmatpush2.bf16.msra.mxu0 %v1355
  %1808 = vmatprep.subr.bf16.mxu0 0
  %1809 = vmatpush2.bf16.msra.mxu0 %v1354
  %1810 = vmatprep.subr.bf16.mxu0 0
  %1811 = vmatpush2.bf16.msra.mxu0 %v1353
  %1812 = vmatprep.subr.bf16.mxu0 0
  %1813 = vmatpush2.bf16.msra.mxu0 %v1352
  %1814 = vmatprep.subr.bf16.mxu0 0
  %1815 = vmatpush2.bf16.msra.mxu0 %v1351
  %1816 = vmatprep.subr.bf16.mxu0 0
  %1817 = vmatpush2.bf16.msra.mxu0 %v1350
  %1818 = vmatprep.mubr.bf16.mxu0 %v482
  %1819 = vmatmul.mubr.bf16.gmra.mxu0 %v481
  %v1820 = vpop.f32.mrf.mxu0
  %v1821 = vadd.f32 %v1781, %v1820
  %v1822 = vpop.f32.mrf.mxu0
  %v1823 = vpop.f32.mrf.mxu0
  %v1824 = vpop.f32.mrf.mxu0
  %1825 = vdwg.mxu0
  %1826 = vmatprep.subr.bf16.mxu0 0
  %1827 = vmatpush1.bf16.msra.mxu0 %v1365
  %1828 = vmatprep.subr.bf16.mxu0 0
  %1829 = vmatpush1.bf16.msra.mxu0 %v1364
  %1830 = vmatprep.subr.bf16.mxu0 0
  %1831 = vmatpush1.bf16.msra.mxu0 %v1363
  %1832 = vmatprep.subr.bf16.mxu0 0
  %1833 = vmatpush1.bf16.msra.mxu0 %v1362
  %1834 = vmatprep.subr.bf16.mxu0 0
  %1835 = vmatpush1.bf16.msra.mxu0 %v1361
  %1836 = vmatprep.subr.bf16.mxu0 0
  %1837 = vmatpush1.bf16.msra.mxu0 %v1360
  %1838 = vmatprep.subr.bf16.mxu0 0
  %1839 = vmatpush1.bf16.msra.mxu0 %v1359
  %1840 = vmatprep.subr.bf16.mxu0 0
  %1841 = vmatpush1.bf16.msra.mxu0 %v1358
  %1842 = vmatprep.subr.bf16.mxu0 0
  %1843 = vmatpush2.bf16.msra.mxu0 %v1373
  %1844 = vmatprep.subr.bf16.mxu0 0
  %1845 = vmatpush2.bf16.msra.mxu0 %v1372
  %1846 = vmatprep.subr.bf16.mxu0 0
  %1847 = vmatpush2.bf16.msra.mxu0 %v1371
  %1848 = vmatprep.subr.bf16.mxu0 0
  %1849 = vmatpush2.bf16.msra.mxu0 %v1370
  %1850 = vmatprep.subr.bf16.mxu0 0
  %1851 = vmatpush2.bf16.msra.mxu0 %v1369
  %1852 = vmatprep.subr.bf16.mxu0 0
  %1853 = vmatpush2.bf16.msra.mxu0 %v1368
  %1854 = vmatprep.subr.bf16.mxu0 0
  %1855 = vmatpush2.bf16.msra.mxu0 %v1367
  %1856 = vmatprep.subr.bf16.mxu0 0
  %1857 = vmatpush2.bf16.msra.mxu0 %v1366
  %1858 = vmatprep.mubr.bf16.mxu0 %v484
  %1859 = vmatmul.mubr.bf16.gmra.mxu0 %v483
  %v1860 = vpop.f32.mrf.mxu0
  %v1861 = vadd.f32 %v1821, %v1860
  %v1862 = vpop.f32.mrf.mxu0
  %v1863 = vpop.f32.mrf.mxu0
  %v1864 = vpop.f32.mrf.mxu0
  %1865 = vdwg.mxu0
  %1866 = vmatprep.subr.bf16.mxu0 0
  %1867 = vmatpush1.bf16.msra.mxu0 %v1381
  %1868 = vmatprep.subr.bf16.mxu0 0
  %1869 = vmatpush1.bf16.msra.mxu0 %v1380
  %1870 = vmatprep.subr.bf16.mxu0 0
  %1871 = vmatpush1.bf16.msra.mxu0 %v1379
  %1872 = vmatprep.subr.bf16.mxu0 0
  %1873 = vmatpush1.bf16.msra.mxu0 %v1378
  %1874 = vmatprep.subr.bf16.mxu0 0
  %1875 = vmatpush1.bf16.msra.mxu0 %v1377
  %1876 = vmatprep.subr.bf16.mxu0 0
  %1877 = vmatpush1.bf16.msra.mxu0 %v1376
  %1878 = vmatprep.subr.bf16.mxu0 0
  %1879 = vmatpush1.bf16.msra.mxu0 %v1375
  %1880 = vmatprep.subr.bf16.mxu0 0
  %1881 = vmatpush1.bf16.msra.mxu0 %v1374
  %1882 = vmatprep.subr.bf16.mxu0 0
  %1883 = vmatpush2.bf16.msra.mxu0 %v1389
  %1884 = vmatprep.subr.bf16.mxu0 0
  %1885 = vmatpush2.bf16.msra.mxu0 %v1388
  %1886 = vmatprep.subr.bf16.mxu0 0
  %1887 = vmatpush2.bf16.msra.mxu0 %v1387
  %1888 = vmatprep.subr.bf16.mxu0 0
  %1889 = vmatpush2.bf16.msra.mxu0 %v1386
  %1890 = vmatprep.subr.bf16.mxu0 0
  %1891 = vmatpush2.bf16.msra.mxu0 %v1385
  %1892 = vmatprep.subr.bf16.mxu0 0
  %1893 = vmatpush2.bf16.msra.mxu0 %v1384
  %1894 = vmatprep.subr.bf16.mxu0 0
  %1895 = vmatpush2.bf16.msra.mxu0 %v1383
  %1896 = vmatprep.subr.bf16.mxu0 0
  %1897 = vmatpush2.bf16.msra.mxu0 %v1382
  %1898 = vmatprep.mubr.bf16.mxu0 %v486
  %1899 = vmatmul.mubr.bf16.gmra.mxu0 %v485
  %v1900 = vpop.f32.mrf.mxu0
  %v1901 = vadd.f32 %v1861, %v1900
  %v1902 = vpop.f32.mrf.mxu0
  %v1903 = vpop.f32.mrf.mxu0
  %v1904 = vpop.f32.mrf.mxu0
  %1905 = vdwg.mxu0
  %1906 = vmatprep.subr.bf16.mxu0 0
  %1907 = vmatpush1.bf16.msra.mxu0 %v1397
  %1908 = vmatprep.subr.bf16.mxu0 0
  %1909 = vmatpush1.bf16.msra.mxu0 %v1396
  %1910 = vmatprep.subr.bf16.mxu0 0
  %1911 = vmatpush1.bf16.msra.mxu0 %v1395
  %1912 = vmatprep.subr.bf16.mxu0 0
  %1913 = vmatpush1.bf16.msra.mxu0 %v1394
  %1914 = vmatprep.subr.bf16.mxu0 0
  %1915 = vmatpush1.bf16.msra.mxu0 %v1393
  %1916 = vmatprep.subr.bf16.mxu0 0
  %1917 = vmatpush1.bf16.msra.mxu0 %v1392
  %1918 = vmatprep.subr.bf16.mxu0 0
  %1919 = vmatpush1.bf16.msra.mxu0 %v1391
  %1920 = vmatprep.subr.bf16.mxu0 0
  %1921 = vmatpush1.bf16.msra.mxu0 %v1390
  %1922 = vmatprep.subr.bf16.mxu0 0
  %1923 = vmatpush2.bf16.msra.mxu0 %v1405
  %1924 = vmatprep.subr.bf16.mxu0 0
  %1925 = vmatpush2.bf16.msra.mxu0 %v1404
  %1926 = vmatprep.subr.bf16.mxu0 0
  %1927 = vmatpush2.bf16.msra.mxu0 %v1403
  %1928 = vmatprep.subr.bf16.mxu0 0
  %1929 = vmatpush2.bf16.msra.mxu0 %v1402
  %1930 = vmatprep.subr.bf16.mxu0 0
  %1931 = vmatpush2.bf16.msra.mxu0 %v1401
  %1932 = vmatprep.subr.bf16.mxu0 0
  %1933 = vmatpush2.bf16.msra.mxu0 %v1400
  %1934 = vmatprep.subr.bf16.mxu0 0
  %1935 = vmatpush2.bf16.msra.mxu0 %v1399
  %1936 = vmatprep.subr.bf16.mxu0 0
  %1937 = vmatpush2.bf16.msra.mxu0 %v1398
  %1938 = vmatprep.mubr.bf16.mxu0 %v488
  %1939 = vmatmul.mubr.bf16.gmra.mxu0 %v487
  %v1940 = vpop.f32.mrf.mxu0
  %v1941 = vadd.f32 %v1901, %v1940
  %v1942 = vpop.f32.mrf.mxu0
  %v1943 = vpop.f32.mrf.mxu0
  %v1944 = vpop.f32.mrf.mxu0
  %1945 = vdwg.mxu0
  %1946 = vmatprep.subr.bf16.mxu0 0
  %1947 = vmatpush1.bf16.msra.mxu0 %v1413
  %1948 = vmatprep.subr.bf16.mxu0 0
  %1949 = vmatpush1.bf16.msra.mxu0 %v1412
  %1950 = vmatprep.subr.bf16.mxu0 0
  %1951 = vmatpush1.bf16.msra.mxu0 %v1411
  %1952 = vmatprep.subr.bf16.mxu0 0
  %1953 = vmatpush1.bf16.msra.mxu0 %v1410
  %1954 = vmatprep.subr.bf16.mxu0 0
  %1955 = vmatpush1.bf16.msra.mxu0 %v1409
  %1956 = vmatprep.subr.bf16.mxu0 0
  %1957 = vmatpush1.bf16.msra.mxu0 %v1408
  %1958 = vmatprep.subr.bf16.mxu0 0
  %1959 = vmatpush1.bf16.msra.mxu0 %v1407
  %1960 = vmatprep.subr.bf16.mxu0 0
  %1961 = vmatpush1.bf16.msra.mxu0 %v1406
  %1962 = vmatprep.subr.bf16.mxu0 0
  %1963 = vmatpush2.bf16.msra.mxu0 %v1421
  %1964 = vmatprep.subr.bf16.mxu0 0
  %1965 = vmatpush2.bf16.msra.mxu0 %v1420
  %1966 = vmatprep.subr.bf16.mxu0 0
  %1967 = vmatpush2.bf16.msra.mxu0 %v1419
  %1968 = vmatprep.subr.bf16.mxu0 0
  %1969 = vmatpush2.bf16.msra.mxu0 %v1418
  %1970 = vmatprep.subr.bf16.mxu0 0
  %1971 = vmatpush2.bf16.msra.mxu0 %v1417
  %1972 = vmatprep.subr.bf16.mxu0 0
  %1973 = vmatpush2.bf16.msra.mxu0 %v1416
  %1974 = vmatprep.subr.bf16.mxu0 0
  %1975 = vmatpush2.bf16.msra.mxu0 %v1415
  %1976 = vmatprep.subr.bf16.mxu0 0
  %1977 = vmatpush2.bf16.msra.mxu0 %v1414
  %1978 = vmatprep.mubr.bf16.mxu0 %v490
  %1979 = vmatmul.mubr.bf16.gmra.mxu0 %v489
  %v1980 = vpop.f32.mrf.mxu0
  %v1981 = vadd.f32 %v1941, %v1980
  %v1982 = vpop.f32.mrf.mxu0
  %v1983 = vpop.f32.mrf.mxu0
  %v1984 = vpop.f32.mrf.mxu0
  %1985 = vdwg.mxu0
  %1986 = vmatprep.subr.bf16.mxu0 0
  %1987 = vmatpush1.bf16.msra.mxu0 %v1429
  %1988 = vmatprep.subr.bf16.mxu0 0
  %1989 = vmatpush1.bf16.msra.mxu0 %v1428
  %1990 = vmatprep.subr.bf16.mxu0 0
  %1991 = vmatpush1.bf16.msra.mxu0 %v1427
  %1992 = vmatprep.subr.bf16.mxu0 0
  %1993 = vmatpush1.bf16.msra.mxu0 %v1426
  %1994 = vmatprep.subr.bf16.mxu0 0
  %1995 = vmatpush1.bf16.msra.mxu0 %v1425
  %1996 = vmatprep.subr.bf16.mxu0 0
  %1997 = vmatpush1.bf16.msra.mxu0 %v1424
  %1998 = vmatprep.subr.bf16.mxu0 0
  %1999 = vmatpush1.bf16.msra.mxu0 %v1423
  %2000 = vmatprep.subr.bf16.mxu0 0
  %2001 = vmatpush1.bf16.msra.mxu0 %v1422
  %2002 = vmatprep.subr.bf16.mxu0 0
  %2003 = vmatpush2.bf16.msra.mxu0 %v1437
  %2004 = vmatprep.subr.bf16.mxu0 0
  %2005 = vmatpush2.bf16.msra.mxu0 %v1436
  %2006 = vmatprep.subr.bf16.mxu0 0
  %2007 = vmatpush2.bf16.msra.mxu0 %v1435
  %2008 = vmatprep.subr.bf16.mxu0 0
  %2009 = vmatpush2.bf16.msra.mxu0 %v1434
  %2010 = vmatprep.subr.bf16.mxu0 0
  %2011 = vmatpush2.bf16.msra.mxu0 %v1433
  %2012 = vmatprep.subr.bf16.mxu0 0
  %2013 = vmatpush2.bf16.msra.mxu0 %v1432
  %2014 = vmatprep.subr.bf16.mxu0 0
  %2015 = vmatpush2.bf16.msra.mxu0 %v1431
  %2016 = vmatprep.subr.bf16.mxu0 0
  %2017 = vmatpush2.bf16.msra.mxu0 %v1430
  %2018 = vmatprep.mubr.bf16.mxu0 %v492
  %2019 = vmatmul.mubr.bf16.gmra.mxu0 %v491
  %v2020 = vpop.f32.mrf.mxu0
  %v2021 = vadd.f32 %v1981, %v2020
  %v2022 = vpop.f32.mrf.mxu0
  %v2023 = vpop.f32.mrf.mxu0
  %v2024 = vpop.f32.mrf.mxu0
  %2025 = vdwg.mxu0
  %2026 = vmatprep.subr.bf16.mxu0 0
  %2027 = vmatpush1.bf16.msra.mxu0 %v1445
  %2028 = vmatprep.subr.bf16.mxu0 0
  %2029 = vmatpush1.bf16.msra.mxu0 %v1444
  %2030 = vmatprep.subr.bf16.mxu0 0
  %2031 = vmatpush1.bf16.msra.mxu0 %v1443
  %2032 = vmatprep.subr.bf16.mxu0 0
  %2033 = vmatpush1.bf16.msra.mxu0 %v1442
  %2034 = vmatprep.subr.bf16.mxu0 0
  %2035 = vmatpush1.bf16.msra.mxu0 %v1441
  %2036 = vmatprep.subr.bf16.mxu0 0
  %2037 = vmatpush1.bf16.msra.mxu0 %v1440
  %2038 = vmatprep.subr.bf16.mxu0 0
  %2039 = vmatpush1.bf16.msra.mxu0 %v1439
  %2040 = vmatprep.subr.bf16.mxu0 0
  %2041 = vmatpush1.bf16.msra.mxu0 %v1438
  %2042 = vmatprep.subr.bf16.mxu0 0
  %2043 = vmatpush2.bf16.msra.mxu0 %v1453
  %2044 = vmatprep.subr.bf16.mxu0 0
  %2045 = vmatpush2.bf16.msra.mxu0 %v1452
  %2046 = vmatprep.subr.bf16.mxu0 0
  %2047 = vmatpush2.bf16.msra.mxu0 %v1451
  %2048 = vmatprep.subr.bf16.mxu0 0
  %2049 = vmatpush2.bf16.msra.mxu0 %v1450
  %2050 = vmatprep.subr.bf16.mxu0 0
  %2051 = vmatpush2.bf16.msra.mxu0 %v1449
  %2052 = vmatprep.subr.bf16.mxu0 0
  %2053 = vmatpush2.bf16.msra.mxu0 %v1448
  %2054 = vmatprep.subr.bf16.mxu0 0
  %2055 = vmatpush2.bf16.msra.mxu0 %v1447
  %2056 = vmatprep.subr.bf16.mxu0 0
  %2057 = vmatpush2.bf16.msra.mxu0 %v1446
  %2058 = vmatprep.mubr.bf16.mxu0 %v494
  %2059 = vmatmul.mubr.bf16.gmra.mxu0 %v493
  %v2060 = vpop.f32.mrf.mxu0
  %v2061 = vadd.f32 %v2021, %v2060
  %v2062 = vpop.f32.mrf.mxu0
  %v2063 = vpop.f32.mrf.mxu0
  %v2064 = vpop.f32.mrf.mxu0
  %2065 = vdwg.mxu0
  %2066 = vmatprep.subr.bf16.mxu0 0
  %2067 = vmatpush1.bf16.msra.mxu0 %v1461
  %2068 = vmatprep.subr.bf16.mxu0 0
  %2069 = vmatpush1.bf16.msra.mxu0 %v1460
  %2070 = vmatprep.subr.bf16.mxu0 0
  %2071 = vmatpush1.bf16.msra.mxu0 %v1459
  %2072 = vmatprep.subr.bf16.mxu0 0
  %2073 = vmatpush1.bf16.msra.mxu0 %v1458
  %2074 = vmatprep.subr.bf16.mxu0 0
  %2075 = vmatpush1.bf16.msra.mxu0 %v1457
  %2076 = vmatprep.subr.bf16.mxu0 0
  %2077 = vmatpush1.bf16.msra.mxu0 %v1456
  %2078 = vmatprep.subr.bf16.mxu0 0
  %2079 = vmatpush1.bf16.msra.mxu0 %v1455
  %2080 = vmatprep.subr.bf16.mxu0 0
  %2081 = vmatpush1.bf16.msra.mxu0 %v1454
  %2082 = vmatprep.subr.bf16.mxu0 0
  %2083 = vmatpush2.bf16.msra.mxu0 %v1469
  %2084 = vmatprep.subr.bf16.mxu0 0
  %2085 = vmatpush2.bf16.msra.mxu0 %v1468
  %2086 = vmatprep.subr.bf16.mxu0 0
  %2087 = vmatpush2.bf16.msra.mxu0 %v1467
  %2088 = vmatprep.subr.bf16.mxu0 0
  %2089 = vmatpush2.bf16.msra.mxu0 %v1466
  %2090 = vmatprep.subr.bf16.mxu0 0
  %2091 = vmatpush2.bf16.msra.mxu0 %v1465
  %2092 = vmatprep.subr.bf16.mxu0 0
  %2093 = vmatpush2.bf16.msra.mxu0 %v1464
  %2094 = vmatprep.subr.bf16.mxu0 0
  %2095 = vmatpush2.bf16.msra.mxu0 %v1463
  %2096 = vmatprep.subr.bf16.mxu0 0
  %2097 = vmatpush2.bf16.msra.mxu0 %v1462
  %2098 = vmatprep.mubr.bf16.mxu0 %v496
  %2099 = vmatmul.mubr.bf16.gmra.mxu0 %v495
  %v2100 = vpop.f32.mrf.mxu0
  %v2101 = vadd.f32 %v2061, %v2100
  %v2102 = vpop.f32.mrf.mxu0
  %v2103 = vpop.f32.mrf.mxu0
  %v2104 = vpop.f32.mrf.mxu0
  %2105 = vdwg.mxu0
  %2106 = vmatprep.subr.bf16.mxu0 0
  %2107 = vmatpush1.bf16.msra.mxu0 %v1477
  %2108 = vmatprep.subr.bf16.mxu0 0
  %2109 = vmatpush1.bf16.msra.mxu0 %v1476
  %2110 = vmatprep.subr.bf16.mxu0 0
  %2111 = vmatpush1.bf16.msra.mxu0 %v1475
  %2112 = vmatprep.subr.bf16.mxu0 0
  %2113 = vmatpush1.bf16.msra.mxu0 %v1474
  %2114 = vmatprep.subr.bf16.mxu0 0
  %2115 = vmatpush1.bf16.msra.mxu0 %v1473
  %2116 = vmatprep.subr.bf16.mxu0 0
  %2117 = vmatpush1.bf16.msra.mxu0 %v1472
  %2118 = vmatprep.subr.bf16.mxu0 0
  %2119 = vmatpush1.bf16.msra.mxu0 %v1471
  %2120 = vmatprep.subr.bf16.mxu0 0
  %2121 = vmatpush1.bf16.msra.mxu0 %v1470
  %2122 = vmatprep.subr.bf16.mxu0 0
  %2123 = vmatpush2.bf16.msra.mxu0 %v1485
  %2124 = vmatprep.subr.bf16.mxu0 0
  %2125 = vmatpush2.bf16.msra.mxu0 %v1484
  %2126 = vmatprep.subr.bf16.mxu0 0
  %2127 = vmatpush2.bf16.msra.mxu0 %v1483
  %2128 = vmatprep.subr.bf16.mxu0 0
  %2129 = vmatpush2.bf16.msra.mxu0 %v1482
  %2130 = vmatprep.subr.bf16.mxu0 0
  %2131 = vmatpush2.bf16.msra.mxu0 %v1481
  %2132 = vmatprep.subr.bf16.mxu0 0
  %2133 = vmatpush2.bf16.msra.mxu0 %v1480
  %2134 = vmatprep.subr.bf16.mxu0 0
  %2135 = vmatpush2.bf16.msra.mxu0 %v1479
  %2136 = vmatprep.subr.bf16.mxu0 0
  %2137 = vmatpush2.bf16.msra.mxu0 %v1478
  %2138 = vmatprep.mubr.bf16.mxu0 %v498
  %2139 = vmatmul.mubr.bf16.gmra.mxu0 %v497
  %v2140 = vpop.f32.mrf.mxu0
  %v2141 = vadd.f32 %v2101, %v2140
  %v2142 = vpop.f32.mrf.mxu0
  %v2143 = vpop.f32.mrf.mxu0
  %v2144 = vpop.f32.mrf.mxu0
  %2145 = vdwg.mxu0
  %2146 = vmatprep.subr.bf16.mxu0 0
  %2147 = vmatpush1.bf16.msra.mxu0 %v1493
  %2148 = vmatprep.subr.bf16.mxu0 0
  %2149 = vmatpush1.bf16.msra.mxu0 %v1492
  %2150 = vmatprep.subr.bf16.mxu0 0
  %2151 = vmatpush1.bf16.msra.mxu0 %v1491
  %2152 = vmatprep.subr.bf16.mxu0 0
  %2153 = vmatpush1.bf16.msra.mxu0 %v1490
  %2154 = vmatprep.subr.bf16.mxu0 0
  %2155 = vmatpush1.bf16.msra.mxu0 %v1489
  %2156 = vmatprep.subr.bf16.mxu0 0
  %2157 = vmatpush1.bf16.msra.mxu0 %v1488
  %2158 = vmatprep.subr.bf16.mxu0 0
  %2159 = vmatpush1.bf16.msra.mxu0 %v1487
  %2160 = vmatprep.subr.bf16.mxu0 0
  %2161 = vmatpush1.bf16.msra.mxu0 %v1486
  %2162 = vmatprep.subr.bf16.mxu0 0
  %2163 = vmatpush2.bf16.msra.mxu0 %v1501
  %2164 = vmatprep.subr.bf16.mxu0 0
  %2165 = vmatpush2.bf16.msra.mxu0 %v1500
  %2166 = vmatprep.subr.bf16.mxu0 0
  %2167 = vmatpush2.bf16.msra.mxu0 %v1499
  %2168 = vmatprep.subr.bf16.mxu0 0
  %2169 = vmatpush2.bf16.msra.mxu0 %v1498
  %2170 = vmatprep.subr.bf16.mxu0 0
  %2171 = vmatpush2.bf16.msra.mxu0 %v1497
  %2172 = vmatprep.subr.bf16.mxu0 0
  %2173 = vmatpush2.bf16.msra.mxu0 %v1496
  %2174 = vmatprep.subr.bf16.mxu0 0
  %2175 = vmatpush2.bf16.msra.mxu0 %v1495
  %2176 = vmatprep.subr.bf16.mxu0 0
  %2177 = vmatpush2.bf16.msra.mxu0 %v1494
  %2178 = vmatprep.mubr.bf16.mxu0 %v500
  %2179 = vmatmul.mubr.bf16.gmra.mxu0 %v499
  %v2180 = vpop.f32.mrf.mxu0
  %v2181 = vadd.f32 %v2141, %v2180
  %v2182 = vpop.f32.mrf.mxu0
  %v2183 = vpop.f32.mrf.mxu0
  %v2184 = vpop.f32.mrf.mxu0
  %2185 = vdwg.mxu0
  %2186 = vmatprep.subr.bf16.mxu0 0
  %2187 = vmatpush1.bf16.msra.mxu0 0
  %2188 = vmatprep.subr.bf16.mxu0 0
  %2189 = vmatpush1.bf16.msra.mxu0 0
  %2190 = vmatprep.subr.bf16.mxu0 0
  %2191 = vmatpush1.bf16.msra.mxu0 0
  %2192 = vmatprep.subr.bf16.mxu0 0
  %2193 = vmatpush1.bf16.msra.mxu0 0
  %2194 = vmatprep.subr.bf16.mxu0 0
  %2195 = vmatpush1.bf16.msra.mxu0 %v1505
  %2196 = vmatprep.subr.bf16.mxu0 0
  %2197 = vmatpush1.bf16.msra.mxu0 %v1504
  %2198 = vmatprep.subr.bf16.mxu0 0
  %2199 = vmatpush1.bf16.msra.mxu0 %v1503
  %2200 = vmatprep.subr.bf16.mxu0 0
  %2201 = vmatpush1.bf16.msra.mxu0 %v1502
  %2202 = vmatprep.subr.bf16.mxu0 0
  %2203 = vmatpush2.bf16.msra.mxu0 0
  %2204 = vmatprep.subr.bf16.mxu0 0
  %2205 = vmatpush2.bf16.msra.mxu0 0
  %2206 = vmatprep.subr.bf16.mxu0 0
  %2207 = vmatpush2.bf16.msra.mxu0 0
  %2208 = vmatprep.subr.bf16.mxu0 0
  %2209 = vmatpush2.bf16.msra.mxu0 0
  %2210 = vmatprep.subr.bf16.mxu0 0
  %2211 = vmatpush2.bf16.msra.mxu0 0
  %2212 = vmatprep.subr.bf16.mxu0 0
  %2213 = vmatpush2.bf16.msra.mxu0 0
  %2214 = vmatprep.subr.bf16.mxu0 0
  %2215 = vmatpush2.bf16.msra.mxu0 0
  %2216 = vmatprep.subr.bf16.mxu0 0
  %2217 = vmatpush2.bf16.msra.mxu0 0
  %2218 = vmatprep.mubr.bf16.mxu0 0
  %2219 = vmatmul.mubr.bf16.gmra.mxu0 %v1704
  %v2220 = vpop.f32.mrf.mxu0
  %v2221 = vadd.f32 %v2181, %v2220
  %v2222 = vpop.f32.mrf.mxu0
  %v2223 = vpop.f32.mrf.mxu0
  %v2224 = vpop.f32.mrf.mxu0
  %2225 = vdwg.mxu0
  %v2226 = vpack.c.bf16 %v2221, %v2221
  %v2227 = vld [vmem:[%s3] sm:$0xf]
  %v2228 = vld [vmem:[%s3 + $0x4] sm:$0xf]
  %v2229 = vld [vmem:[%s3 + $0x8] sm:$0xf]
  %v2230 = vld [vmem:[%s3 + $0xc] sm:$0xf]
  %v2231 = vld [vmem:[%s3 + $0x10] sm:$0xf]
  %v2232 = vld [vmem:[%s3 + $0x14] sm:$0xf]
  %v2233 = vld [vmem:[%s3 + $0x18] sm:$0xf]
  %v2234 = vld [vmem:[%s3 + $0x1c] sm:$0xf]
  %v2235 = vld [vmem:[%s3 + $0x20] sm:$0xf]
  %v2236 = vld [vmem:[%s3 + $0x24] sm:$0xf]
  %v2237 = vld [vmem:[%s3 + $0x28] sm:$0xf]
  %v2238 = vld [vmem:[%s3 + $0x2c] sm:$0xf]
  %v2239 = vld [vmem:[%s3 + $0x30] sm:$0xf]
  %v2240 = vld [vmem:[%s3 + $0x34] sm:$0xf]
  %v2241 = vld [vmem:[%s3 + $0x38] sm:$0xf]
  %v2242 = vld [vmem:[%s3 + $0x3c] sm:$0xf]
  %v2243 = vld [vmem:[%s4] sm:$0x1]
  %v2245 = vlaneseq
  %v2246 = vshrl.u32 %v2245, 7
  %v2247 = vsub.s32 0, %v2246
  %v2248 = vrot.slane %v2243, %v2247
  %v2266 = vunpack.c.l.b16 %v2227
  %v2267 = vunpack.c.l.b16 %v2228
  %v2268 = vunpack.c.l.b16 %v2229
  %v2269 = vunpack.c.l.b16 %v2230
  %v2270 = vunpack.c.l.b16 %v2231
  %v2271 = vunpack.c.l.b16 %v2232
  %v2272 = vunpack.c.l.b16 %v2233
  %v2273 = vunpack.c.l.b16 %v2234
  %v2274 = vunpack.c.l.b16 %v2235
  %v2275 = vunpack.c.l.b16 %v2236
  %v2276 = vunpack.c.l.b16 %v2237
  %v2277 = vunpack.c.l.b16 %v2238
  %v2278 = vunpack.c.l.b16 %v2239
  %v2279 = vunpack.c.l.b16 %v2240
  %v2280 = vunpack.c.l.b16 %v2241
  %v2281 = vunpack.c.l.b16 %v2242
  %v2282 = vpack.c.b16 %v2267, %v2266
  %v2283 = vpack.c.b16 %v2269, %v2268
  %v2284 = vpack.c.b16 %v2271, %v2270
  %v2285 = vpack.c.b16 %v2273, %v2272
  %v2286 = vpack.c.b16 %v2275, %v2274
  %v2287 = vpack.c.b16 %v2277, %v2276
  %v2288 = vpack.c.b16 %v2279, %v2278
  %v2289 = vpack.c.b16 %v2281, %v2280
  %2298 = vmatprep.subr.bf16.mxu0 0
  %2299 = vmatpush1.bf16.msra.mxu0 %v2289
  %2300 = vmatprep.subr.bf16.mxu0 0
  %2301 = vmatpush1.bf16.msra.mxu0 %v2288
  %2302 = vmatprep.subr.bf16.mxu0 0
  %2303 = vmatpush1.bf16.msra.mxu0 %v2287
  %2304 = vmatprep.subr.bf16.mxu0 0
  %2305 = vmatpush1.bf16.msra.mxu0 %v2286
  %2306 = vmatprep.subr.bf16.mxu0 0
  %2307 = vmatpush1.bf16.msra.mxu0 %v2285
  %2308 = vmatprep.subr.bf16.mxu0 0
  %2309 = vmatpush1.bf16.msra.mxu0 %v2284
  %2310 = vmatprep.subr.bf16.mxu0 0
  %2311 = vmatpush1.bf16.msra.mxu0 %v2283
  %2312 = vmatprep.subr.bf16.mxu0 0
  %2313 = vmatpush1.bf16.msra.mxu0 %v2282
  %2314 = vmatprep.subr.bf16.mxu0 0
  %2315 = vmatpush2.bf16.msra.mxu0 0
  %2316 = vmatprep.subr.bf16.mxu0 0
  %2317 = vmatpush2.bf16.msra.mxu0 0
  %2318 = vmatprep.subr.bf16.mxu0 0
  %2319 = vmatpush2.bf16.msra.mxu0 0
  %2320 = vmatprep.subr.bf16.mxu0 0
  %2321 = vmatpush2.bf16.msra.mxu0 0
  %2322 = vmatprep.subr.bf16.mxu0 0
  %2323 = vmatpush2.bf16.msra.mxu0 0
  %2324 = vmatprep.subr.bf16.mxu0 0
  %2325 = vmatpush2.bf16.msra.mxu0 0
  %2326 = vmatprep.subr.bf16.mxu0 0
  %2327 = vmatpush2.bf16.msra.mxu0 0
  %2328 = vmatprep.subr.bf16.mxu0 0
  %2329 = vmatpush2.bf16.msra.mxu0 0
  %2330 = vmatprep.mubr.bf16.mxu0 0
  %2331 = vmatmul.mubr.bf16.gmra.mxu0 %v2226
  %v2332 = vpop.f32.mrf.mxu0
  %v2333 = vadd.f32 %v2248, %v2332
  %v2334 = vpop.f32.mrf.mxu0
  %v2335 = vpop.f32.mrf.mxu0
  %v2336 = vpop.f32.mrf.mxu0
  %2337 = vdwg.mxu0
  %v2338 = vpack.c.bf16 %v2333, %v2333
  %v2339 = vld [vmem:[%s5] sm:$0xf]
  %v2340 = vld [vmem:[%s5 + $0x4] sm:$0xf]
  %v2341 = vld [vmem:[%s5 + $0x8] sm:$0xf]
  %v2342 = vld [vmem:[%s5 + $0xc] sm:$0xf]
  %v2343 = vld [vmem:[%s5 + $0x10] sm:$0xf]
  %v2344 = vld [vmem:[%s5 + $0x14] sm:$0xf]
  %v2345 = vld [vmem:[%s5 + $0x18] sm:$0xf]
  %v2346 = vld [vmem:[%s5 + $0x1c] sm:$0xf]
  %v2347 = vld [vmem:[%s6] sm:$0x1]
  %v2349 = vlaneseq
  %v2350 = vshrl.u32 %v2349, 7
  %v2351 = vsub.s32 0, %v2350
  %v2352 = vrot.slane %v2347, %v2351
  %v2362 = vunpack.c.l.b16 %v2339
  %v2363 = vunpack.c.l.b16 %v2340
  %v2364 = vunpack.c.l.b16 %v2341
  %v2365 = vunpack.c.l.b16 %v2342
  %v2366 = vunpack.c.l.b16 %v2343
  %v2367 = vunpack.c.l.b16 %v2344
  %v2368 = vunpack.c.l.b16 %v2345
  %v2369 = vunpack.c.l.b16 %v2346
  %v2370 = vpack.c.b16 %v2363, %v2362
  %v2371 = vpack.c.b16 %v2365, %v2364
  %v2372 = vpack.c.b16 %v2367, %v2366
  %v2373 = vpack.c.b16 %v2369, %v2368
  %v2379 = vsel %vm1702, %v2338, 0
  %2381 = vmatprep.subr.bf16.mxu0 0
  %2382 = vmatpush1.bf16.msra.mxu0 0
  %2383 = vmatprep.subr.bf16.mxu0 0
  %2384 = vmatpush1.bf16.msra.mxu0 0
  %2385 = vmatprep.subr.bf16.mxu0 0
  %2386 = vmatpush1.bf16.msra.mxu0 0
  %2387 = vmatprep.subr.bf16.mxu0 0
  %2388 = vmatpush1.bf16.msra.mxu0 0
  %2389 = vmatprep.subr.bf16.mxu0 0
  %2390 = vmatpush1.bf16.msra.mxu0 %v2373
  %2391 = vmatprep.subr.bf16.mxu0 0
  %2392 = vmatpush1.bf16.msra.mxu0 %v2372
  %2393 = vmatprep.subr.bf16.mxu0 0
  %2394 = vmatpush1.bf16.msra.mxu0 %v2371
  %2395 = vmatprep.subr.bf16.mxu0 0
  %2396 = vmatpush1.bf16.msra.mxu0 %v2370
  %2397 = vmatprep.subr.bf16.mxu0 0
  %2398 = vmatpush2.bf16.msra.mxu0 0
  %2399 = vmatprep.subr.bf16.mxu0 0
  %2400 = vmatpush2.bf16.msra.mxu0 0
  %2401 = vmatprep.subr.bf16.mxu0 0
  %2402 = vmatpush2.bf16.msra.mxu0 0
  %2403 = vmatprep.subr.bf16.mxu0 0
  %2404 = vmatpush2.bf16.msra.mxu0 0
  %2405 = vmatprep.subr.bf16.mxu0 0
  %2406 = vmatpush2.bf16.msra.mxu0 0
  %2407 = vmatprep.subr.bf16.mxu0 0
  %2408 = vmatpush2.bf16.msra.mxu0 0
  %2409 = vmatprep.subr.bf16.mxu0 0
  %2410 = vmatpush2.bf16.msra.mxu0 0
  %2411 = vmatprep.subr.bf16.mxu0 0
  %2412 = vmatpush2.bf16.msra.mxu0 0
  %2413 = vmatprep.mubr.bf16.mxu0 0
  %2414 = vmatmul.mubr.bf16.gmra.mxu0 %v2379
  %v2415 = vpop.f32.mrf.mxu0
  %v2416 = vadd.f32 %v2352, %v2415
  %v2417 = vpop.f32.mrf.mxu0
  %v2418 = vpop.f32.mrf.mxu0
  %v2419 = vpop.f32.mrf.mxu0
  %2420 = vdwg.mxu0
  %2421 = vmax.xlane.f32.xlu0 %v2416
  %v2422 = vpop.xlane.xlu0 %2421
  %v2423 = vsub.f32 %v2416, %v2422
  %v2424 = vmul.f32 %v2423, 1.442695
  %v2425 = vpow.pop %v2424
  %2426 = vadd.xlane.f32.xlu0 %v2425
  %v2427 = vpop.xlane.xlu0 %2426
  %v2428 = vrcp.pop %v2427
  %v2429 = vmul.f32 %v2425, %v2428
  %2430 = vst [vmem:[%s7] sm:$0xff] %v2429
  // Predicated region
  $region30: #{forward.5} parent=0 // pred_check
    _
  $region31: #{forward.5} parent=0 // pred_check_branch
    %2432 = sbr.rel (0) target = $region33
  $region32: #{forward.5} parent=0 // pred_region
    _
  $region33: #{forward.5} parent=0 // pred_fallthru
    _
  // Predicated region
  $region34: #{forward.5} parent=0 // pred_check
    _
  $region35: #{forward.5} parent=0 // pred_check_branch
    %2434 = sbr.rel (0) target = $region37
  $region36: #{forward.5} parent=0 // pred_region
    _
  $region37: #{forward.5} parent=0 // pred_fallthru
    _

// kernel: forward.4
$region0: #{forward.4}
  #allocation0 [shape = 'u32[]', space=smem, size = 0x4, offset = 0x4, fixed_abs, tag = 'smem constant byte address 0x4 - core index']
  #allocation1 [shape = 'u32[144,128]{1,0:T(1,128)}', space=vmem, size = 0x12000, scoped, tag = 'internal scratch']
  %s0 = inlined_call_operand.vmem [shape: bf16[56,2304], index: 0, kind: input, shape index: {}]
  %s1 = inlined_call_operand.vmem [shape: bf16[2304,512], index: 1, kind: input, shape index: {}]
  %s2 = inlined_call_operand.vmem [shape: f32[1,128], index: 2, kind: input, shape index: {}]
  %s3 = inlined_call_operand.vmem [shape: bf16[56,128], index: 3, kind: output, shape index: {}]
  %s4 = sld [smem:[#allocation0]]
  $region45: #{forward.4} parent=0
    _
  %s6 = ssub.s32 1, %s4
  %s7 = scalar_select 0, %s6, %s4
  loop: start=0, step=1, limit=9
  $region2: #{forward.4} parent=0 // loop_pre_header
    _
  $region3: #{forward.4} parent=0 // loop_header
    %s9 = sphi 0, %s13
    %p10 = scmp.ge.s32.totalorder %s9, 9
    %s19 = sphi 0, %s21
    %s22 = sphi 0, %s19
    %s23 = sphi 0, %s22
    %s39 = sphi 0, %s23
    %s43 = sphi 0, %s43
    %s45 = sphi 0, %s43
    %s46 = sphi 0, %s45
    %s60 = sphi 0, %s46
    %s64 = sphi 0, %s64
    %s66 = sphi 0, %s64
    %s67 = sphi 0, %s66
    %s81 = sphi 0, %s67
    %s87 = sphi 0, %s89
    %s90 = sphi 0, %s87
    %s91 = sphi 0, %s90
    %s107 = sphi 0, %s91
  $region4: #{forward.4} parent=0 // loop_header_branch
    %12 = sbr.rel (%p10) target = $region8
  $region5: #{forward.4} parent=0 // loop_body
    %s14 = ssub.s32 %s9, 1
    %s15 = ssub.s32 %s9, 2
    %s16 = sadd.s32 %s9, 1
    %s17 = ssub.s32 %s9, %s16
    %p18 = scmp.eq.s32.totalorder %s17, 0
    %s20 = sadd.s32 %s19, 1
    %s21 = scalar_select %p18, %s19, %s20
    %p24 = pneg %p18
    %p25 = scmp.eq.s32.totalorder %s9, 6
    %p26 = por %p24, %p25
    %p27 = scmp.ne.s32.totalorder %s19, %s22
    %p28 = scmp.eq.s32.totalorder %s9, 0
    %p29 = por %p27, %p28
    %p30 = scmp.ne.s32.totalorder %s19, %s22
    %p31 = scmp.eq.s32.totalorder %s14, 6
    %p32 = por %p30, %p31
    %p33 = scmp.ne.s32.totalorder %s22, %s23
    %p34 = scmp.eq.s32.totalorder %s14, 0
    %p35 = por %p33, %p34
    %p36 = scmp.ne.s32.totalorder %s22, %s23
    %p37 = scmp.eq.s32.totalorder %s15, 6
    %p38 = por %p36, %p37
    %p40 = scmp.ne.s32.totalorder %s23, %s39
    %p41 = scmp.eq.s32.totalorder %s15, 0
    %p42 = por %p40, %p41
    %s44 = sadd.s32 %s43, 1
    %p47 = scmp.eq.s32.totalorder %s9, 6
    %p48 = scmp.ne.s32.totalorder %s43, %s45
    %p49 = scmp.eq.s32.totalorder %s9, 0
    %p50 = por %p48, %p49
    %p51 = scmp.ne.s32.totalorder %s43, %s45
    %p52 = scmp.eq.s32.totalorder %s14, 6
    %p53 = por %p51, %p52
    %p54 = scmp.ne.s32.totalorder %s45, %s46
    %p55 = scmp.eq.s32.totalorder %s14, 0
    %p56 = por %p54, %p55
    %p57 = scmp.ne.s32.totalorder %s45, %s46
    %p58 = scmp.eq.s32.totalorder %s15, 6
    %p59 = por %p57, %p58
    %p61 = scmp.ne.s32.totalorder %s46, %s60
    %p62 = scmp.eq.s32.totalorder %s15, 0
    %p63 = por %p61, %p62
    %s65 = sadd.s32 %s64, 1
    %p68 = scmp.eq.s32.totalorder %s9, 6
    %p69 = scmp.ne.s32.totalorder %s64, %s66
    %p70 = scmp.eq.s32.totalorder %s9, 0
    %p71 = por %p69, %p70
    %p72 = scmp.ne.s32.totalorder %s64, %s66
    %p73 = scmp.eq.s32.totalorder %s14, 6
    %p74 = por %p72, %p73
    %p75 = scmp.ne.s32.totalorder %s66, %s67
    %p76 = scmp.eq.s32.totalorder %s14, 0
    %p77 = por %p75, %p76
    %p78 = scmp.ne.s32.totalorder %s66, %s67
    %p79 = scmp.eq.s32.totalorder %s15, 6
    %p80 = por %p78, %p79
    %p82 = scmp.ne.s32.totalorder %s67, %s81
    %p83 = scmp.eq.s32.totalorder %s15, 0
    %p84 = por %p82, %p83
    %s85 = ssub.s32 %s9, %s16
    %p86 = scmp.eq.s32.totalorder %s85, 0
    %s88 = sadd.s32 %s87, 1
    %s89 = scalar_select %p86, %s87, %s88
    %p92 = pneg %p86
    %p93 = scmp.eq.s32.totalorder %s9, 6
    %p94 = por %p92, %p93
    %p95 = scmp.ne.s32.totalorder %s87, %s90
    %p96 = scmp.eq.s32.totalorder %s9, 0
    %p97 = por %p95, %p96
    %p98 = scmp.ne.s32.totalorder %s87, %s90
    %p99 = scmp.eq.s32.totalorder %s14, 6
    %p100 = por %p98, %p99
    %p101 = scmp.ne.s32.totalorder %s90, %s91
    %p102 = scmp.eq.s32.totalorder %s14, 0
    %p103 = por %p101, %p102
    %p104 = scmp.ne.s32.totalorder %s90, %s91
    %p105 = scmp.eq.s32.totalorder %s15, 6
    %p106 = por %p104, %p105
    %p108 = scmp.ne.s32.totalorder %s91, %s107
    %p109 = scmp.eq.s32.totalorder %s15, 0
    %p110 = por %p108, %p109
    %p111 = scmp.le.s32.totalorder 1, %s9
    %p112 = scmp.lt.s32.totalorder %s9, 8
    %p113 = pnand %p111, %p112
    %p114 = pneg %p113
    // Predicated region
    $region9: #{forward.4} parent=5 // pred_check
      _
    $region10: #{forward.4} parent=5 // pred_check_branch
      %116 = sbr.rel (%p113) target = $region12
    $region11: #{forward.4} parent=5 // pred_region
      %s117 = ssub.s32 %s9, 1
      // Predicated region
      $region13: #{forward.4} parent=11 // pred_check
        %p118 = pneg %p56
      $region14: #{forward.4} parent=11 // pred_check_branch
        %120 = sbr.rel (%p118) target = $region16
      $region15: #{forward.4} parent=11 // pred_region
        _
      $region16: #{forward.4} parent=11 // pred_fallthru
        _
      // Predicated region
      $region17: #{forward.4} parent=11 // pred_check
        %p121 = pneg %p77
      $region18: #{forward.4} parent=11 // pred_check_branch
        %123 = sbr.rel (%p121) target = $region20
      $region19: #{forward.4} parent=11 // pred_region
        _
      $region20: #{forward.4} parent=11 // pred_fallthru
        _
    $region12: #{forward.4} parent=5 // pred_fallthru
      _
    %p124 = scmp.lt.s32.totalorder %s9, 7
    // Predicated region
    $region21: #{forward.4} parent=5 // pred_check
      %p125 = pneg %p124
    $region22: #{forward.4} parent=5 // pred_check_branch
      %127 = sbr.rel (%p125) target = $region24
    $region23: #{forward.4} parent=5 // pred_region
      // Predicated region
      $region25: #{forward.4} parent=23 // pred_check
        %p128 = pneg %p29
      $region26: #{forward.4} parent=23 // pred_check_branch
        %130 = sbr.rel (%p128) target = $region28
      $region27: #{forward.4} parent=23 // pred_region
        %p131 = scmp.lt.s32.totalorder %s9, 6
        %s132 = scalar_select %p131, %s9, 6
        %s133 = smul.addr %s132, 18
        %s134 = smul.addr %s133, 4
        %s135 = scalar_lea.vmem %s0, %s134
      $region28: #{forward.4} parent=23 // pred_fallthru
        _
    $region24: #{forward.4} parent=5 // pred_fallthru
      _
    %p136 = scmp.le.s32.totalorder 1, %s9
    %p137 = scmp.lt.s32.totalorder %s9, 8
    %p138 = pnand %p136, %p137
    %p139 = pneg %p138
    // Predicated region
    $region29: #{forward.4} parent=5 // pred_check
      _
    $region30: #{forward.4} parent=5 // pred_check_branch
      %141 = sbr.rel (%p138) target = $region32
    $region31: #{forward.4} parent=5 // pred_region
      %s142 = ssub.s32 %s9, 1
      %p143 = scmp.lt.s32.totalorder %s14, 6
      %s144 = scalar_select %p143, %s14, 6
      %s145 = smul.addr %s144, 18
      %s146 = smul.addr %s145, 4
      %s147 = scalar_lea.vmem %s0, %s146
      %p148 = pneg %p35
      %p149 = pneg %p32
      %p150 = pneg %p56
      %p151 = pneg %p53
      %p152 = pneg %p77
      %p153 = pneg %p74
      %p154 = pneg %p103
      %p155 = pneg %p100
      %p156 = scmp.lt.s32.totalorder %s14, 6
      %s157 = scalar_select %p156, %s14, 6
      %s158 = smul.addr %s157, 4
      %s159 = scalar_lea.vmem %s3, %s158
      %p160 = scmp.lt.s32.totalorder %s14, 6
      %s161 = scalar_select %p160, %s14, 6
      %s162 = smul.addr %s161, 18
      %s163 = smul.addr %s162, 4
      %s164 = scalar_lea.vmem %s0, %s163
      %p165 = scmp.lt.s32.totalorder %s14, 6
      %s166 = scalar_select %p165, %s14, 6
      %s167 = smul.addr %s166, 4
      %s168 = scalar_lea.vmem %s3, %s167
      %v169 = vld [vmem:[%s164] sm:$0xff]
      %v170 = vld [vmem:[%s164 + $0x8] sm:$0xff]
      %v171 = vld [vmem:[%s164 + $0x10] sm:$0xff]
      %v172 = vld [vmem:[%s164 + $0x18] sm:$0xff]
      %v173 = vld [vmem:[%s164 + $0x20] sm:$0xff]
      %v174 = vld [vmem:[%s164 + $0x28] sm:$0xff]
      %v175 = vld [vmem:[%s164 + $0x30] sm:$0xff]
      %v176 = vld [vmem:[%s164 + $0x38] sm:$0xff]
      %v177 = vld [vmem:[%s164 + $0x40] sm:$0xff]
      %v178 = vld [vmem:[%s1] sm:$0xff]
      %v179 = vld [vmem:[%s1 + $0x8] sm:$0xff]
      %v180 = vld [vmem:[%s1 + $0x10] sm:$0xff]
      %v181 = vld [vmem:[%s1 + $0x18] sm:$0xff]
      %v182 = vld [vmem:[%s1 + $0x20] sm:$0xff]
      %v183 = vld [vmem:[%s1 + $0x28] sm:$0xff]
      %v184 = vld [vmem:[%s1 + $0x30] sm:$0xff]
      %v185 = vld [vmem:[%s1 + $0x38] sm:$0xff]
      %v186 = vld [vmem:[%s1 + $0x40] sm:$0xff]
      %v187 = vld [vmem:[%s1 + $0x48] sm:$0xff]
      %v188 = vld [vmem:[%s1 + $0x50] sm:$0xff]
      %v189 = vld [vmem:[%s1 + $0x58] sm:$0xff]
      %v190 = vld [vmem:[%s1 + $0x60] sm:$0xff]
      %v191 = vld [vmem:[%s1 + $0x68] sm:$0xff]
      %v192 = vld [vmem:[%s1 + $0x70] sm:$0xff]
      %v193 = vld [vmem:[%s1 + $0x78] sm:$0xff]
      %v194 = vld [vmem:[%s1 + $0x80] sm:$0xff]
      %v195 = vld [vmem:[%s1 + $0x88] sm:$0xff]
      %v196 = vld [vmem:[%s1 + $0x90] sm:$0xff]
      %v197 = vld [vmem:[%s1 + $0x98] sm:$0xff]
      %v198 = vld [vmem:[%s1 + $0xa0] sm:$0xff]
      %v199 = vld [vmem:[%s1 + $0xa8] sm:$0xff]
      %v200 = vld [vmem:[%s1 + $0xb0] sm:$0xff]
      %v201 = vld [vmem:[%s1 + $0xb8] sm:$0xff]
      %v202 = vld [vmem:[%s1 + $0xc0] sm:$0xff]
      %v203 = vld [vmem:[%s1 + $0xc8] sm:$0xff]
      %v204 = vld [vmem:[%s1 + $0xd0] sm:$0xff]
      %v205 = vld [vmem:[%s1 + $0xd8] sm:$0xff]
      %v206 = vld [vmem:[%s1 + $0xe0] sm:$0xff]
      %v207 = vld [vmem:[%s1 + $0xe8] sm:$0xff]
      %v208 = vld [vmem:[%s1 + $0xf0] sm:$0xff]
      %v209 = vld [vmem:[%s1 + $0xf8] sm:$0xff]
      %v210 = vld [vmem:[%s1 + $0x100] sm:$0xff]
      %v211 = vld [vmem:[%s1 + $0x108] sm:$0xff]
      %v212 = vld [vmem:[%s1 + $0x110] sm:$0xff]
      %v213 = vld [vmem:[%s1 + $0x118] sm:$0xff]
      %v214 = vld [vmem:[%s1 + $0x120] sm:$0xff]
      %v215 = vld [vmem:[%s1 + $0x128] sm:$0xff]
      %v216 = vld [vmem:[%s1 + $0x130] sm:$0xff]
      %v217 = vld [vmem:[%s1 + $0x138] sm:$0xff]
      %v218 = vld [vmem:[%s1 + $0x140] sm:$0xff]
      %v219 = vld [vmem:[%s1 + $0x148] sm:$0xff]
      %v220 = vld [vmem:[%s1 + $0x150] sm:$0xff]
      %v221 = vld [vmem:[%s1 + $0x158] sm:$0xff]
      %v222 = vld [vmem:[%s1 + $0x160] sm:$0xff]
      %v223 = vld [vmem:[%s1 + $0x168] sm:$0xff]
      %v224 = vld [vmem:[%s1 + $0x170] sm:$0xff]
      %v225 = vld [vmem:[%s1 + $0x178] sm:$0xff]
      %v226 = vld [vmem:[%s1 + $0x180] sm:$0xff]
      %v227 = vld [vmem:[%s1 + $0x188] sm:$0xff]
      %v228 = vld [vmem:[%s1 + $0x190] sm:$0xff]
      %v229 = vld [vmem:[%s1 + $0x198] sm:$0xff]
      %v230 = vld [vmem:[%s1 + $0x1a0] sm:$0xff]
      %v231 = vld [vmem:[%s1 + $0x1a8] sm:$0xff]
      %v232 = vld [vmem:[%s1 + $0x1b0] sm:$0xff]
      %v233 = vld [vmem:[%s1 + $0x1b8] sm:$0xff]
      %v234 = vld [vmem:[%s1 + $0x1c0] sm:$0xff]
      %v235 = vld [vmem:[%s1 + $0x1c8] sm:$0xff]
      %v236 = vld [vmem:[%s1 + $0x1d0] sm:$0xff]
      %v237 = vld [vmem:[%s1 + $0x1d8] sm:$0xff]
      %v238 = vld [vmem:[%s1 + $0x1e0] sm:$0xff]
      %v239 = vld [vmem:[%s1 + $0x1e8] sm:$0xff]
      %v240 = vld [vmem:[%s1 + $0x1f0] sm:$0xff]
      %v241 = vld [vmem:[%s1 + $0x1f8] sm:$0xff]
      %v242 = vld [vmem:[%s1 + $0x200] sm:$0xff]
      %v243 = vld [vmem:[%s1 + $0x208] sm:$0xff]
      %v244 = vld [vmem:[%s1 + $0x210] sm:$0xff]
      %v245 = vld [vmem:[%s1 + $0x218] sm:$0xff]
      %v246 = vld [vmem:[%s1 + $0x220] sm:$0xff]
      %v247 = vld [vmem:[%s1 + $0x228] sm:$0xff]
      %v248 = vld [vmem:[%s1 + $0x230] sm:$0xff]
      %v249 = vld [vmem:[%s1 + $0x238] sm:$0xff]
      %v250 = vld [vmem:[%s1 + $0x240] sm:$0xff]
      %v251 = vld [vmem:[%s1 + $0x248] sm:$0xff]
      %v252 = vld [vmem:[%s1 + $0x250] sm:$0xff]
      %v253 = vld [vmem:[%s1 + $0x258] sm:$0xff]
      %v254 = vld [vmem:[%s1 + $0x260] sm:$0xff]
      %v255 = vld [vmem:[%s1 + $0x268] sm:$0xff]
      %v256 = vld [vmem:[%s1 + $0x270] sm:$0xff]
      %v257 = vld [vmem:[%s1 + $0x278] sm:$0xff]
      %v258 = vld [vmem:[%s1 + $0x280] sm:$0xff]
      %v259 = vld [vmem:[%s1 + $0x288] sm:$0xff]
      %v260 = vld [vmem:[%s1 + $0x290] sm:$0xff]
      %v261 = vld [vmem:[%s1 + $0x298] sm:$0xff]
      %v262 = vld [vmem:[%s1 + $0x2a0] sm:$0xff]
      %v263 = vld [vmem:[%s1 + $0x2a8] sm:$0xff]
      %v264 = vld [vmem:[%s1 + $0x2b0] sm:$0xff]
      %v265 = vld [vmem:[%s1 + $0x2b8] sm:$0xff]
      %v266 = vld [vmem:[%s1 + $0x2c0] sm:$0xff]
      %v267 = vld [vmem:[%s1 + $0x2c8] sm:$0xff]
      %v268 = vld [vmem:[%s1 + $0x2d0] sm:$0xff]
      %v269 = vld [vmem:[%s1 + $0x2d8] sm:$0xff]
      %v270 = vld [vmem:[%s1 + $0x2e0] sm:$0xff]
      %v271 = vld [vmem:[%s1 + $0x2e8] sm:$0xff]
      %v272 = vld [vmem:[%s1 + $0x2f0] sm:$0xff]
      %v273 = vld [vmem:[%s1 + $0x2f8] sm:$0xff]
      %v274 = vld [vmem:[%s1 + $0x300] sm:$0xff]
      %v275 = vld [vmem:[%s1 + $0x308] sm:$0xff]
      %v276 = vld [vmem:[%s1 + $0x310] sm:$0xff]
      %v277 = vld [vmem:[%s1 + $0x318] sm:$0xff]
      %v278 = vld [vmem:[%s1 + $0x320] sm:$0xff]
      %v279 = vld [vmem:[%s1 + $0x328] sm:$0xff]
      %v280 = vld [vmem:[%s1 + $0x330] sm:$0xff]
      %v281 = vld [vmem:[%s1 + $0x338] sm:$0xff]
      %v282 = vld [vmem:[%s1 + $0x340] sm:$0xff]
      %v283 = vld [vmem:[%s1 + $0x348] sm:$0xff]
      %v284 = vld [vmem:[%s1 + $0x350] sm:$0xff]
      %v285 = vld [vmem:[%s1 + $0x358] sm:$0xff]
      %v286 = vld [vmem:[%s1 + $0x360] sm:$0xff]
      %v287 = vld [vmem:[%s1 + $0x368] sm:$0xff]
      %v288 = vld [vmem:[%s1 + $0x370] sm:$0xff]
      %v289 = vld [vmem:[%s1 + $0x378] sm:$0xff]
      %v290 = vld [vmem:[%s1 + $0x380] sm:$0xff]
      %v291 = vld [vmem:[%s1 + $0x388] sm:$0xff]
      %v292 = vld [vmem:[%s1 + $0x390] sm:$0xff]
      %v293 = vld [vmem:[%s1 + $0x398] sm:$0xff]
      %v294 = vld [vmem:[%s1 + $0x3a0] sm:$0xff]
      %v295 = vld [vmem:[%s1 + $0x3a8] sm:$0xff]
      %v296 = vld [vmem:[%s1 + $0x3b0] sm:$0xff]
      %v297 = vld [vmem:[%s1 + $0x3b8] sm:$0xff]
      %v298 = vld [vmem:[%s1 + $0x3c0] sm:$0xff]
      %v299 = vld [vmem:[%s1 + $0x3c8] sm:$0xff]
      %v300 = vld [vmem:[%s1 + $0x3d0] sm:$0xff]
      %v301 = vld [vmem:[%s1 + $0x3d8] sm:$0xff]
      %v302 = vld [vmem:[%s1 + $0x3e0] sm:$0xff]
      %v303 = vld [vmem:[%s1 + $0x3e8] sm:$0xff]
      %v304 = vld [vmem:[%s1 + $0x3f0] sm:$0xff]
      %v305 = vld [vmem:[%s1 + $0x3f8] sm:$0xff]
      %v306 = vld [vmem:[%s1 + $0x400] sm:$0xff]
      %v307 = vld [vmem:[%s1 + $0x408] sm:$0xff]
      %v308 = vld [vmem:[%s1 + $0x410] sm:$0xff]
      %v309 = vld [vmem:[%s1 + $0x418] sm:$0xff]
      %v310 = vld [vmem:[%s1 + $0x420] sm:$0xff]
      %v311 = vld [vmem:[%s1 + $0x428] sm:$0xff]
      %v312 = vld [vmem:[%s1 + $0x430] sm:$0xff]
      %v313 = vld [vmem:[%s1 + $0x438] sm:$0xff]
      %v314 = vld [vmem:[%s1 + $0x440] sm:$0xff]
      %v315 = vld [vmem:[%s1 + $0x448] sm:$0xff]
      %v316 = vld [vmem:[%s1 + $0x450] sm:$0xff]
      %v317 = vld [vmem:[%s1 + $0x458] sm:$0xff]
      %v318 = vld [vmem:[%s1 + $0x460] sm:$0xff]
      %v319 = vld [vmem:[%s1 + $0x468] sm:$0xff]
      %v320 = vld [vmem:[%s1 + $0x470] sm:$0xff]
      %v321 = vld [vmem:[%s1 + $0x478] sm:$0xff]
      %v322 = vld [vmem:[%s1 + $0x480] sm:$0xff]
      %v323 = vld [vmem:[%s1 + $0x488] sm:$0xff]
      %v324 = vld [vmem:[%s1 + $0x490] sm:$0xff]
      %v325 = vld [vmem:[%s1 + $0x498] sm:$0xff]
      %v326 = vld [vmem:[%s1 + $0x4a0] sm:$0xff]
      %v327 = vld [vmem:[%s1 + $0x4a8] sm:$0xff]
      %v328 = vld [vmem:[%s1 + $0x4b0] sm:$0xff]
      %v329 = vld [vmem:[%s1 + $0x4b8] sm:$0xff]
      %v330 = vld [vmem:[%s1 + $0x4c0] sm:$0xff]
      %v331 = vld [vmem:[%s1 + $0x4c8] sm:$0xff]
      %v332 = vld [vmem:[%s1 + $0x4d0] sm:$0xff]
      %v333 = vld [vmem:[%s1 + $0x4d8] sm:$0xff]
      %v334 = vld [vmem:[%s1 + $0x4e0] sm:$0xff]
      %v335 = vld [vmem:[%s1 + $0x4e8] sm:$0xff]
      %v336 = vld [vmem:[%s1 + $0x4f0] sm:$0xff]
      %v337 = vld [vmem:[%s1 + $0x4f8] sm:$0xff]
      %v338 = vld [vmem:[%s1 + $0x500] sm:$0xff]
      %v339 = vld [vmem:[%s1 + $0x508] sm:$0xff]
      %v340 = vld [vmem:[%s1 + $0x510] sm:$0xff]
      %v341 = vld [vmem:[%s1 + $0x518] sm:$0xff]
      %v342 = vld [vmem:[%s1 + $0x520] sm:$0xff]
      %v343 = vld [vmem:[%s1 + $0x528] sm:$0xff]
      %v344 = vld [vmem:[%s1 + $0x530] sm:$0xff]
      %v345 = vld [vmem:[%s1 + $0x538] sm:$0xff]
      %v346 = vld [vmem:[%s1 + $0x540] sm:$0xff]
      %v347 = vld [vmem:[%s1 + $0x548] sm:$0xff]
      %v348 = vld [vmem:[%s1 + $0x550] sm:$0xff]
      %v349 = vld [vmem:[%s1 + $0x558] sm:$0xff]
      %v350 = vld [vmem:[%s1 + $0x560] sm:$0xff]
      %v351 = vld [vmem:[%s1 + $0x568] sm:$0xff]
      %v352 = vld [vmem:[%s1 + $0x570] sm:$0xff]
      %v353 = vld [vmem:[%s1 + $0x578] sm:$0xff]
      %v354 = vld [vmem:[%s1 + $0x580] sm:$0xff]
      %v355 = vld [vmem:[%s1 + $0x588] sm:$0xff]
      %v356 = vld [vmem:[%s1 + $0x590] sm:$0xff]
      %v357 = vld [vmem:[%s1 + $0x598] sm:$0xff]
      %v358 = vld [vmem:[%s1 + $0x5a0] sm:$0xff]
      %v359 = vld [vmem:[%s1 + $0x5a8] sm:$0xff]
      %v360 = vld [vmem:[%s1 + $0x5b0] sm:$0xff]
      %v361 = vld [vmem:[%s1 + $0x5b8] sm:$0xff]
      %v362 = vld [vmem:[%s1 + $0x5c0] sm:$0xff]
      %v363 = vld [vmem:[%s1 + $0x5c8] sm:$0xff]
      %v364 = vld [vmem:[%s1 + $0x5d0] sm:$0xff]
      %v365 = vld [vmem:[%s1 + $0x5d8] sm:$0xff]
      %v366 = vld [vmem:[%s1 + $0x5e0] sm:$0xff]
      %v367 = vld [vmem:[%s1 + $0x5e8] sm:$0xff]
      %v368 = vld [vmem:[%s1 + $0x5f0] sm:$0xff]
      %v369 = vld [vmem:[%s1 + $0x5f8] sm:$0xff]
      %v370 = vld [vmem:[%s1 + $0x600] sm:$0xff]
      %v371 = vld [vmem:[%s1 + $0x608] sm:$0xff]
      %v372 = vld [vmem:[%s1 + $0x610] sm:$0xff]
      %v373 = vld [vmem:[%s1 + $0x618] sm:$0xff]
      %v374 = vld [vmem:[%s1 + $0x620] sm:$0xff]
      %v375 = vld [vmem:[%s1 + $0x628] sm:$0xff]
      %v376 = vld [vmem:[%s1 + $0x630] sm:$0xff]
      %v377 = vld [vmem:[%s1 + $0x638] sm:$0xff]
      %v378 = vld [vmem:[%s1 + $0x640] sm:$0xff]
      %v379 = vld [vmem:[%s1 + $0x648] sm:$0xff]
      %v380 = vld [vmem:[%s1 + $0x650] sm:$0xff]
      %v381 = vld [vmem:[%s1 + $0x658] sm:$0xff]
      %v382 = vld [vmem:[%s1 + $0x660] sm:$0xff]
      %v383 = vld [vmem:[%s1 + $0x668] sm:$0xff]
      %v384 = vld [vmem:[%s1 + $0x670] sm:$0xff]
      %v385 = vld [vmem:[%s1 + $0x678] sm:$0xff]
      %v386 = vld [vmem:[%s1 + $0x680] sm:$0xff]
      %v387 = vld [vmem:[%s1 + $0x688] sm:$0xff]
      %v388 = vld [vmem:[%s1 + $0x690] sm:$0xff]
      %v389 = vld [vmem:[%s1 + $0x698] sm:$0xff]
      %v390 = vld [vmem:[%s1 + $0x6a0] sm:$0xff]
      %v391 = vld [vmem:[%s1 + $0x6a8] sm:$0xff]
      %v392 = vld [vmem:[%s1 + $0x6b0] sm:$0xff]
      %v393 = vld [vmem:[%s1 + $0x6b8] sm:$0xff]
      %v394 = vld [vmem:[%s1 + $0x6c0] sm:$0xff]
      %v395 = vld [vmem:[%s1 + $0x6c8] sm:$0xff]
      %v396 = vld [vmem:[%s1 + $0x6d0] sm:$0xff]
      %v397 = vld [vmem:[%s1 + $0x6d8] sm:$0xff]
      %v398 = vld [vmem:[%s1 + $0x6e0] sm:$0xff]
      %v399 = vld [vmem:[%s1 + $0x6e8] sm:$0xff]
      %v400 = vld [vmem:[%s1 + $0x6f0] sm:$0xff]
      %v401 = vld [vmem:[%s1 + $0x6f8] sm:$0xff]
      %v402 = vld [vmem:[%s1 + $0x700] sm:$0xff]
      %v403 = vld [vmem:[%s1 + $0x708] sm:$0xff]
      %v404 = vld [vmem:[%s1 + $0x710] sm:$0xff]
      %v405 = vld [vmem:[%s1 + $0x718] sm:$0xff]
      %v406 = vld [vmem:[%s1 + $0x720] sm:$0xff]
      %v407 = vld [vmem:[%s1 + $0x728] sm:$0xff]
      %v408 = vld [vmem:[%s1 + $0x730] sm:$0xff]
      %v409 = vld [vmem:[%s1 + $0x738] sm:$0xff]
      %v410 = vld [vmem:[%s1 + $0x740] sm:$0xff]
      %v411 = vld [vmem:[%s1 + $0x748] sm:$0xff]
      %v412 = vld [vmem:[%s1 + $0x750] sm:$0xff]
      %v413 = vld [vmem:[%s1 + $0x758] sm:$0xff]
      %v414 = vld [vmem:[%s1 + $0x760] sm:$0xff]
      %v415 = vld [vmem:[%s1 + $0x768] sm:$0xff]
      %v416 = vld [vmem:[%s1 + $0x770] sm:$0xff]
      %v417 = vld [vmem:[%s1 + $0x778] sm:$0xff]
      %v418 = vld [vmem:[%s1 + $0x780] sm:$0xff]
      %v419 = vld [vmem:[%s1 + $0x788] sm:$0xff]
      %v420 = vld [vmem:[%s1 + $0x790] sm:$0xff]
      %v421 = vld [vmem:[%s1 + $0x798] sm:$0xff]
      %v422 = vld [vmem:[%s1 + $0x7a0] sm:$0xff]
      %v423 = vld [vmem:[%s1 + $0x7a8] sm:$0xff]
      %v424 = vld [vmem:[%s1 + $0x7b0] sm:$0xff]
      %v425 = vld [vmem:[%s1 + $0x7b8] sm:$0xff]
      %v426 = vld [vmem:[%s1 + $0x7c0] sm:$0xff]
      %v427 = vld [vmem:[%s1 + $0x7c8] sm:$0xff]
      %v428 = vld [vmem:[%s1 + $0x7d0] sm:$0xff]
      %v429 = vld [vmem:[%s1 + $0x7d8] sm:$0xff]
      %v430 = vld [vmem:[%s1 + $0x7e0] sm:$0xff]
      %v431 = vld [vmem:[%s1 + $0x7e8] sm:$0xff]
      %v432 = vld [vmem:[%s1 + $0x7f0] sm:$0xff]
      %v433 = vld [vmem:[%s1 + $0x7f8] sm:$0xff]
      %v434 = vld [vmem:[%s1 + $0x800] sm:$0xff]
      %v435 = vld [vmem:[%s1 + $0x808] sm:$0xff]
      %v436 = vld [vmem:[%s1 + $0x810] sm:$0xff]
      %v437 = vld [vmem:[%s1 + $0x818] sm:$0xff]
      %v438 = vld [vmem:[%s1 + $0x820] sm:$0xff]
      %v439 = vld [vmem:[%s1 + $0x828] sm:$0xff]
      %v440 = vld [vmem:[%s1 + $0x830] sm:$0xff]
      %v441 = vld [vmem:[%s1 + $0x838] sm:$0xff]
      %v442 = vld [vmem:[%s1 + $0x840] sm:$0xff]
      %v443 = vld [vmem:[%s1 + $0x848] sm:$0xff]
      %v444 = vld [vmem:[%s1 + $0x850] sm:$0xff]
      %v445 = vld [vmem:[%s1 + $0x858] sm:$0xff]
      %v446 = vld [vmem:[%s1 + $0x860] sm:$0xff]
      %v447 = vld [vmem:[%s1 + $0x868] sm:$0xff]
      %v448 = vld [vmem:[%s1 + $0x870] sm:$0xff]
      %v449 = vld [vmem:[%s1 + $0x878] sm:$0xff]
      %v450 = vld [vmem:[%s1 + $0x880] sm:$0xff]
      %v451 = vld [vmem:[%s1 + $0x888] sm:$0xff]
      %v452 = vld [vmem:[%s1 + $0x890] sm:$0xff]
      %v453 = vld [vmem:[%s1 + $0x898] sm:$0xff]
      %v454 = vld [vmem:[%s1 + $0x8a0] sm:$0xff]
      %v455 = vld [vmem:[%s1 + $0x8a8] sm:$0xff]
      %v456 = vld [vmem:[%s1 + $0x8b0] sm:$0xff]
      %v457 = vld [vmem:[%s1 + $0x8b8] sm:$0xff]
      %v458 = vld [vmem:[%s1 + $0x8c0] sm:$0xff]
      %v459 = vld [vmem:[%s1 + $0x8c8] sm:$0xff]
      %v460 = vld [vmem:[%s1 + $0x8d0] sm:$0xff]
      %v461 = vld [vmem:[%s1 + $0x8d8] sm:$0xff]
      %v462 = vld [vmem:[%s1 + $0x8e0] sm:$0xff]
      %v463 = vld [vmem:[%s1 + $0x8e8] sm:$0xff]
      %v464 = vld [vmem:[%s1 + $0x8f0] sm:$0xff]
      %v465 = vld [vmem:[%s1 + $0x8f8] sm:$0xff]
      %v466 = vld [vmem:[%s1 + $0x900] sm:$0xff]
      %v467 = vld [vmem:[%s1 + $0x908] sm:$0xff]
      %v468 = vld [vmem:[%s1 + $0x910] sm:$0xff]
      %v469 = vld [vmem:[%s1 + $0x918] sm:$0xff]
      %v470 = vld [vmem:[%s1 + $0x920] sm:$0xff]
      %v471 = vld [vmem:[%s1 + $0x928] sm:$0xff]
      %v472 = vld [vmem:[%s1 + $0x930] sm:$0xff]
      %v473 = vld [vmem:[%s1 + $0x938] sm:$0xff]
      %v474 = vld [vmem:[%s1 + $0x940] sm:$0xff]
      %v475 = vld [vmem:[%s1 + $0x948] sm:$0xff]
      %v476 = vld [vmem:[%s1 + $0x950] sm:$0xff]
      %v477 = vld [vmem:[%s1 + $0x958] sm:$0xff]
      %v478 = vld [vmem:[%s1 + $0x960] sm:$0xff]
      %v479 = vld [vmem:[%s1 + $0x968] sm:$0xff]
      %v480 = vld [vmem:[%s1 + $0x970] sm:$0xff]
      %v481 = vld [vmem:[%s1 + $0x978] sm:$0xff]
      %v482 = vld [vmem:[%s1 + $0x980] sm:$0xff]
      %v483 = vld [vmem:[%s1 + $0x988] sm:$0xff]
      %v484 = vld [vmem:[%s1 + $0x990] sm:$0xff]
      %v485 = vld [vmem:[%s1 + $0x998] sm:$0xff]
      %v486 = vld [vmem:[%s1 + $0x9a0] sm:$0xff]
      %v487 = vld [vmem:[%s1 + $0x9a8] sm:$0xff]
      %v488 = vld [vmem:[%s1 + $0x9b0] sm:$0xff]
      %v489 = vld [vmem:[%s1 + $0x9b8] sm:$0xff]
      %v490 = vld [vmem:[%s1 + $0x9c0] sm:$0xff]
      %v491 = vld [vmem:[%s1 + $0x9c8] sm:$0xff]
      %v492 = vld [vmem:[%s1 + $0x9d0] sm:$0xff]
      %v493 = vld [vmem:[%s1 + $0x9d8] sm:$0xff]
      %v494 = vld [vmem:[%s1 + $0x9e0] sm:$0xff]
      %v495 = vld [vmem:[%s1 + $0x9e8] sm:$0xff]
      %v496 = vld [vmem:[%s1 + $0x9f0] sm:$0xff]
      %v497 = vld [vmem:[%s1 + $0x9f8] sm:$0xff]
      %v498 = vld [vmem:[%s1 + $0xa00] sm:$0xff]
      %v499 = vld [vmem:[%s1 + $0xa08] sm:$0xff]
      %v500 = vld [vmem:[%s1 + $0xa10] sm:$0xff]
      %v501 = vld [vmem:[%s1 + $0xa18] sm:$0xff]
      %v502 = vld [vmem:[%s1 + $0xa20] sm:$0xff]
      %v503 = vld [vmem:[%s1 + $0xa28] sm:$0xff]
      %v504 = vld [vmem:[%s1 + $0xa30] sm:$0xff]
      %v505 = vld [vmem:[%s1 + $0xa38] sm:$0xff]
      %v506 = vld [vmem:[%s1 + $0xa40] sm:$0xff]
      %v507 = vld [vmem:[%s1 + $0xa48] sm:$0xff]
      %v508 = vld [vmem:[%s1 + $0xa50] sm:$0xff]
      %v509 = vld [vmem:[%s1 + $0xa58] sm:$0xff]
      %v510 = vld [vmem:[%s1 + $0xa60] sm:$0xff]
      %v511 = vld [vmem:[%s1 + $0xa68] sm:$0xff]
      %v512 = vld [vmem:[%s1 + $0xa70] sm:$0xff]
      %v513 = vld [vmem:[%s1 + $0xa78] sm:$0xff]
      %v514 = vld [vmem:[%s1 + $0xa80] sm:$0xff]
      %v515 = vld [vmem:[%s1 + $0xa88] sm:$0xff]
      %v516 = vld [vmem:[%s1 + $0xa90] sm:$0xff]
      %v517 = vld [vmem:[%s1 + $0xa98] sm:$0xff]
      %v518 = vld [vmem:[%s1 + $0xaa0] sm:$0xff]
      %v519 = vld [vmem:[%s1 + $0xaa8] sm:$0xff]
      %v520 = vld [vmem:[%s1 + $0xab0] sm:$0xff]
      %v521 = vld [vmem:[%s1 + $0xab8] sm:$0xff]
      %v522 = vld [vmem:[%s1 + $0xac0] sm:$0xff]
      %v523 = vld [vmem:[%s1 + $0xac8] sm:$0xff]
      %v524 = vld [vmem:[%s1 + $0xad0] sm:$0xff]
      %v525 = vld [vmem:[%s1 + $0xad8] sm:$0xff]
      %v526 = vld [vmem:[%s1 + $0xae0] sm:$0xff]
      %v527 = vld [vmem:[%s1 + $0xae8] sm:$0xff]
      %v528 = vld [vmem:[%s1 + $0xaf0] sm:$0xff]
      %v529 = vld [vmem:[%s1 + $0xaf8] sm:$0xff]
      %v530 = vld [vmem:[%s1 + $0xb00] sm:$0xff]
      %v531 = vld [vmem:[%s1 + $0xb08] sm:$0xff]
      %v532 = vld [vmem:[%s1 + $0xb10] sm:$0xff]
      %v533 = vld [vmem:[%s1 + $0xb18] sm:$0xff]
      %v534 = vld [vmem:[%s1 + $0xb20] sm:$0xff]
      %v535 = vld [vmem:[%s1 + $0xb28] sm:$0xff]
      %v536 = vld [vmem:[%s1 + $0xb30] sm:$0xff]
      %v537 = vld [vmem:[%s1 + $0xb38] sm:$0xff]
      %v538 = vld [vmem:[%s1 + $0xb40] sm:$0xff]
      %v539 = vld [vmem:[%s1 + $0xb48] sm:$0xff]
      %v540 = vld [vmem:[%s1 + $0xb50] sm:$0xff]
      %v541 = vld [vmem:[%s1 + $0xb58] sm:$0xff]
      %v542 = vld [vmem:[%s1 + $0xb60] sm:$0xff]
      %v543 = vld [vmem:[%s1 + $0xb68] sm:$0xff]
      %v544 = vld [vmem:[%s1 + $0xb70] sm:$0xff]
      %v545 = vld [vmem:[%s1 + $0xb78] sm:$0xff]
      %v546 = vld [vmem:[%s1 + $0xb80] sm:$0xff]
      %v547 = vld [vmem:[%s1 + $0xb88] sm:$0xff]
      %v548 = vld [vmem:[%s1 + $0xb90] sm:$0xff]
      %v549 = vld [vmem:[%s1 + $0xb98] sm:$0xff]
      %v550 = vld [vmem:[%s1 + $0xba0] sm:$0xff]
      %v551 = vld [vmem:[%s1 + $0xba8] sm:$0xff]
      %v552 = vld [vmem:[%s1 + $0xbb0] sm:$0xff]
      %v553 = vld [vmem:[%s1 + $0xbb8] sm:$0xff]
      %v554 = vld [vmem:[%s1 + $0xbc0] sm:$0xff]
      %v555 = vld [vmem:[%s1 + $0xbc8] sm:$0xff]
      %v556 = vld [vmem:[%s1 + $0xbd0] sm:$0xff]
      %v557 = vld [vmem:[%s1 + $0xbd8] sm:$0xff]
      %v558 = vld [vmem:[%s1 + $0xbe0] sm:$0xff]
      %v559 = vld [vmem:[%s1 + $0xbe8] sm:$0xff]
      %v560 = vld [vmem:[%s1 + $0xbf0] sm:$0xff]
      %v561 = vld [vmem:[%s1 + $0xbf8] sm:$0xff]
      %v562 = vld [vmem:[%s1 + $0xc00] sm:$0xff]
      %v563 = vld [vmem:[%s1 + $0xc08] sm:$0xff]
      %v564 = vld [vmem:[%s1 + $0xc10] sm:$0xff]
      %v565 = vld [vmem:[%s1 + $0xc18] sm:$0xff]
      %v566 = vld [vmem:[%s1 + $0xc20] sm:$0xff]
      %v567 = vld [vmem:[%s1 + $0xc28] sm:$0xff]
      %v568 = vld [vmem:[%s1 + $0xc30] sm:$0xff]
      %v569 = vld [vmem:[%s1 + $0xc38] sm:$0xff]
      %v570 = vld [vmem:[%s1 + $0xc40] sm:$0xff]
      %v571 = vld [vmem:[%s1 + $0xc48] sm:$0xff]
      %v572 = vld [vmem:[%s1 + $0xc50] sm:$0xff]
      %v573 = vld [vmem:[%s1 + $0xc58] sm:$0xff]
      %v574 = vld [vmem:[%s1 + $0xc60] sm:$0xff]
      %v575 = vld [vmem:[%s1 + $0xc68] sm:$0xff]
      %v576 = vld [vmem:[%s1 + $0xc70] sm:$0xff]
      %v577 = vld [vmem:[%s1 + $0xc78] sm:$0xff]
      %v578 = vld [vmem:[%s1 + $0xc80] sm:$0xff]
      %v579 = vld [vmem:[%s1 + $0xc88] sm:$0xff]
      %v580 = vld [vmem:[%s1 + $0xc90] sm:$0xff]
      %v581 = vld [vmem:[%s1 + $0xc98] sm:$0xff]
      %v582 = vld [vmem:[%s1 + $0xca0] sm:$0xff]
      %v583 = vld [vmem:[%s1 + $0xca8] sm:$0xff]
      %v584 = vld [vmem:[%s1 + $0xcb0] sm:$0xff]
      %v585 = vld [vmem:[%s1 + $0xcb8] sm:$0xff]
      %v586 = vld [vmem:[%s1 + $0xcc0] sm:$0xff]
      %v587 = vld [vmem:[%s1 + $0xcc8] sm:$0xff]
      %v588 = vld [vmem:[%s1 + $0xcd0] sm:$0xff]
      %v589 = vld [vmem:[%s1 + $0xcd8] sm:$0xff]
      %v590 = vld [vmem:[%s1 + $0xce0] sm:$0xff]
      %v591 = vld [vmem:[%s1 + $0xce8] sm:$0xff]
      %v592 = vld [vmem:[%s1 + $0xcf0] sm:$0xff]
      %v593 = vld [vmem:[%s1 + $0xcf8] sm:$0xff]
      %v594 = vld [vmem:[%s1 + $0xd00] sm:$0xff]
      %v595 = vld [vmem:[%s1 + $0xd08] sm:$0xff]
      %v596 = vld [vmem:[%s1 + $0xd10] sm:$0xff]
      %v597 = vld [vmem:[%s1 + $0xd18] sm:$0xff]
      %v598 = vld [vmem:[%s1 + $0xd20] sm:$0xff]
      %v599 = vld [vmem:[%s1 + $0xd28] sm:$0xff]
      %v600 = vld [vmem:[%s1 + $0xd30] sm:$0xff]
      %v601 = vld [vmem:[%s1 + $0xd38] sm:$0xff]
      %v602 = vld [vmem:[%s1 + $0xd40] sm:$0xff]
      %v603 = vld [vmem:[%s1 + $0xd48] sm:$0xff]
      %v604 = vld [vmem:[%s1 + $0xd50] sm:$0xff]
      %v605 = vld [vmem:[%s1 + $0xd58] sm:$0xff]
      %v606 = vld [vmem:[%s1 + $0xd60] sm:$0xff]
      %v607 = vld [vmem:[%s1 + $0xd68] sm:$0xff]
      %v608 = vld [vmem:[%s1 + $0xd70] sm:$0xff]
      %v609 = vld [vmem:[%s1 + $0xd78] sm:$0xff]
      %v610 = vld [vmem:[%s1 + $0xd80] sm:$0xff]
      %v611 = vld [vmem:[%s1 + $0xd88] sm:$0xff]
      %v612 = vld [vmem:[%s1 + $0xd90] sm:$0xff]
      %v613 = vld [vmem:[%s1 + $0xd98] sm:$0xff]
      %v614 = vld [vmem:[%s1 + $0xda0] sm:$0xff]
      %v615 = vld [vmem:[%s1 + $0xda8] sm:$0xff]
      %v616 = vld [vmem:[%s1 + $0xdb0] sm:$0xff]
      %v617 = vld [vmem:[%s1 + $0xdb8] sm:$0xff]
      %v618 = vld [vmem:[%s1 + $0xdc0] sm:$0xff]
      %v619 = vld [vmem:[%s1 + $0xdc8] sm:$0xff]
      %v620 = vld [vmem:[%s1 + $0xdd0] sm:$0xff]
      %v621 = vld [vmem:[%s1 + $0xdd8] sm:$0xff]
      %v622 = vld [vmem:[%s1 + $0xde0] sm:$0xff]
      %v623 = vld [vmem:[%s1 + $0xde8] sm:$0xff]
      %v624 = vld [vmem:[%s1 + $0xdf0] sm:$0xff]
      %v625 = vld [vmem:[%s1 + $0xdf8] sm:$0xff]
      %v626 = vld [vmem:[%s1 + $0xe00] sm:$0xff]
      %v627 = vld [vmem:[%s1 + $0xe08] sm:$0xff]
      %v628 = vld [vmem:[%s1 + $0xe10] sm:$0xff]
      %v629 = vld [vmem:[%s1 + $0xe18] sm:$0xff]
      %v630 = vld [vmem:[%s1 + $0xe20] sm:$0xff]
      %v631 = vld [vmem:[%s1 + $0xe28] sm:$0xff]
      %v632 = vld [vmem:[%s1 + $0xe30] sm:$0xff]
      %v633 = vld [vmem:[%s1 + $0xe38] sm:$0xff]
      %v634 = vld [vmem:[%s1 + $0xe40] sm:$0xff]
      %v635 = vld [vmem:[%s1 + $0xe48] sm:$0xff]
      %v636 = vld [vmem:[%s1 + $0xe50] sm:$0xff]
      %v637 = vld [vmem:[%s1 + $0xe58] sm:$0xff]
      %v638 = vld [vmem:[%s1 + $0xe60] sm:$0xff]
      %v639 = vld [vmem:[%s1 + $0xe68] sm:$0xff]
      %v640 = vld [vmem:[%s1 + $0xe70] sm:$0xff]
      %v641 = vld [vmem:[%s1 + $0xe78] sm:$0xff]
      %v642 = vld [vmem:[%s1 + $0xe80] sm:$0xff]
      %v643 = vld [vmem:[%s1 + $0xe88] sm:$0xff]
      %v644 = vld [vmem:[%s1 + $0xe90] sm:$0xff]
      %v645 = vld [vmem:[%s1 + $0xe98] sm:$0xff]
      %v646 = vld [vmem:[%s1 + $0xea0] sm:$0xff]
      %v647 = vld [vmem:[%s1 + $0xea8] sm:$0xff]
      %v648 = vld [vmem:[%s1 + $0xeb0] sm:$0xff]
      %v649 = vld [vmem:[%s1 + $0xeb8] sm:$0xff]
      %v650 = vld [vmem:[%s1 + $0xec0] sm:$0xff]
      %v651 = vld [vmem:[%s1 + $0xec8] sm:$0xff]
      %v652 = vld [vmem:[%s1 + $0xed0] sm:$0xff]
      %v653 = vld [vmem:[%s1 + $0xed8] sm:$0xff]
      %v654 = vld [vmem:[%s1 + $0xee0] sm:$0xff]
      %v655 = vld [vmem:[%s1 + $0xee8] sm:$0xff]
      %v656 = vld [vmem:[%s1 + $0xef0] sm:$0xff]
      %v657 = vld [vmem:[%s1 + $0xef8] sm:$0xff]
      %v658 = vld [vmem:[%s1 + $0xf00] sm:$0xff]
      %v659 = vld [vmem:[%s1 + $0xf08] sm:$0xff]
      %v660 = vld [vmem:[%s1 + $0xf10] sm:$0xff]
      %v661 = vld [vmem:[%s1 + $0xf18] sm:$0xff]
      %v662 = vld [vmem:[%s1 + $0xf20] sm:$0xff]
      %v663 = vld [vmem:[%s1 + $0xf28] sm:$0xff]
      %v664 = vld [vmem:[%s1 + $0xf30] sm:$0xff]
      %v665 = vld [vmem:[%s1 + $0xf38] sm:$0xff]
      %v666 = vld [vmem:[%s1 + $0xf40] sm:$0xff]
      %v667 = vld [vmem:[%s1 + $0xf48] sm:$0xff]
      %v668 = vld [vmem:[%s1 + $0xf50] sm:$0xff]
      %v669 = vld [vmem:[%s1 + $0xf58] sm:$0xff]
      %v670 = vld [vmem:[%s1 + $0xf60] sm:$0xff]
      %v671 = vld [vmem:[%s1 + $0xf68] sm:$0xff]
      %v672 = vld [vmem:[%s1 + $0xf70] sm:$0xff]
      %v673 = vld [vmem:[%s1 + $0xf78] sm:$0xff]
      %v674 = vld [vmem:[%s1 + $0xf80] sm:$0xff]
      %v675 = vld [vmem:[%s1 + $0xf88] sm:$0xff]
      %v676 = vld [vmem:[%s1 + $0xf90] sm:$0xff]
      %v677 = vld [vmem:[%s1 + $0xf98] sm:$0xff]
      %v678 = vld [vmem:[%s1 + $0xfa0] sm:$0xff]
      %v679 = vld [vmem:[%s1 + $0xfa8] sm:$0xff]
      %v680 = vld [vmem:[%s1 + $0xfb0] sm:$0xff]
      %v681 = vld [vmem:[%s1 + $0xfb8] sm:$0xff]
      %v682 = vld [vmem:[%s1 + $0xfc0] sm:$0xff]
      %v683 = vld [vmem:[%s1 + $0xfc8] sm:$0xff]
      %v684 = vld [vmem:[%s1 + $0xfd0] sm:$0xff]
      %v685 = vld [vmem:[%s1 + $0xfd8] sm:$0xff]
      %v686 = vld [vmem:[%s1 + $0xfe0] sm:$0xff]
      %v687 = vld [vmem:[%s1 + $0xfe8] sm:$0xff]
      %v688 = vld [vmem:[%s1 + $0xff0] sm:$0xff]
      %v689 = vld [vmem:[%s1 + $0xff8] sm:$0xff]
      %v690 = vld [vmem:[%s1 + $0x1000] sm:$0xff]
      %v691 = vld [vmem:[%s1 + $0x1008] sm:$0xff]
      %v692 = vld [vmem:[%s1 + $0x1010] sm:$0xff]
      %v693 = vld [vmem:[%s1 + $0x1018] sm:$0xff]
      %v694 = vld [vmem:[%s1 + $0x1020] sm:$0xff]
      %v695 = vld [vmem:[%s1 + $0x1028] sm:$0xff]
      %v696 = vld [vmem:[%s1 + $0x1030] sm:$0xff]
      %v697 = vld [vmem:[%s1 + $0x1038] sm:$0xff]
      %v698 = vld [vmem:[%s1 + $0x1040] sm:$0xff]
      %v699 = vld [vmem:[%s1 + $0x1048] sm:$0xff]
      %v700 = vld [vmem:[%s1 + $0x1050] sm:$0xff]
      %v701 = vld [vmem:[%s1 + $0x1058] sm:$0xff]
      %v702 = vld [vmem:[%s1 + $0x1060] sm:$0xff]
      %v703 = vld [vmem:[%s1 + $0x1068] sm:$0xff]
      %v704 = vld [vmem:[%s1 + $0x1070] sm:$0xff]
      %v705 = vld [vmem:[%s1 + $0x1078] sm:$0xff]
      %v706 = vld [vmem:[%s1 + $0x1080] sm:$0xff]
      %v707 = vld [vmem:[%s1 + $0x1088] sm:$0xff]
      %v708 = vld [vmem:[%s1 + $0x1090] sm:$0xff]
      %v709 = vld [vmem:[%s1 + $0x1098] sm:$0xff]
      %v710 = vld [vmem:[%s1 + $0x10a0] sm:$0xff]
      %v711 = vld [vmem:[%s1 + $0x10a8] sm:$0xff]
      %v712 = vld [vmem:[%s1 + $0x10b0] sm:$0xff]
      %v713 = vld [vmem:[%s1 + $0x10b8] sm:$0xff]
      %v714 = vld [vmem:[%s1 + $0x10c0] sm:$0xff]
      %v715 = vld [vmem:[%s1 + $0x10c8] sm:$0xff]
      %v716 = vld [vmem:[%s1 + $0x10d0] sm:$0xff]
      %v717 = vld [vmem:[%s1 + $0x10d8] sm:$0xff]
      %v718 = vld [vmem:[%s1 + $0x10e0] sm:$0xff]
      %v719 = vld [vmem:[%s1 + $0x10e8] sm:$0xff]
      %v720 = vld [vmem:[%s1 + $0x10f0] sm:$0xff]
      %v721 = vld [vmem:[%s1 + $0x10f8] sm:$0xff]
      %v722 = vld [vmem:[%s1 + $0x1100] sm:$0xff]
      %v723 = vld [vmem:[%s1 + $0x1108] sm:$0xff]
      %v724 = vld [vmem:[%s1 + $0x1110] sm:$0xff]
      %v725 = vld [vmem:[%s1 + $0x1118] sm:$0xff]
      %v726 = vld [vmem:[%s1 + $0x1120] sm:$0xff]
      %v727 = vld [vmem:[%s1 + $0x1128] sm:$0xff]
      %v728 = vld [vmem:[%s1 + $0x1130] sm:$0xff]
      %v729 = vld [vmem:[%s1 + $0x1138] sm:$0xff]
      %v730 = vld [vmem:[%s1 + $0x1140] sm:$0xff]
      %v731 = vld [vmem:[%s1 + $0x1148] sm:$0xff]
      %v732 = vld [vmem:[%s1 + $0x1150] sm:$0xff]
      %v733 = vld [vmem:[%s1 + $0x1158] sm:$0xff]
      %v734 = vld [vmem:[%s1 + $0x1160] sm:$0xff]
      %v735 = vld [vmem:[%s1 + $0x1168] sm:$0xff]
      %v736 = vld [vmem:[%s1 + $0x1170] sm:$0xff]
      %v737 = vld [vmem:[%s1 + $0x1178] sm:$0xff]
      %v738 = vld [vmem:[%s1 + $0x1180] sm:$0xff]
      %v739 = vld [vmem:[%s1 + $0x1188] sm:$0xff]
      %v740 = vld [vmem:[%s1 + $0x1190] sm:$0xff]
      %v741 = vld [vmem:[%s1 + $0x1198] sm:$0xff]
      %v742 = vld [vmem:[%s1 + $0x11a0] sm:$0xff]
      %v743 = vld [vmem:[%s1 + $0x11a8] sm:$0xff]
      %v744 = vld [vmem:[%s1 + $0x11b0] sm:$0xff]
      %v745 = vld [vmem:[%s1 + $0x11b8] sm:$0xff]
      %v746 = vld [vmem:[%s1 + $0x11c0] sm:$0xff]
      %v747 = vld [vmem:[%s1 + $0x11c8] sm:$0xff]
      %v748 = vld [vmem:[%s1 + $0x11d0] sm:$0xff]
      %v749 = vld [vmem:[%s1 + $0x11d8] sm:$0xff]
      %v750 = vld [vmem:[%s1 + $0x11e0] sm:$0xff]
      %v751 = vld [vmem:[%s1 + $0x11e8] sm:$0xff]
      %v752 = vld [vmem:[%s1 + $0x11f0] sm:$0xff]
      %v753 = vld [vmem:[%s1 + $0x11f8] sm:$0xff]
      %v763 = vunpack.c.l.b16 %v169
      %v764 = vunpack.c.h.b16 %v169
      %v765 = vunpack.c.l.b16 %v170
      %v766 = vunpack.c.h.b16 %v170
      %v767 = vunpack.c.l.b16 %v171
      %v768 = vunpack.c.h.b16 %v171
      %v769 = vunpack.c.l.b16 %v172
      %v770 = vunpack.c.h.b16 %v172
      %v771 = vunpack.c.l.b16 %v173
      %v772 = vunpack.c.h.b16 %v173
      %v773 = vunpack.c.l.b16 %v174
      %v774 = vunpack.c.h.b16 %v174
      %v775 = vunpack.c.l.b16 %v175
      %v776 = vunpack.c.h.b16 %v175
      %v777 = vunpack.c.l.b16 %v176
      %v778 = vunpack.c.h.b16 %v176
      %v779 = vunpack.c.l.b16 %v177
      %v780 = vunpack.c.h.b16 %v177
      %v781 = vpack.c.b16 %v763, %v763
      %v782 = vpack.c.b16 %v764, %v764
      %v783 = vpack.c.b16 %v765, %v765
      %v784 = vpack.c.b16 %v766, %v766
      %v785 = vpack.c.b16 %v767, %v767
      %v786 = vpack.c.b16 %v768, %v768
      %v787 = vpack.c.b16 %v769, %v769
      %v788 = vpack.c.b16 %v770, %v770
      %v789 = vpack.c.b16 %v771, %v771
      %v790 = vpack.c.b16 %v772, %v772
      %v791 = vpack.c.b16 %v773, %v773
      %v792 = vpack.c.b16 %v774, %v774
      %v793 = vpack.c.b16 %v775, %v775
      %v794 = vpack.c.b16 %v776, %v776
      %v795 = vpack.c.b16 %v777, %v777
      %v796 = vpack.c.b16 %v778, %v778
      %v797 = vpack.c.b16 %v779, %v779
      %v798 = vpack.c.b16 %v780, %v780
      %v1393 = vunpack.c.l.b16 %v178
      %v1394 = vunpack.c.h.b16 %v178
      %v1395 = vunpack.c.l.b16 %v179
      %v1396 = vunpack.c.h.b16 %v179
      %v1397 = vunpack.c.l.b16 %v180
      %v1398 = vunpack.c.h.b16 %v180
      %v1399 = vunpack.c.l.b16 %v181
      %v1400 = vunpack.c.h.b16 %v181
      %v1401 = vunpack.c.l.b16 %v182
      %v1402 = vunpack.c.h.b16 %v182
      %v1403 = vunpack.c.l.b16 %v183
      %v1404 = vunpack.c.h.b16 %v183
      %v1405 = vunpack.c.l.b16 %v184
      %v1406 = vunpack.c.h.b16 %v184
      %v1407 = vunpack.c.l.b16 %v185
      %v1408 = vunpack.c.h.b16 %v185
      %v1409 = vunpack.c.l.b16 %v186
      %v1410 = vunpack.c.h.b16 %v186
      %v1411 = vunpack.c.l.b16 %v187
      %v1412 = vunpack.c.h.b16 %v187
      %v1413 = vunpack.c.l.b16 %v188
      %v1414 = vunpack.c.h.b16 %v188
      %v1415 = vunpack.c.l.b16 %v189
      %v1416 = vunpack.c.h.b16 %v189
      %v1417 = vunpack.c.l.b16 %v190
      %v1418 = vunpack.c.h.b16 %v190
      %v1419 = vunpack.c.l.b16 %v191
      %v1420 = vunpack.c.h.b16 %v191
      %v1421 = vunpack.c.l.b16 %v192
      %v1422 = vunpack.c.h.b16 %v192
      %v1423 = vunpack.c.l.b16 %v193
      %v1424 = vunpack.c.h.b16 %v193
      %v1425 = vunpack.c.l.b16 %v194
      %v1426 = vunpack.c.h.b16 %v194
      %v1427 = vunpack.c.l.b16 %v195
      %v1428 = vunpack.c.h.b16 %v195
      %v1429 = vunpack.c.l.b16 %v196
      %v1430 = vunpack.c.h.b16 %v196
      %v1431 = vunpack.c.l.b16 %v197
      %v1432 = vunpack.c.h.b16 %v197
      %v1433 = vunpack.c.l.b16 %v198
      %v1434 = vunpack.c.h.b16 %v198
      %v1435 = vunpack.c.l.b16 %v199
      %v1436 = vunpack.c.h.b16 %v199
      %v1437 = vunpack.c.l.b16 %v200
      %v1438 = vunpack.c.h.b16 %v200
      %v1439 = vunpack.c.l.b16 %v201
      %v1440 = vunpack.c.h.b16 %v201
      %v1441 = vunpack.c.l.b16 %v202
      %v1442 = vunpack.c.h.b16 %v202
      %v1443 = vunpack.c.l.b16 %v203
      %v1444 = vunpack.c.h.b16 %v203
      %v1445 = vunpack.c.l.b16 %v204
      %v1446 = vunpack.c.h.b16 %v204
      %v1447 = vunpack.c.l.b16 %v205
      %v1448 = vunpack.c.h.b16 %v205
      %v1449 = vunpack.c.l.b16 %v206
      %v1450 = vunpack.c.h.b16 %v206
      %v1451 = vunpack.c.l.b16 %v207
      %v1452 = vunpack.c.h.b16 %v207
      %v1453 = vunpack.c.l.b16 %v208
      %v1454 = vunpack.c.h.b16 %v208
      %v1455 = vunpack.c.l.b16 %v209
      %v1456 = vunpack.c.h.b16 %v209
      %v1457 = vunpack.c.l.b16 %v210
      %v1458 = vunpack.c.h.b16 %v210
      %v1459 = vunpack.c.l.b16 %v211
      %v1460 = vunpack.c.h.b16 %v211
      %v1461 = vunpack.c.l.b16 %v212
      %v1462 = vunpack.c.h.b16 %v212
      %v1463 = vunpack.c.l.b16 %v213
      %v1464 = vunpack.c.h.b16 %v213
      %v1465 = vunpack.c.l.b16 %v214
      %v1466 = vunpack.c.h.b16 %v214
      %v1467 = vunpack.c.l.b16 %v215
      %v1468 = vunpack.c.h.b16 %v215
      %v1469 = vunpack.c.l.b16 %v216
      %v1470 = vunpack.c.h.b16 %v216
      %v1471 = vunpack.c.l.b16 %v217
      %v1472 = vunpack.c.h.b16 %v217
      %v1473 = vunpack.c.l.b16 %v218
      %v1474 = vunpack.c.h.b16 %v218
      %v1475 = vunpack.c.l.b16 %v219
      %v1476 = vunpack.c.h.b16 %v219
      %v1477 = vunpack.c.l.b16 %v220
      %v1478 = vunpack.c.h.b16 %v220
      %v1479 = vunpack.c.l.b16 %v221
      %v1480 = vunpack.c.h.b16 %v221
      %v1481 = vunpack.c.l.b16 %v222
      %v1482 = vunpack.c.h.b16 %v222
      %v1483 = vunpack.c.l.b16 %v223
      %v1484 = vunpack.c.h.b16 %v223
      %v1485 = vunpack.c.l.b16 %v224
      %v1486 = vunpack.c.h.b16 %v224
      %v1487 = vunpack.c.l.b16 %v225
      %v1488 = vunpack.c.h.b16 %v225
      %v1489 = vunpack.c.l.b16 %v226
      %v1490 = vunpack.c.h.b16 %v226
      %v1491 = vunpack.c.l.b16 %v227
      %v1492 = vunpack.c.h.b16 %v227
      %v1493 = vunpack.c.l.b16 %v228
      %v1494 = vunpack.c.h.b16 %v228
      %v1495 = vunpack.c.l.b16 %v229
      %v1496 = vunpack.c.h.b16 %v229
      %v1497 = vunpack.c.l.b16 %v230
      %v1498 = vunpack.c.h.b16 %v230
      %v1499 = vunpack.c.l.b16 %v231
      %v1500 = vunpack.c.h.b16 %v231
      %v1501 = vunpack.c.l.b16 %v232
      %v1502 = vunpack.c.h.b16 %v232
      %v1503 = vunpack.c.l.b16 %v233
      %v1504 = vunpack.c.h.b16 %v233
      %v1505 = vunpack.c.l.b16 %v234
      %v1506 = vunpack.c.h.b16 %v234
      %v1507 = vunpack.c.l.b16 %v235
      %v1508 = vunpack.c.h.b16 %v235
      %v1509 = vunpack.c.l.b16 %v236
      %v1510 = vunpack.c.h.b16 %v236
      %v1511 = vunpack.c.l.b16 %v237
      %v1512 = vunpack.c.h.b16 %v237
      %v1513 = vunpack.c.l.b16 %v238
      %v1514 = vunpack.c.h.b16 %v238
      %v1515 = vunpack.c.l.b16 %v239
      %v1516 = vunpack.c.h.b16 %v239
      %v1517 = vunpack.c.l.b16 %v240
      %v1518 = vunpack.c.h.b16 %v240
      %v1519 = vunpack.c.l.b16 %v241
      %v1520 = vunpack.c.h.b16 %v241
      %v1521 = vunpack.c.l.b16 %v242
      %v1522 = vunpack.c.h.b16 %v242
      %v1523 = vunpack.c.l.b16 %v243
      %v1524 = vunpack.c.h.b16 %v243
      %v1525 = vunpack.c.l.b16 %v244
      %v1526 = vunpack.c.h.b16 %v244
      %v1527 = vunpack.c.l.b16 %v245
      %v1528 = vunpack.c.h.b16 %v245
      %v1529 = vunpack.c.l.b16 %v246
      %v1530 = vunpack.c.h.b16 %v246
      %v1531 = vunpack.c.l.b16 %v247
      %v1532 = vunpack.c.h.b16 %v247
      %v1533 = vunpack.c.l.b16 %v248
      %v1534 = vunpack.c.h.b16 %v248
      %v1535 = vunpack.c.l.b16 %v249
      %v1536 = vunpack.c.h.b16 %v249
      %v1537 = vunpack.c.l.b16 %v250
      %v1538 = vunpack.c.h.b16 %v250
      %v1539 = vunpack.c.l.b16 %v251
      %v1540 = vunpack.c.h.b16 %v251
      %v1541 = vunpack.c.l.b16 %v252
      %v1542 = vunpack.c.h.b16 %v252
      %v1543 = vunpack.c.l.b16 %v253
      %v1544 = vunpack.c.h.b16 %v253
      %v1545 = vunpack.c.l.b16 %v254
      %v1546 = vunpack.c.h.b16 %v254
      %v1547 = vunpack.c.l.b16 %v255
      %v1548 = vunpack.c.h.b16 %v255
      %v1549 = vunpack.c.l.b16 %v256
      %v1550 = vunpack.c.h.b16 %v256
      %v1551 = vunpack.c.l.b16 %v257
      %v1552 = vunpack.c.h.b16 %v257
      %v1553 = vunpack.c.l.b16 %v258
      %v1554 = vunpack.c.h.b16 %v258
      %v1555 = vunpack.c.l.b16 %v259
      %v1556 = vunpack.c.h.b16 %v259
      %v1557 = vunpack.c.l.b16 %v260
      %v1558 = vunpack.c.h.b16 %v260
      %v1559 = vunpack.c.l.b16 %v261
      %v1560 = vunpack.c.h.b16 %v261
      %v1561 = vunpack.c.l.b16 %v262
      %v1562 = vunpack.c.h.b16 %v262
      %v1563 = vunpack.c.l.b16 %v263
      %v1564 = vunpack.c.h.b16 %v263
      %v1565 = vunpack.c.l.b16 %v264
      %v1566 = vunpack.c.h.b16 %v264
      %v1567 = vunpack.c.l.b16 %v265
      %v1568 = vunpack.c.h.b16 %v265
      %v1569 = vunpack.c.l.b16 %v266
      %v1570 = vunpack.c.h.b16 %v266
      %v1571 = vunpack.c.l.b16 %v267
      %v1572 = vunpack.c.h.b16 %v267
      %v1573 = vunpack.c.l.b16 %v268
      %v1574 = vunpack.c.h.b16 %v268
      %v1575 = vunpack.c.l.b16 %v269
      %v1576 = vunpack.c.h.b16 %v269
      %v1577 = vunpack.c.l.b16 %v270
      %v1578 = vunpack.c.h.b16 %v270
      %v1579 = vunpack.c.l.b16 %v271
      %v1580 = vunpack.c.h.b16 %v271
      %v1581 = vunpack.c.l.b16 %v272
      %v1582 = vunpack.c.h.b16 %v272
      %v1583 = vunpack.c.l.b16 %v273
      %v1584 = vunpack.c.h.b16 %v273
      %v1585 = vunpack.c.l.b16 %v274
      %v1586 = vunpack.c.h.b16 %v274
      %v1587 = vunpack.c.l.b16 %v275
      %v1588 = vunpack.c.h.b16 %v275
      %v1589 = vunpack.c.l.b16 %v276
      %v1590 = vunpack.c.h.b16 %v276
      %v1591 = vunpack.c.l.b16 %v277
      %v1592 = vunpack.c.h.b16 %v277
      %v1593 = vunpack.c.l.b16 %v278
      %v1594 = vunpack.c.h.b16 %v278
      %v1595 = vunpack.c.l.b16 %v279
      %v1596 = vunpack.c.h.b16 %v279
      %v1597 = vunpack.c.l.b16 %v280
      %v1598 = vunpack.c.h.b16 %v280
      %v1599 = vunpack.c.l.b16 %v281
      %v1600 = vunpack.c.h.b16 %v281
      %v1601 = vunpack.c.l.b16 %v282
      %v1602 = vunpack.c.h.b16 %v282
      %v1603 = vunpack.c.l.b16 %v283
      %v1604 = vunpack.c.h.b16 %v283
      %v1605 = vunpack.c.l.b16 %v284
      %v1606 = vunpack.c.h.b16 %v284
      %v1607 = vunpack.c.l.b16 %v285
      %v1608 = vunpack.c.h.b16 %v285
      %v1609 = vunpack.c.l.b16 %v286
      %v1610 = vunpack.c.h.b16 %v286
      %v1611 = vunpack.c.l.b16 %v287
      %v1612 = vunpack.c.h.b16 %v287
      %v1613 = vunpack.c.l.b16 %v288
      %v1614 = vunpack.c.h.b16 %v288
      %v1615 = vunpack.c.l.b16 %v289
      %v1616 = vunpack.c.h.b16 %v289
      %v1617 = vunpack.c.l.b16 %v290
      %v1618 = vunpack.c.h.b16 %v290
      %v1619 = vunpack.c.l.b16 %v291
      %v1620 = vunpack.c.h.b16 %v291
      %v1621 = vunpack.c.l.b16 %v292
      %v1622 = vunpack.c.h.b16 %v292
      %v1623 = vunpack.c.l.b16 %v293
      %v1624 = vunpack.c.h.b16 %v293
      %v1625 = vunpack.c.l.b16 %v294
      %v1626 = vunpack.c.h.b16 %v294
      %v1627 = vunpack.c.l.b16 %v295
      %v1628 = vunpack.c.h.b16 %v295
      %v1629 = vunpack.c.l.b16 %v296
      %v1630 = vunpack.c.h.b16 %v296
      %v1631 = vunpack.c.l.b16 %v297
      %v1632 = vunpack.c.h.b16 %v297
      %v1633 = vunpack.c.l.b16 %v298
      %v1634 = vunpack.c.h.b16 %v298
      %v1635 = vunpack.c.l.b16 %v299
      %v1636 = vunpack.c.h.b16 %v299
      %v1637 = vunpack.c.l.b16 %v300
      %v1638 = vunpack.c.h.b16 %v300
      %v1639 = vunpack.c.l.b16 %v301
      %v1640 = vunpack.c.h.b16 %v301
      %v1641 = vunpack.c.l.b16 %v302
      %v1642 = vunpack.c.h.b16 %v302
      %v1643 = vunpack.c.l.b16 %v303
      %v1644 = vunpack.c.h.b16 %v303
      %v1645 = vunpack.c.l.b16 %v304
      %v1646 = vunpack.c.h.b16 %v304
      %v1647 = vunpack.c.l.b16 %v305
      %v1648 = vunpack.c.h.b16 %v305
      %v1649 = vunpack.c.l.b16 %v306
      %v1650 = vunpack.c.h.b16 %v306
      %v1651 = vunpack.c.l.b16 %v307
      %v1652 = vunpack.c.h.b16 %v307
      %v1653 = vunpack.c.l.b16 %v308
      %v1654 = vunpack.c.h.b16 %v308
      %v1655 = vunpack.c.l.b16 %v309
      %v1656 = vunpack.c.h.b16 %v309
      %v1657 = vunpack.c.l.b16 %v310
      %v1658 = vunpack.c.h.b16 %v310
      %v1659 = vunpack.c.l.b16 %v311
      %v1660 = vunpack.c.h.b16 %v311
      %v1661 = vunpack.c.l.b16 %v312
      %v1662 = vunpack.c.h.b16 %v312
      %v1663 = vunpack.c.l.b16 %v313
      %v1664 = vunpack.c.h.b16 %v313
      %v1665 = vunpack.c.l.b16 %v314
      %v1666 = vunpack.c.h.b16 %v314
      %v1667 = vunpack.c.l.b16 %v315
      %v1668 = vunpack.c.h.b16 %v315
      %v1669 = vunpack.c.l.b16 %v316
      %v1670 = vunpack.c.h.b16 %v316
      %v1671 = vunpack.c.l.b16 %v317
      %v1672 = vunpack.c.h.b16 %v317
      %v1673 = vunpack.c.l.b16 %v318
      %v1674 = vunpack.c.h.b16 %v318
      %v1675 = vunpack.c.l.b16 %v319
      %v1676 = vunpack.c.h.b16 %v319
      %v1677 = vunpack.c.l.b16 %v320
      %v1678 = vunpack.c.h.b16 %v320
      %v1679 = vunpack.c.l.b16 %v321
      %v1680 = vunpack.c.h.b16 %v321
      %v1681 = vunpack.c.l.b16 %v322
      %v1682 = vunpack.c.h.b16 %v322
      %v1683 = vunpack.c.l.b16 %v323
      %v1684 = vunpack.c.h.b16 %v323
      %v1685 = vunpack.c.l.b16 %v324
      %v1686 = vunpack.c.h.b16 %v324
      %v1687 = vunpack.c.l.b16 %v325
      %v1688 = vunpack.c.h.b16 %v325
      %v1689 = vunpack.c.l.b16 %v326
      %v1690 = vunpack.c.h.b16 %v326
      %v1691 = vunpack.c.l.b16 %v327
      %v1692 = vunpack.c.h.b16 %v327
      %v1693 = vunpack.c.l.b16 %v328
      %v1694 = vunpack.c.h.b16 %v328
      %v1695 = vunpack.c.l.b16 %v329
      %v1696 = vunpack.c.h.b16 %v329
      %v1697 = vunpack.c.l.b16 %v330
      %v1698 = vunpack.c.h.b16 %v330
      %v1699 = vunpack.c.l.b16 %v331
      %v1700 = vunpack.c.h.b16 %v331
      %v1701 = vunpack.c.l.b16 %v332
      %v1702 = vunpack.c.h.b16 %v332
      %v1703 = vunpack.c.l.b16 %v333
      %v1704 = vunpack.c.h.b16 %v333
      %v1705 = vunpack.c.l.b16 %v334
      %v1706 = vunpack.c.h.b16 %v334
      %v1707 = vunpack.c.l.b16 %v335
      %v1708 = vunpack.c.h.b16 %v335
      %v1709 = vunpack.c.l.b16 %v336
      %v1710 = vunpack.c.h.b16 %v336
      %v1711 = vunpack.c.l.b16 %v337
      %v1712 = vunpack.c.h.b16 %v337
      %v1713 = vunpack.c.l.b16 %v338
      %v1714 = vunpack.c.h.b16 %v338
      %v1715 = vunpack.c.l.b16 %v339
      %v1716 = vunpack.c.h.b16 %v339
      %v1717 = vunpack.c.l.b16 %v340
      %v1718 = vunpack.c.h.b16 %v340
      %v1719 = vunpack.c.l.b16 %v341
      %v1720 = vunpack.c.h.b16 %v341
      %v1721 = vunpack.c.l.b16 %v342
      %v1722 = vunpack.c.h.b16 %v342
      %v1723 = vunpack.c.l.b16 %v343
      %v1724 = vunpack.c.h.b16 %v343
      %v1725 = vunpack.c.l.b16 %v344
      %v1726 = vunpack.c.h.b16 %v344
      %v1727 = vunpack.c.l.b16 %v345
      %v1728 = vunpack.c.h.b16 %v345
      %v1729 = vunpack.c.l.b16 %v346
      %v1730 = vunpack.c.h.b16 %v346
      %v1731 = vunpack.c.l.b16 %v347
      %v1732 = vunpack.c.h.b16 %v347
      %v1733 = vunpack.c.l.b16 %v348
      %v1734 = vunpack.c.h.b16 %v348
      %v1735 = vunpack.c.l.b16 %v349
      %v1736 = vunpack.c.h.b16 %v349
      %v1737 = vunpack.c.l.b16 %v350
      %v1738 = vunpack.c.h.b16 %v350
      %v1739 = vunpack.c.l.b16 %v351
      %v1740 = vunpack.c.h.b16 %v351
      %v1741 = vunpack.c.l.b16 %v352
      %v1742 = vunpack.c.h.b16 %v352
      %v1743 = vunpack.c.l.b16 %v353
      %v1744 = vunpack.c.h.b16 %v353
      %v1745 = vunpack.c.l.b16 %v354
      %v1746 = vunpack.c.h.b16 %v354
      %v1747 = vunpack.c.l.b16 %v355
      %v1748 = vunpack.c.h.b16 %v355
      %v1749 = vunpack.c.l.b16 %v356
      %v1750 = vunpack.c.h.b16 %v356
      %v1751 = vunpack.c.l.b16 %v357
      %v1752 = vunpack.c.h.b16 %v357
      %v1753 = vunpack.c.l.b16 %v358
      %v1754 = vunpack.c.h.b16 %v358
      %v1755 = vunpack.c.l.b16 %v359
      %v1756 = vunpack.c.h.b16 %v359
      %v1757 = vunpack.c.l.b16 %v360
      %v1758 = vunpack.c.h.b16 %v360
      %v1759 = vunpack.c.l.b16 %v361
      %v1760 = vunpack.c.h.b16 %v361
      %v1761 = vunpack.c.l.b16 %v362
      %v1762 = vunpack.c.h.b16 %v362
      %v1763 = vunpack.c.l.b16 %v363
      %v1764 = vunpack.c.h.b16 %v363
      %v1765 = vunpack.c.l.b16 %v364
      %v1766 = vunpack.c.h.b16 %v364
      %v1767 = vunpack.c.l.b16 %v365
      %v1768 = vunpack.c.h.b16 %v365
      %v1769 = vunpack.c.l.b16 %v366
      %v1770 = vunpack.c.h.b16 %v366
      %v1771 = vunpack.c.l.b16 %v367
      %v1772 = vunpack.c.h.b16 %v367
      %v1773 = vunpack.c.l.b16 %v368
      %v1774 = vunpack.c.h.b16 %v368
      %v1775 = vunpack.c.l.b16 %v369
      %v1776 = vunpack.c.h.b16 %v369
      %v1777 = vunpack.c.l.b16 %v370
      %v1778 = vunpack.c.h.b16 %v370
      %v1779 = vunpack.c.l.b16 %v371
      %v1780 = vunpack.c.h.b16 %v371
      %v1781 = vunpack.c.l.b16 %v372
      %v1782 = vunpack.c.h.b16 %v372
      %v1783 = vunpack.c.l.b16 %v373
      %v1784 = vunpack.c.h.b16 %v373
      %v1785 = vunpack.c.l.b16 %v374
      %v1786 = vunpack.c.h.b16 %v374
      %v1787 = vunpack.c.l.b16 %v375
      %v1788 = vunpack.c.h.b16 %v375
      %v1789 = vunpack.c.l.b16 %v376
      %v1790 = vunpack.c.h.b16 %v376
      %v1791 = vunpack.c.l.b16 %v377
      %v1792 = vunpack.c.h.b16 %v377
      %v1793 = vunpack.c.l.b16 %v378
      %v1794 = vunpack.c.h.b16 %v378
      %v1795 = vunpack.c.l.b16 %v379
      %v1796 = vunpack.c.h.b16 %v379
      %v1797 = vunpack.c.l.b16 %v380
      %v1798 = vunpack.c.h.b16 %v380
      %v1799 = vunpack.c.l.b16 %v381
      %v1800 = vunpack.c.h.b16 %v381
      %v1801 = vunpack.c.l.b16 %v382
      %v1802 = vunpack.c.h.b16 %v382
      %v1803 = vunpack.c.l.b16 %v383
      %v1804 = vunpack.c.h.b16 %v383
      %v1805 = vunpack.c.l.b16 %v384
      %v1806 = vunpack.c.h.b16 %v384
      %v1807 = vunpack.c.l.b16 %v385
      %v1808 = vunpack.c.h.b16 %v385
      %v1809 = vunpack.c.l.b16 %v386
      %v1810 = vunpack.c.h.b16 %v386
      %v1811 = vunpack.c.l.b16 %v387
      %v1812 = vunpack.c.h.b16 %v387
      %v1813 = vunpack.c.l.b16 %v388
      %v1814 = vunpack.c.h.b16 %v388
      %v1815 = vunpack.c.l.b16 %v389
      %v1816 = vunpack.c.h.b16 %v389
      %v1817 = vunpack.c.l.b16 %v390
      %v1818 = vunpack.c.h.b16 %v390
      %v1819 = vunpack.c.l.b16 %v391
      %v1820 = vunpack.c.h.b16 %v391
      %v1821 = vunpack.c.l.b16 %v392
      %v1822 = vunpack.c.h.b16 %v392
      %v1823 = vunpack.c.l.b16 %v393
      %v1824 = vunpack.c.h.b16 %v393
      %v1825 = vunpack.c.l.b16 %v394
      %v1826 = vunpack.c.h.b16 %v394
      %v1827 = vunpack.c.l.b16 %v395
      %v1828 = vunpack.c.h.b16 %v395
      %v1829 = vunpack.c.l.b16 %v396
      %v1830 = vunpack.c.h.b16 %v396
      %v1831 = vunpack.c.l.b16 %v397
      %v1832 = vunpack.c.h.b16 %v397
      %v1833 = vunpack.c.l.b16 %v398
      %v1834 = vunpack.c.h.b16 %v398
      %v1835 = vunpack.c.l.b16 %v399
      %v1836 = vunpack.c.h.b16 %v399
      %v1837 = vunpack.c.l.b16 %v400
      %v1838 = vunpack.c.h.b16 %v400
      %v1839 = vunpack.c.l.b16 %v401
      %v1840 = vunpack.c.h.b16 %v401
      %v1841 = vunpack.c.l.b16 %v402
      %v1842 = vunpack.c.h.b16 %v402
      %v1843 = vunpack.c.l.b16 %v403
      %v1844 = vunpack.c.h.b16 %v403
      %v1845 = vunpack.c.l.b16 %v404
      %v1846 = vunpack.c.h.b16 %v404
      %v1847 = vunpack.c.l.b16 %v405
      %v1848 = vunpack.c.h.b16 %v405
      %v1849 = vunpack.c.l.b16 %v406
      %v1850 = vunpack.c.h.b16 %v406
      %v1851 = vunpack.c.l.b16 %v407
      %v1852 = vunpack.c.h.b16 %v407
      %v1853 = vunpack.c.l.b16 %v408
      %v1854 = vunpack.c.h.b16 %v408
      %v1855 = vunpack.c.l.b16 %v409
      %v1856 = vunpack.c.h.b16 %v409
      %v1857 = vunpack.c.l.b16 %v410
      %v1858 = vunpack.c.h.b16 %v410
      %v1859 = vunpack.c.l.b16 %v411
      %v1860 = vunpack.c.h.b16 %v411
      %v1861 = vunpack.c.l.b16 %v412
      %v1862 = vunpack.c.h.b16 %v412
      %v1863 = vunpack.c.l.b16 %v413
      %v1864 = vunpack.c.h.b16 %v413
      %v1865 = vunpack.c.l.b16 %v414
      %v1866 = vunpack.c.h.b16 %v414
      %v1867 = vunpack.c.l.b16 %v415
      %v1868 = vunpack.c.h.b16 %v415
      %v1869 = vunpack.c.l.b16 %v416
      %v1870 = vunpack.c.h.b16 %v416
      %v1871 = vunpack.c.l.b16 %v417
      %v1872 = vunpack.c.h.b16 %v417
      %v1873 = vunpack.c.l.b16 %v418
      %v1874 = vunpack.c.h.b16 %v418
      %v1875 = vunpack.c.l.b16 %v419
      %v1876 = vunpack.c.h.b16 %v419
      %v1877 = vunpack.c.l.b16 %v420
      %v1878 = vunpack.c.h.b16 %v420
      %v1879 = vunpack.c.l.b16 %v421
      %v1880 = vunpack.c.h.b16 %v421
      %v1881 = vunpack.c.l.b16 %v422
      %v1882 = vunpack.c.h.b16 %v422
      %v1883 = vunpack.c.l.b16 %v423
      %v1884 = vunpack.c.h.b16 %v423
      %v1885 = vunpack.c.l.b16 %v424
      %v1886 = vunpack.c.h.b16 %v424
      %v1887 = vunpack.c.l.b16 %v425
      %v1888 = vunpack.c.h.b16 %v425
      %v1889 = vunpack.c.l.b16 %v426
      %v1890 = vunpack.c.h.b16 %v426
      %v1891 = vunpack.c.l.b16 %v427
      %v1892 = vunpack.c.h.b16 %v427
      %v1893 = vunpack.c.l.b16 %v428
      %v1894 = vunpack.c.h.b16 %v428
      %v1895 = vunpack.c.l.b16 %v429
      %v1896 = vunpack.c.h.b16 %v429
      %v1897 = vunpack.c.l.b16 %v430
      %v1898 = vunpack.c.h.b16 %v430
      %v1899 = vunpack.c.l.b16 %v431
      %v1900 = vunpack.c.h.b16 %v431
      %v1901 = vunpack.c.l.b16 %v432
      %v1902 = vunpack.c.h.b16 %v432
      %v1903 = vunpack.c.l.b16 %v433
      %v1904 = vunpack.c.h.b16 %v433
      %v1905 = vunpack.c.l.b16 %v434
      %v1906 = vunpack.c.h.b16 %v434
      %v1907 = vunpack.c.l.b16 %v435
      %v1908 = vunpack.c.h.b16 %v435
      %v1909 = vunpack.c.l.b16 %v436
      %v1910 = vunpack.c.h.b16 %v436
      %v1911 = vunpack.c.l.b16 %v437
      %v1912 = vunpack.c.h.b16 %v437
      %v1913 = vunpack.c.l.b16 %v438
      %v1914 = vunpack.c.h.b16 %v438
      %v1915 = vunpack.c.l.b16 %v439
      %v1916 = vunpack.c.h.b16 %v439
      %v1917 = vunpack.c.l.b16 %v440
      %v1918 = vunpack.c.h.b16 %v440
      %v1919 = vunpack.c.l.b16 %v441
      %v1920 = vunpack.c.h.b16 %v441
      %v1921 = vunpack.c.l.b16 %v442
      %v1922 = vunpack.c.h.b16 %v442
      %v1923 = vunpack.c.l.b16 %v443
      %v1924 = vunpack.c.h.b16 %v443
      %v1925 = vunpack.c.l.b16 %v444
      %v1926 = vunpack.c.h.b16 %v444
      %v1927 = vunpack.c.l.b16 %v445
      %v1928 = vunpack.c.h.b16 %v445
      %v1929 = vunpack.c.l.b16 %v446
      %v1930 = vunpack.c.h.b16 %v446
      %v1931 = vunpack.c.l.b16 %v447
      %v1932 = vunpack.c.h.b16 %v447
      %v1933 = vunpack.c.l.b16 %v448
      %v1934 = vunpack.c.h.b16 %v448
      %v1935 = vunpack.c.l.b16 %v449
      %v1936 = vunpack.c.h.b16 %v449
      %v1937 = vunpack.c.l.b16 %v450
      %v1938 = vunpack.c.h.b16 %v450
      %v1939 = vunpack.c.l.b16 %v451
      %v1940 = vunpack.c.h.b16 %v451
      %v1941 = vunpack.c.l.b16 %v452
      %v1942 = vunpack.c.h.b16 %v452
      %v1943 = vunpack.c.l.b16 %v453
      %v1944 = vunpack.c.h.b16 %v453
      %v1945 = vunpack.c.l.b16 %v454
      %v1946 = vunpack.c.h.b16 %v454
      %v1947 = vunpack.c.l.b16 %v455
      %v1948 = vunpack.c.h.b16 %v455
      %v1949 = vunpack.c.l.b16 %v456
      %v1950 = vunpack.c.h.b16 %v456
      %v1951 = vunpack.c.l.b16 %v457
      %v1952 = vunpack.c.h.b16 %v457
      %v1953 = vunpack.c.l.b16 %v458
      %v1954 = vunpack.c.h.b16 %v458
      %v1955 = vunpack.c.l.b16 %v459
      %v1956 = vunpack.c.h.b16 %v459
      %v1957 = vunpack.c.l.b16 %v460
      %v1958 = vunpack.c.h.b16 %v460
      %v1959 = vunpack.c.l.b16 %v461
      %v1960 = vunpack.c.h.b16 %v461
      %v1961 = vunpack.c.l.b16 %v462
      %v1962 = vunpack.c.h.b16 %v462
      %v1963 = vunpack.c.l.b16 %v463
      %v1964 = vunpack.c.h.b16 %v463
      %v1965 = vunpack.c.l.b16 %v464
      %v1966 = vunpack.c.h.b16 %v464
      %v1967 = vunpack.c.l.b16 %v465
      %v1968 = vunpack.c.h.b16 %v465
      %v1969 = vunpack.c.l.b16 %v466
      %v1970 = vunpack.c.h.b16 %v466
      %v1971 = vunpack.c.l.b16 %v467
      %v1972 = vunpack.c.h.b16 %v467
      %v1973 = vunpack.c.l.b16 %v468
      %v1974 = vunpack.c.h.b16 %v468
      %v1975 = vunpack.c.l.b16 %v469
      %v1976 = vunpack.c.h.b16 %v469
      %v1977 = vunpack.c.l.b16 %v470
      %v1978 = vunpack.c.h.b16 %v470
      %v1979 = vunpack.c.l.b16 %v471
      %v1980 = vunpack.c.h.b16 %v471
      %v1981 = vunpack.c.l.b16 %v472
      %v1982 = vunpack.c.h.b16 %v472
      %v1983 = vunpack.c.l.b16 %v473
      %v1984 = vunpack.c.h.b16 %v473
      %v1985 = vunpack.c.l.b16 %v474
      %v1986 = vunpack.c.h.b16 %v474
      %v1987 = vunpack.c.l.b16 %v475
      %v1988 = vunpack.c.h.b16 %v475
      %v1989 = vunpack.c.l.b16 %v476
      %v1990 = vunpack.c.h.b16 %v476
      %v1991 = vunpack.c.l.b16 %v477
      %v1992 = vunpack.c.h.b16 %v477
      %v1993 = vunpack.c.l.b16 %v478
      %v1994 = vunpack.c.h.b16 %v478
      %v1995 = vunpack.c.l.b16 %v479
      %v1996 = vunpack.c.h.b16 %v479
      %v1997 = vunpack.c.l.b16 %v480
      %v1998 = vunpack.c.h.b16 %v480
      %v1999 = vunpack.c.l.b16 %v481
      %v2000 = vunpack.c.h.b16 %v481
      %v2001 = vunpack.c.l.b16 %v482
      %v2002 = vunpack.c.h.b16 %v482
      %v2003 = vunpack.c.l.b16 %v483
      %v2004 = vunpack.c.h.b16 %v483
      %v2005 = vunpack.c.l.b16 %v484
      %v2006 = vunpack.c.h.b16 %v484
      %v2007 = vunpack.c.l.b16 %v485
      %v2008 = vunpack.c.h.b16 %v485
      %v2009 = vunpack.c.l.b16 %v486
      %v2010 = vunpack.c.h.b16 %v486
      %v2011 = vunpack.c.l.b16 %v487
      %v2012 = vunpack.c.h.b16 %v487
      %v2013 = vunpack.c.l.b16 %v488
      %v2014 = vunpack.c.h.b16 %v488
      %v2015 = vunpack.c.l.b16 %v489
      %v2016 = vunpack.c.h.b16 %v489
      %v2017 = vunpack.c.l.b16 %v490
      %v2018 = vunpack.c.h.b16 %v490
      %v2019 = vunpack.c.l.b16 %v491
      %v2020 = vunpack.c.h.b16 %v491
      %v2021 = vunpack.c.l.b16 %v492
      %v2022 = vunpack.c.h.b16 %v492
      %v2023 = vunpack.c.l.b16 %v493
      %v2024 = vunpack.c.h.b16 %v493
      %v2025 = vunpack.c.l.b16 %v494
      %v2026 = vunpack.c.h.b16 %v494
      %v2027 = vunpack.c.l.b16 %v495
      %v2028 = vunpack.c.h.b16 %v495
      %v2029 = vunpack.c.l.b16 %v496
      %v2030 = vunpack.c.h.b16 %v496
      %v2031 = vunpack.c.l.b16 %v497
      %v2032 = vunpack.c.h.b16 %v497
      %v2033 = vunpack.c.l.b16 %v498
      %v2034 = vunpack.c.h.b16 %v498
      %v2035 = vunpack.c.l.b16 %v499
      %v2036 = vunpack.c.h.b16 %v499
      %v2037 = vunpack.c.l.b16 %v500
      %v2038 = vunpack.c.h.b16 %v500
      %v2039 = vunpack.c.l.b16 %v501
      %v2040 = vunpack.c.h.b16 %v501
      %v2041 = vunpack.c.l.b16 %v502
      %v2042 = vunpack.c.h.b16 %v502
      %v2043 = vunpack.c.l.b16 %v503
      %v2044 = vunpack.c.h.b16 %v503
      %v2045 = vunpack.c.l.b16 %v504
      %v2046 = vunpack.c.h.b16 %v504
      %v2047 = vunpack.c.l.b16 %v505
      %v2048 = vunpack.c.h.b16 %v505
      %v2049 = vunpack.c.l.b16 %v506
      %v2050 = vunpack.c.h.b16 %v506
      %v2051 = vunpack.c.l.b16 %v507
      %v2052 = vunpack.c.h.b16 %v507
      %v2053 = vunpack.c.l.b16 %v508
      %v2054 = vunpack.c.h.b16 %v508
      %v2055 = vunpack.c.l.b16 %v509
      %v2056 = vunpack.c.h.b16 %v509
      %v2057 = vunpack.c.l.b16 %v510
      %v2058 = vunpack.c.h.b16 %v510
      %v2059 = vunpack.c.l.b16 %v511
      %v2060 = vunpack.c.h.b16 %v511
      %v2061 = vunpack.c.l.b16 %v512
      %v2062 = vunpack.c.h.b16 %v512
      %v2063 = vunpack.c.l.b16 %v513
      %v2064 = vunpack.c.h.b16 %v513
      %v2065 = vunpack.c.l.b16 %v514
      %v2066 = vunpack.c.h.b16 %v514
      %v2067 = vunpack.c.l.b16 %v515
      %v2068 = vunpack.c.h.b16 %v515
      %v2069 = vunpack.c.l.b16 %v516
      %v2070 = vunpack.c.h.b16 %v516
      %v2071 = vunpack.c.l.b16 %v517
      %v2072 = vunpack.c.h.b16 %v517
      %v2073 = vunpack.c.l.b16 %v518
      %v2074 = vunpack.c.h.b16 %v518
      %v2075 = vunpack.c.l.b16 %v519
      %v2076 = vunpack.c.h.b16 %v519
      %v2077 = vunpack.c.l.b16 %v520
      %v2078 = vunpack.c.h.b16 %v520
      %v2079 = vunpack.c.l.b16 %v521
      %v2080 = vunpack.c.h.b16 %v521
      %v2081 = vunpack.c.l.b16 %v522
      %v2082 = vunpack.c.h.b16 %v522
      %v2083 = vunpack.c.l.b16 %v523
      %v2084 = vunpack.c.h.b16 %v523
      %v2085 = vunpack.c.l.b16 %v524
      %v2086 = vunpack.c.h.b16 %v524
      %v2087 = vunpack.c.l.b16 %v525
      %v2088 = vunpack.c.h.b16 %v525
      %v2089 = vunpack.c.l.b16 %v526
      %v2090 = vunpack.c.h.b16 %v526
      %v2091 = vunpack.c.l.b16 %v527
      %v2092 = vunpack.c.h.b16 %v527
      %v2093 = vunpack.c.l.b16 %v528
      %v2094 = vunpack.c.h.b16 %v528
      %v2095 = vunpack.c.l.b16 %v529
      %v2096 = vunpack.c.h.b16 %v529
      %v2097 = vunpack.c.l.b16 %v530
      %v2098 = vunpack.c.h.b16 %v530
      %v2099 = vunpack.c.l.b16 %v531
      %v2100 = vunpack.c.h.b16 %v531
      %v2101 = vunpack.c.l.b16 %v532
      %v2102 = vunpack.c.h.b16 %v532
      %v2103 = vunpack.c.l.b16 %v533
      %v2104 = vunpack.c.h.b16 %v533
      %v2105 = vunpack.c.l.b16 %v534
      %v2106 = vunpack.c.h.b16 %v534
      %v2107 = vunpack.c.l.b16 %v535
      %v2108 = vunpack.c.h.b16 %v535
      %v2109 = vunpack.c.l.b16 %v536
      %v2110 = vunpack.c.h.b16 %v536
      %v2111 = vunpack.c.l.b16 %v537
      %v2112 = vunpack.c.h.b16 %v537
      %v2113 = vunpack.c.l.b16 %v538
      %v2114 = vunpack.c.h.b16 %v538
      %v2115 = vunpack.c.l.b16 %v539
      %v2116 = vunpack.c.h.b16 %v539
      %v2117 = vunpack.c.l.b16 %v540
      %v2118 = vunpack.c.h.b16 %v540
      %v2119 = vunpack.c.l.b16 %v541
      %v2120 = vunpack.c.h.b16 %v541
      %v2121 = vunpack.c.l.b16 %v542
      %v2122 = vunpack.c.h.b16 %v542
      %v2123 = vunpack.c.l.b16 %v543
      %v2124 = vunpack.c.h.b16 %v543
      %v2125 = vunpack.c.l.b16 %v544
      %v2126 = vunpack.c.h.b16 %v544
      %v2127 = vunpack.c.l.b16 %v545
      %v2128 = vunpack.c.h.b16 %v545
      %v2129 = vunpack.c.l.b16 %v546
      %v2130 = vunpack.c.h.b16 %v546
      %v2131 = vunpack.c.l.b16 %v547
      %v2132 = vunpack.c.h.b16 %v547
      %v2133 = vunpack.c.l.b16 %v548
      %v2134 = vunpack.c.h.b16 %v548
      %v2135 = vunpack.c.l.b16 %v549
      %v2136 = vunpack.c.h.b16 %v549
      %v2137 = vunpack.c.l.b16 %v550
      %v2138 = vunpack.c.h.b16 %v550
      %v2139 = vunpack.c.l.b16 %v551
      %v2140 = vunpack.c.h.b16 %v551
      %v2141 = vunpack.c.l.b16 %v552
      %v2142 = vunpack.c.h.b16 %v552
      %v2143 = vunpack.c.l.b16 %v553
      %v2144 = vunpack.c.h.b16 %v553
      %v2145 = vunpack.c.l.b16 %v554
      %v2146 = vunpack.c.h.b16 %v554
      %v2147 = vunpack.c.l.b16 %v555
      %v2148 = vunpack.c.h.b16 %v555
      %v2149 = vunpack.c.l.b16 %v556
      %v2150 = vunpack.c.h.b16 %v556
      %v2151 = vunpack.c.l.b16 %v557
      %v2152 = vunpack.c.h.b16 %v557
      %v2153 = vunpack.c.l.b16 %v558
      %v2154 = vunpack.c.h.b16 %v558
      %v2155 = vunpack.c.l.b16 %v559
      %v2156 = vunpack.c.h.b16 %v559
      %v2157 = vunpack.c.l.b16 %v560
      %v2158 = vunpack.c.h.b16 %v560
      %v2159 = vunpack.c.l.b16 %v561
      %v2160 = vunpack.c.h.b16 %v561
      %v2161 = vunpack.c.l.b16 %v562
      %v2162 = vunpack.c.h.b16 %v562
      %v2163 = vunpack.c.l.b16 %v563
      %v2164 = vunpack.c.h.b16 %v563
      %v2165 = vunpack.c.l.b16 %v564
      %v2166 = vunpack.c.h.b16 %v564
      %v2167 = vunpack.c.l.b16 %v565
      %v2168 = vunpack.c.h.b16 %v565
      %v2169 = vunpack.c.l.b16 %v566
      %v2170 = vunpack.c.h.b16 %v566
      %v2171 = vunpack.c.l.b16 %v567
      %v2172 = vunpack.c.h.b16 %v567
      %v2173 = vunpack.c.l.b16 %v568
      %v2174 = vunpack.c.h.b16 %v568
      %v2175 = vunpack.c.l.b16 %v569
      %v2176 = vunpack.c.h.b16 %v569
      %v2177 = vunpack.c.l.b16 %v570
      %v2178 = vunpack.c.h.b16 %v570
      %v2179 = vunpack.c.l.b16 %v571
      %v2180 = vunpack.c.h.b16 %v571
      %v2181 = vunpack.c.l.b16 %v572
      %v2182 = vunpack.c.h.b16 %v572
      %v2183 = vunpack.c.l.b16 %v573
      %v2184 = vunpack.c.h.b16 %v573
      %v2185 = vunpack.c.l.b16 %v574
      %v2186 = vunpack.c.h.b16 %v574
      %v2187 = vunpack.c.l.b16 %v575
      %v2188 = vunpack.c.h.b16 %v575
      %v2189 = vunpack.c.l.b16 %v576
      %v2190 = vunpack.c.h.b16 %v576
      %v2191 = vunpack.c.l.b16 %v577
      %v2192 = vunpack.c.h.b16 %v577
      %v2193 = vunpack.c.l.b16 %v578
      %v2194 = vunpack.c.h.b16 %v578
      %v2195 = vunpack.c.l.b16 %v579
      %v2196 = vunpack.c.h.b16 %v579
      %v2197 = vunpack.c.l.b16 %v580
      %v2198 = vunpack.c.h.b16 %v580
      %v2199 = vunpack.c.l.b16 %v581
      %v2200 = vunpack.c.h.b16 %v581
      %v2201 = vunpack.c.l.b16 %v582
      %v2202 = vunpack.c.h.b16 %v582
      %v2203 = vunpack.c.l.b16 %v583
      %v2204 = vunpack.c.h.b16 %v583
      %v2205 = vunpack.c.l.b16 %v584
      %v2206 = vunpack.c.h.b16 %v584
      %v2207 = vunpack.c.l.b16 %v585
      %v2208 = vunpack.c.h.b16 %v585
      %v2209 = vunpack.c.l.b16 %v586
      %v2210 = vunpack.c.h.b16 %v586
      %v2211 = vunpack.c.l.b16 %v587
      %v2212 = vunpack.c.h.b16 %v587
      %v2213 = vunpack.c.l.b16 %v588
      %v2214 = vunpack.c.h.b16 %v588
      %v2215 = vunpack.c.l.b16 %v589
      %v2216 = vunpack.c.h.b16 %v589
      %v2217 = vunpack.c.l.b16 %v590
      %v2218 = vunpack.c.h.b16 %v590
      %v2219 = vunpack.c.l.b16 %v591
      %v2220 = vunpack.c.h.b16 %v591
      %v2221 = vunpack.c.l.b16 %v592
      %v2222 = vunpack.c.h.b16 %v592
      %v2223 = vunpack.c.l.b16 %v593
      %v2224 = vunpack.c.h.b16 %v593
      %v2225 = vunpack.c.l.b16 %v594
      %v2226 = vunpack.c.h.b16 %v594
      %v2227 = vunpack.c.l.b16 %v595
      %v2228 = vunpack.c.h.b16 %v595
      %v2229 = vunpack.c.l.b16 %v596
      %v2230 = vunpack.c.h.b16 %v596
      %v2231 = vunpack.c.l.b16 %v597
      %v2232 = vunpack.c.h.b16 %v597
      %v2233 = vunpack.c.l.b16 %v598
      %v2234 = vunpack.c.h.b16 %v598
      %v2235 = vunpack.c.l.b16 %v599
      %v2236 = vunpack.c.h.b16 %v599
      %v2237 = vunpack.c.l.b16 %v600
      %v2238 = vunpack.c.h.b16 %v600
      %v2239 = vunpack.c.l.b16 %v601
      %v2240 = vunpack.c.h.b16 %v601
      %v2241 = vunpack.c.l.b16 %v602
      %v2242 = vunpack.c.h.b16 %v602
      %v2243 = vunpack.c.l.b16 %v603
      %v2244 = vunpack.c.h.b16 %v603
      %v2245 = vunpack.c.l.b16 %v604
      %v2246 = vunpack.c.h.b16 %v604
      %v2247 = vunpack.c.l.b16 %v605
      %v2248 = vunpack.c.h.b16 %v605
      %v2249 = vunpack.c.l.b16 %v606
      %v2250 = vunpack.c.h.b16 %v606
      %v2251 = vunpack.c.l.b16 %v607
      %v2252 = vunpack.c.h.b16 %v607
      %v2253 = vunpack.c.l.b16 %v608
      %v2254 = vunpack.c.h.b16 %v608
      %v2255 = vunpack.c.l.b16 %v609
      %v2256 = vunpack.c.h.b16 %v609
      %v2257 = vunpack.c.l.b16 %v610
      %v2258 = vunpack.c.h.b16 %v610
      %v2259 = vunpack.c.l.b16 %v611
      %v2260 = vunpack.c.h.b16 %v611
      %v2261 = vunpack.c.l.b16 %v612
      %v2262 = vunpack.c.h.b16 %v612
      %v2263 = vunpack.c.l.b16 %v613
      %v2264 = vunpack.c.h.b16 %v613
      %v2265 = vunpack.c.l.b16 %v614
      %v2266 = vunpack.c.h.b16 %v614
      %v2267 = vunpack.c.l.b16 %v615
      %v2268 = vunpack.c.h.b16 %v615
      %v2269 = vunpack.c.l.b16 %v616
      %v2270 = vunpack.c.h.b16 %v616
      %v2271 = vunpack.c.l.b16 %v617
      %v2272 = vunpack.c.h.b16 %v617
      %v2273 = vunpack.c.l.b16 %v618
      %v2274 = vunpack.c.h.b16 %v618
      %v2275 = vunpack.c.l.b16 %v619
      %v2276 = vunpack.c.h.b16 %v619
      %v2277 = vunpack.c.l.b16 %v620
      %v2278 = vunpack.c.h.b16 %v620
      %v2279 = vunpack.c.l.b16 %v621
      %v2280 = vunpack.c.h.b16 %v621
      %v2281 = vunpack.c.l.b16 %v622
      %v2282 = vunpack.c.h.b16 %v622
      %v2283 = vunpack.c.l.b16 %v623
      %v2284 = vunpack.c.h.b16 %v623
      %v2285 = vunpack.c.l.b16 %v624
      %v2286 = vunpack.c.h.b16 %v624
      %v2287 = vunpack.c.l.b16 %v625
      %v2288 = vunpack.c.h.b16 %v625
      %v2289 = vunpack.c.l.b16 %v626
      %v2290 = vunpack.c.h.b16 %v626
      %v2291 = vunpack.c.l.b16 %v627
      %v2292 = vunpack.c.h.b16 %v627
      %v2293 = vunpack.c.l.b16 %v628
      %v2294 = vunpack.c.h.b16 %v628
      %v2295 = vunpack.c.l.b16 %v629
      %v2296 = vunpack.c.h.b16 %v629
      %v2297 = vunpack.c.l.b16 %v630
      %v2298 = vunpack.c.h.b16 %v630
      %v2299 = vunpack.c.l.b16 %v631
      %v2300 = vunpack.c.h.b16 %v631
      %v2301 = vunpack.c.l.b16 %v632
      %v2302 = vunpack.c.h.b16 %v632
      %v2303 = vunpack.c.l.b16 %v633
      %v2304 = vunpack.c.h.b16 %v633
      %v2305 = vunpack.c.l.b16 %v634
      %v2306 = vunpack.c.h.b16 %v634
      %v2307 = vunpack.c.l.b16 %v635
      %v2308 = vunpack.c.h.b16 %v635
      %v2309 = vunpack.c.l.b16 %v636
      %v2310 = vunpack.c.h.b16 %v636
      %v2311 = vunpack.c.l.b16 %v637
      %v2312 = vunpack.c.h.b16 %v637
      %v2313 = vunpack.c.l.b16 %v638
      %v2314 = vunpack.c.h.b16 %v638
      %v2315 = vunpack.c.l.b16 %v639
      %v2316 = vunpack.c.h.b16 %v639
      %v2317 = vunpack.c.l.b16 %v640
      %v2318 = vunpack.c.h.b16 %v640
      %v2319 = vunpack.c.l.b16 %v641
      %v2320 = vunpack.c.h.b16 %v641
      %v2321 = vunpack.c.l.b16 %v642
      %v2322 = vunpack.c.h.b16 %v642
      %v2323 = vunpack.c.l.b16 %v643
      %v2324 = vunpack.c.h.b16 %v643
      %v2325 = vunpack.c.l.b16 %v644
      %v2326 = vunpack.c.h.b16 %v644
      %v2327 = vunpack.c.l.b16 %v645
      %v2328 = vunpack.c.h.b16 %v645
      %v2329 = vunpack.c.l.b16 %v646
      %v2330 = vunpack.c.h.b16 %v646
      %v2331 = vunpack.c.l.b16 %v647
      %v2332 = vunpack.c.h.b16 %v647
      %v2333 = vunpack.c.l.b16 %v648
      %v2334 = vunpack.c.h.b16 %v648
      %v2335 = vunpack.c.l.b16 %v649
      %v2336 = vunpack.c.h.b16 %v649
      %v2337 = vunpack.c.l.b16 %v650
      %v2338 = vunpack.c.h.b16 %v650
      %v2339 = vunpack.c.l.b16 %v651
      %v2340 = vunpack.c.h.b16 %v651
      %v2341 = vunpack.c.l.b16 %v652
      %v2342 = vunpack.c.h.b16 %v652
      %v2343 = vunpack.c.l.b16 %v653
      %v2344 = vunpack.c.h.b16 %v653
      %v2345 = vunpack.c.l.b16 %v654
      %v2346 = vunpack.c.h.b16 %v654
      %v2347 = vunpack.c.l.b16 %v655
      %v2348 = vunpack.c.h.b16 %v655
      %v2349 = vunpack.c.l.b16 %v656
      %v2350 = vunpack.c.h.b16 %v656
      %v2351 = vunpack.c.l.b16 %v657
      %v2352 = vunpack.c.h.b16 %v657
      %v2353 = vunpack.c.l.b16 %v658
      %v2354 = vunpack.c.h.b16 %v658
      %v2355 = vunpack.c.l.b16 %v659
      %v2356 = vunpack.c.h.b16 %v659
      %v2357 = vunpack.c.l.b16 %v660
      %v2358 = vunpack.c.h.b16 %v660
      %v2359 = vunpack.c.l.b16 %v661
      %v2360 = vunpack.c.h.b16 %v661
      %v2361 = vunpack.c.l.b16 %v662
      %v2362 = vunpack.c.h.b16 %v662
      %v2363 = vunpack.c.l.b16 %v663
      %v2364 = vunpack.c.h.b16 %v663
      %v2365 = vunpack.c.l.b16 %v664
      %v2366 = vunpack.c.h.b16 %v664
      %v2367 = vunpack.c.l.b16 %v665
      %v2368 = vunpack.c.h.b16 %v665
      %v2369 = vunpack.c.l.b16 %v666
      %v2370 = vunpack.c.h.b16 %v666
      %v2371 = vunpack.c.l.b16 %v667
      %v2372 = vunpack.c.h.b16 %v667
      %v2373 = vunpack.c.l.b16 %v668
      %v2374 = vunpack.c.h.b16 %v668
      %v2375 = vunpack.c.l.b16 %v669
      %v2376 = vunpack.c.h.b16 %v669
      %v2377 = vunpack.c.l.b16 %v670
      %v2378 = vunpack.c.h.b16 %v670
      %v2379 = vunpack.c.l.b16 %v671
      %v2380 = vunpack.c.h.b16 %v671
      %v2381 = vunpack.c.l.b16 %v672
      %v2382 = vunpack.c.h.b16 %v672
      %v2383 = vunpack.c.l.b16 %v673
      %v2384 = vunpack.c.h.b16 %v673
      %v2385 = vunpack.c.l.b16 %v674
      %v2386 = vunpack.c.h.b16 %v674
      %v2387 = vunpack.c.l.b16 %v675
      %v2388 = vunpack.c.h.b16 %v675
      %v2389 = vunpack.c.l.b16 %v676
      %v2390 = vunpack.c.h.b16 %v676
      %v2391 = vunpack.c.l.b16 %v677
      %v2392 = vunpack.c.h.b16 %v677
      %v2393 = vunpack.c.l.b16 %v678
      %v2394 = vunpack.c.h.b16 %v678
      %v2395 = vunpack.c.l.b16 %v679
      %v2396 = vunpack.c.h.b16 %v679
      %v2397 = vunpack.c.l.b16 %v680
      %v2398 = vunpack.c.h.b16 %v680
      %v2399 = vunpack.c.l.b16 %v681
      %v2400 = vunpack.c.h.b16 %v681
      %v2401 = vunpack.c.l.b16 %v682
      %v2402 = vunpack.c.h.b16 %v682
      %v2403 = vunpack.c.l.b16 %v683
      %v2404 = vunpack.c.h.b16 %v683
      %v2405 = vunpack.c.l.b16 %v684
      %v2406 = vunpack.c.h.b16 %v684
      %v2407 = vunpack.c.l.b16 %v685
      %v2408 = vunpack.c.h.b16 %v685
      %v2409 = vunpack.c.l.b16 %v686
      %v2410 = vunpack.c.h.b16 %v686
      %v2411 = vunpack.c.l.b16 %v687
      %v2412 = vunpack.c.h.b16 %v687
      %v2413 = vunpack.c.l.b16 %v688
      %v2414 = vunpack.c.h.b16 %v688
      %v2415 = vunpack.c.l.b16 %v689
      %v2416 = vunpack.c.h.b16 %v689
      %v2417 = vunpack.c.l.b16 %v690
      %v2418 = vunpack.c.h.b16 %v690
      %v2419 = vunpack.c.l.b16 %v691
      %v2420 = vunpack.c.h.b16 %v691
      %v2421 = vunpack.c.l.b16 %v692
      %v2422 = vunpack.c.h.b16 %v692
      %v2423 = vunpack.c.l.b16 %v693
      %v2424 = vunpack.c.h.b16 %v693
      %v2425 = vunpack.c.l.b16 %v694
      %v2426 = vunpack.c.h.b16 %v694
      %v2427 = vunpack.c.l.b16 %v695
      %v2428 = vunpack.c.h.b16 %v695
      %v2429 = vunpack.c.l.b16 %v696
      %v2430 = vunpack.c.h.b16 %v696
      %v2431 = vunpack.c.l.b16 %v697
      %v2432 = vunpack.c.h.b16 %v697
      %v2433 = vunpack.c.l.b16 %v698
      %v2434 = vunpack.c.h.b16 %v698
      %v2435 = vunpack.c.l.b16 %v699
      %v2436 = vunpack.c.h.b16 %v699
      %v2437 = vunpack.c.l.b16 %v700
      %v2438 = vunpack.c.h.b16 %v700
      %v2439 = vunpack.c.l.b16 %v701
      %v2440 = vunpack.c.h.b16 %v701
      %v2441 = vunpack.c.l.b16 %v702
      %v2442 = vunpack.c.h.b16 %v702
      %v2443 = vunpack.c.l.b16 %v703
      %v2444 = vunpack.c.h.b16 %v703
      %v2445 = vunpack.c.l.b16 %v704
      %v2446 = vunpack.c.h.b16 %v704
      %v2447 = vunpack.c.l.b16 %v705
      %v2448 = vunpack.c.h.b16 %v705
      %v2449 = vunpack.c.l.b16 %v706
      %v2450 = vunpack.c.h.b16 %v706
      %v2451 = vunpack.c.l.b16 %v707
      %v2452 = vunpack.c.h.b16 %v707
      %v2453 = vunpack.c.l.b16 %v708
      %v2454 = vunpack.c.h.b16 %v708
      %v2455 = vunpack.c.l.b16 %v709
      %v2456 = vunpack.c.h.b16 %v709
      %v2457 = vunpack.c.l.b16 %v710
      %v2458 = vunpack.c.h.b16 %v710
      %v2459 = vunpack.c.l.b16 %v711
      %v2460 = vunpack.c.h.b16 %v711
      %v2461 = vunpack.c.l.b16 %v712
      %v2462 = vunpack.c.h.b16 %v712
      %v2463 = vunpack.c.l.b16 %v713
      %v2464 = vunpack.c.h.b16 %v713
      %v2465 = vunpack.c.l.b16 %v714
      %v2466 = vunpack.c.h.b16 %v714
      %v2467 = vunpack.c.l.b16 %v715
      %v2468 = vunpack.c.h.b16 %v715
      %v2469 = vunpack.c.l.b16 %v716
      %v2470 = vunpack.c.h.b16 %v716
      %v2471 = vunpack.c.l.b16 %v717
      %v2472 = vunpack.c.h.b16 %v717
      %v2473 = vunpack.c.l.b16 %v718
      %v2474 = vunpack.c.h.b16 %v718
      %v2475 = vunpack.c.l.b16 %v719
      %v2476 = vunpack.c.h.b16 %v719
      %v2477 = vunpack.c.l.b16 %v720
      %v2478 = vunpack.c.h.b16 %v720
      %v2479 = vunpack.c.l.b16 %v721
      %v2480 = vunpack.c.h.b16 %v721
      %v2481 = vunpack.c.l.b16 %v722
      %v2482 = vunpack.c.h.b16 %v722
      %v2483 = vunpack.c.l.b16 %v723
      %v2484 = vunpack.c.h.b16 %v723
      %v2485 = vunpack.c.l.b16 %v724
      %v2486 = vunpack.c.h.b16 %v724
      %v2487 = vunpack.c.l.b16 %v725
      %v2488 = vunpack.c.h.b16 %v725
      %v2489 = vunpack.c.l.b16 %v726
      %v2490 = vunpack.c.h.b16 %v726
      %v2491 = vunpack.c.l.b16 %v727
      %v2492 = vunpack.c.h.b16 %v727
      %v2493 = vunpack.c.l.b16 %v728
      %v2494 = vunpack.c.h.b16 %v728
      %v2495 = vunpack.c.l.b16 %v729
      %v2496 = vunpack.c.h.b16 %v729
      %v2497 = vunpack.c.l.b16 %v730
      %v2498 = vunpack.c.h.b16 %v730
      %v2499 = vunpack.c.l.b16 %v731
      %v2500 = vunpack.c.h.b16 %v731
      %v2501 = vunpack.c.l.b16 %v732
      %v2502 = vunpack.c.h.b16 %v732
      %v2503 = vunpack.c.l.b16 %v733
      %v2504 = vunpack.c.h.b16 %v733
      %v2505 = vunpack.c.l.b16 %v734
      %v2506 = vunpack.c.h.b16 %v734
      %v2507 = vunpack.c.l.b16 %v735
      %v2508 = vunpack.c.h.b16 %v735
      %v2509 = vunpack.c.l.b16 %v736
      %v2510 = vunpack.c.h.b16 %v736
      %v2511 = vunpack.c.l.b16 %v737
      %v2512 = vunpack.c.h.b16 %v737
      %v2513 = vunpack.c.l.b16 %v738
      %v2514 = vunpack.c.h.b16 %v738
      %v2515 = vunpack.c.l.b16 %v739
      %v2516 = vunpack.c.h.b16 %v739
      %v2517 = vunpack.c.l.b16 %v740
      %v2518 = vunpack.c.h.b16 %v740
      %v2519 = vunpack.c.l.b16 %v741
      %v2520 = vunpack.c.h.b16 %v741
      %v2521 = vunpack.c.l.b16 %v742
      %v2522 = vunpack.c.h.b16 %v742
      %v2523 = vunpack.c.l.b16 %v743
      %v2524 = vunpack.c.h.b16 %v743
      %v2525 = vunpack.c.l.b16 %v744
      %v2526 = vunpack.c.h.b16 %v744
      %v2527 = vunpack.c.l.b16 %v745
      %v2528 = vunpack.c.h.b16 %v745
      %v2529 = vunpack.c.l.b16 %v746
      %v2530 = vunpack.c.h.b16 %v746
      %v2531 = vunpack.c.l.b16 %v747
      %v2532 = vunpack.c.h.b16 %v747
      %v2533 = vunpack.c.l.b16 %v748
      %v2534 = vunpack.c.h.b16 %v748
      %v2535 = vunpack.c.l.b16 %v749
      %v2536 = vunpack.c.h.b16 %v749
      %v2537 = vunpack.c.l.b16 %v750
      %v2538 = vunpack.c.h.b16 %v750
      %v2539 = vunpack.c.l.b16 %v751
      %v2540 = vunpack.c.h.b16 %v751
      %v2541 = vunpack.c.l.b16 %v752
      %v2542 = vunpack.c.h.b16 %v752
      %v2543 = vunpack.c.l.b16 %v753
      %v2544 = vunpack.c.h.b16 %v753
      %v2545 = vpack.c.b16 %v1397, %v1393
      %v2546 = vpack.c.b16 %v1398, %v1394
      %v2547 = vpack.c.b16 %v1399, %v1395
      %v2548 = vpack.c.b16 %v1400, %v1396
      %v2549 = vpack.c.b16 %v1405, %v1401
      %v2550 = vpack.c.b16 %v1406, %v1402
      %v2551 = vpack.c.b16 %v1407, %v1403
      %v2552 = vpack.c.b16 %v1408, %v1404
      %v2553 = vpack.c.b16 %v1413, %v1409
      %v2554 = vpack.c.b16 %v1414, %v1410
      %v2555 = vpack.c.b16 %v1415, %v1411
      %v2556 = vpack.c.b16 %v1416, %v1412
      %v2557 = vpack.c.b16 %v1421, %v1417
      %v2558 = vpack.c.b16 %v1422, %v1418
      %v2559 = vpack.c.b16 %v1423, %v1419
      %v2560 = vpack.c.b16 %v1424, %v1420
      %v2561 = vpack.c.b16 %v1429, %v1425
      %v2562 = vpack.c.b16 %v1430, %v1426
      %v2563 = vpack.c.b16 %v1431, %v1427
      %v2564 = vpack.c.b16 %v1432, %v1428
      %v2565 = vpack.c.b16 %v1437, %v1433
      %v2566 = vpack.c.b16 %v1438, %v1434
      %v2567 = vpack.c.b16 %v1439, %v1435
      %v2568 = vpack.c.b16 %v1440, %v1436
      %v2569 = vpack.c.b16 %v1445, %v1441
      %v2570 = vpack.c.b16 %v1446, %v1442
      %v2571 = vpack.c.b16 %v1447, %v1443
      %v2572 = vpack.c.b16 %v1448, %v1444
      %v2573 = vpack.c.b16 %v1453, %v1449
      %v2574 = vpack.c.b16 %v1454, %v1450
      %v2575 = vpack.c.b16 %v1455, %v1451
      %v2576 = vpack.c.b16 %v1456, %v1452
      %v2577 = vpack.c.b16 %v1461, %v1457
      %v2578 = vpack.c.b16 %v1462, %v1458
      %v2579 = vpack.c.b16 %v1463, %v1459
      %v2580 = vpack.c.b16 %v1464, %v1460
      %v2581 = vpack.c.b16 %v1469, %v1465
      %v2582 = vpack.c.b16 %v1470, %v1466
      %v2583 = vpack.c.b16 %v1471, %v1467
      %v2584 = vpack.c.b16 %v1472, %v1468
      %v2585 = vpack.c.b16 %v1477, %v1473
      %v2586 = vpack.c.b16 %v1478, %v1474
      %v2587 = vpack.c.b16 %v1479, %v1475
      %v2588 = vpack.c.b16 %v1480, %v1476
      %v2589 = vpack.c.b16 %v1485, %v1481
      %v2590 = vpack.c.b16 %v1486, %v1482
      %v2591 = vpack.c.b16 %v1487, %v1483
      %v2592 = vpack.c.b16 %v1488, %v1484
      %v2593 = vpack.c.b16 %v1493, %v1489
      %v2594 = vpack.c.b16 %v1494, %v1490
      %v2595 = vpack.c.b16 %v1495, %v1491
      %v2596 = vpack.c.b16 %v1496, %v1492
      %v2597 = vpack.c.b16 %v1501, %v1497
      %v2598 = vpack.c.b16 %v1502, %v1498
      %v2599 = vpack.c.b16 %v1503, %v1499
      %v2600 = vpack.c.b16 %v1504, %v1500
      %v2601 = vpack.c.b16 %v1509, %v1505
      %v2602 = vpack.c.b16 %v1510, %v1506
      %v2603 = vpack.c.b16 %v1511, %v1507
      %v2604 = vpack.c.b16 %v1512, %v1508
      %v2605 = vpack.c.b16 %v1517, %v1513
      %v2606 = vpack.c.b16 %v1518, %v1514
      %v2607 = vpack.c.b16 %v1519, %v1515
      %v2608 = vpack.c.b16 %v1520, %v1516
      %v2609 = vpack.c.b16 %v1525, %v1521
      %v2610 = vpack.c.b16 %v1526, %v1522
      %v2611 = vpack.c.b16 %v1527, %v1523
      %v2612 = vpack.c.b16 %v1528, %v1524
      %v2613 = vpack.c.b16 %v1533, %v1529
      %v2614 = vpack.c.b16 %v1534, %v1530
      %v2615 = vpack.c.b16 %v1535, %v1531
      %v2616 = vpack.c.b16 %v1536, %v1532
      %v2617 = vpack.c.b16 %v1541, %v1537
      %v2618 = vpack.c.b16 %v1542, %v1538
      %v2619 = vpack.c.b16 %v1543, %v1539
      %v2620 = vpack.c.b16 %v1544, %v1540
      %v2621 = vpack.c.b16 %v1549, %v1545
      %v2622 = vpack.c.b16 %v1550, %v1546
      %v2623 = vpack.c.b16 %v1551, %v1547
      %v2624 = vpack.c.b16 %v1552, %v1548
      %v2625 = vpack.c.b16 %v1557, %v1553
      %v2626 = vpack.c.b16 %v1558, %v1554
      %v2627 = vpack.c.b16 %v1559, %v1555
      %v2628 = vpack.c.b16 %v1560, %v1556
      %v2629 = vpack.c.b16 %v1565, %v1561
      %v2630 = vpack.c.b16 %v1566, %v1562
      %v2631 = vpack.c.b16 %v1567, %v1563
      %v2632 = vpack.c.b16 %v1568, %v1564
      %v2633 = vpack.c.b16 %v1573, %v1569
      %v2634 = vpack.c.b16 %v1574, %v1570
      %v2635 = vpack.c.b16 %v1575, %v1571
      %v2636 = vpack.c.b16 %v1576, %v1572
      %v2637 = vpack.c.b16 %v1581, %v1577
      %v2638 = vpack.c.b16 %v1582, %v1578
      %v2639 = vpack.c.b16 %v1583, %v1579
      %v2640 = vpack.c.b16 %v1584, %v1580
      %v2641 = vpack.c.b16 %v1589, %v1585
      %v2642 = vpack.c.b16 %v1590, %v1586
      %v2643 = vpack.c.b16 %v1591, %v1587
      %v2644 = vpack.c.b16 %v1592, %v1588
      %v2645 = vpack.c.b16 %v1597, %v1593
      %v2646 = vpack.c.b16 %v1598, %v1594
      %v2647 = vpack.c.b16 %v1599, %v1595
      %v2648 = vpack.c.b16 %v1600, %v1596
      %v2649 = vpack.c.b16 %v1605, %v1601
      %v2650 = vpack.c.b16 %v1606, %v1602
      %v2651 = vpack.c.b16 %v1607, %v1603
      %v2652 = vpack.c.b16 %v1608, %v1604
      %v2653 = vpack.c.b16 %v1613, %v1609
      %v2654 = vpack.c.b16 %v1614, %v1610
      %v2655 = vpack.c.b16 %v1615, %v1611
      %v2656 = vpack.c.b16 %v1616, %v1612
      %v2657 = vpack.c.b16 %v1621, %v1617
      %v2658 = vpack.c.b16 %v1622, %v1618
      %v2659 = vpack.c.b16 %v1623, %v1619
      %v2660 = vpack.c.b16 %v1624, %v1620
      %v2661 = vpack.c.b16 %v1629, %v1625
      %v2662 = vpack.c.b16 %v1630, %v1626
      %v2663 = vpack.c.b16 %v1631, %v1627
      %v2664 = vpack.c.b16 %v1632, %v1628
      %v2665 = vpack.c.b16 %v1637, %v1633
      %v2666 = vpack.c.b16 %v1638, %v1634
      %v2667 = vpack.c.b16 %v1639, %v1635
      %v2668 = vpack.c.b16 %v1640, %v1636
      %v2669 = vpack.c.b16 %v1645, %v1641
      %v2670 = vpack.c.b16 %v1646, %v1642
      %v2671 = vpack.c.b16 %v1647, %v1643
      %v2672 = vpack.c.b16 %v1648, %v1644
      %v2673 = vpack.c.b16 %v1653, %v1649
      %v2674 = vpack.c.b16 %v1654, %v1650
      %v2675 = vpack.c.b16 %v1655, %v1651
      %v2676 = vpack.c.b16 %v1656, %v1652
      %v2677 = vpack.c.b16 %v1661, %v1657
      %v2678 = vpack.c.b16 %v1662, %v1658
      %v2679 = vpack.c.b16 %v1663, %v1659
      %v2680 = vpack.c.b16 %v1664, %v1660
      %v2681 = vpack.c.b16 %v1669, %v1665
      %v2682 = vpack.c.b16 %v1670, %v1666
      %v2683 = vpack.c.b16 %v1671, %v1667
      %v2684 = vpack.c.b16 %v1672, %v1668
      %v2685 = vpack.c.b16 %v1677, %v1673
      %v2686 = vpack.c.b16 %v1678, %v1674
      %v2687 = vpack.c.b16 %v1679, %v1675
      %v2688 = vpack.c.b16 %v1680, %v1676
      %v2689 = vpack.c.b16 %v1685, %v1681
      %v2690 = vpack.c.b16 %v1686, %v1682
      %v2691 = vpack.c.b16 %v1687, %v1683
      %v2692 = vpack.c.b16 %v1688, %v1684
      %v2693 = vpack.c.b16 %v1693, %v1689
      %v2694 = vpack.c.b16 %v1694, %v1690
      %v2695 = vpack.c.b16 %v1695, %v1691
      %v2696 = vpack.c.b16 %v1696, %v1692
      %v2697 = vpack.c.b16 %v1701, %v1697
      %v2698 = vpack.c.b16 %v1702, %v1698
      %v2699 = vpack.c.b16 %v1703, %v1699
      %v2700 = vpack.c.b16 %v1704, %v1700
      %v2701 = vpack.c.b16 %v1709, %v1705
      %v2702 = vpack.c.b16 %v1710, %v1706
      %v2703 = vpack.c.b16 %v1711, %v1707
      %v2704 = vpack.c.b16 %v1712, %v1708
      %v2705 = vpack.c.b16 %v1717, %v1713
      %v2706 = vpack.c.b16 %v1718, %v1714
      %v2707 = vpack.c.b16 %v1719, %v1715
      %v2708 = vpack.c.b16 %v1720, %v1716
      %v2709 = vpack.c.b16 %v1725, %v1721
      %v2710 = vpack.c.b16 %v1726, %v1722
      %v2711 = vpack.c.b16 %v1727, %v1723
      %v2712 = vpack.c.b16 %v1728, %v1724
      %v2713 = vpack.c.b16 %v1733, %v1729
      %v2714 = vpack.c.b16 %v1734, %v1730
      %v2715 = vpack.c.b16 %v1735, %v1731
      %v2716 = vpack.c.b16 %v1736, %v1732
      %v2717 = vpack.c.b16 %v1741, %v1737
      %v2718 = vpack.c.b16 %v1742, %v1738
      %v2719 = vpack.c.b16 %v1743, %v1739
      %v2720 = vpack.c.b16 %v1744, %v1740
      %v2721 = vpack.c.b16 %v1749, %v1745
      %v2722 = vpack.c.b16 %v1750, %v1746
      %v2723 = vpack.c.b16 %v1751, %v1747
      %v2724 = vpack.c.b16 %v1752, %v1748
      %v2725 = vpack.c.b16 %v1757, %v1753
      %v2726 = vpack.c.b16 %v1758, %v1754
      %v2727 = vpack.c.b16 %v1759, %v1755
      %v2728 = vpack.c.b16 %v1760, %v1756
      %v2729 = vpack.c.b16 %v1765, %v1761
      %v2730 = vpack.c.b16 %v1766, %v1762
      %v2731 = vpack.c.b16 %v1767, %v1763
      %v2732 = vpack.c.b16 %v1768, %v1764
      %v2733 = vpack.c.b16 %v1773, %v1769
      %v2734 = vpack.c.b16 %v1774, %v1770
      %v2735 = vpack.c.b16 %v1775, %v1771
      %v2736 = vpack.c.b16 %v1776, %v1772
      %v2737 = vpack.c.b16 %v1781, %v1777
      %v2738 = vpack.c.b16 %v1782, %v1778
      %v2739 = vpack.c.b16 %v1783, %v1779
      %v2740 = vpack.c.b16 %v1784, %v1780
      %v2741 = vpack.c.b16 %v1789, %v1785
      %v2742 = vpack.c.b16 %v1790, %v1786
      %v2743 = vpack.c.b16 %v1791, %v1787
      %v2744 = vpack.c.b16 %v1792, %v1788
      %v2745 = vpack.c.b16 %v1797, %v1793
      %v2746 = vpack.c.b16 %v1798, %v1794
      %v2747 = vpack.c.b16 %v1799, %v1795
      %v2748 = vpack.c.b16 %v1800, %v1796
      %v2749 = vpack.c.b16 %v1805, %v1801
      %v2750 = vpack.c.b16 %v1806, %v1802
      %v2751 = vpack.c.b16 %v1807, %v1803
      %v2752 = vpack.c.b16 %v1808, %v1804
      %v2753 = vpack.c.b16 %v1813, %v1809
      %v2754 = vpack.c.b16 %v1814, %v1810
      %v2755 = vpack.c.b16 %v1815, %v1811
      %v2756 = vpack.c.b16 %v1816, %v1812
      %v2757 = vpack.c.b16 %v1821, %v1817
      %v2758 = vpack.c.b16 %v1822, %v1818
      %v2759 = vpack.c.b16 %v1823, %v1819
      %v2760 = vpack.c.b16 %v1824, %v1820
      %v2761 = vpack.c.b16 %v1829, %v1825
      %v2762 = vpack.c.b16 %v1830, %v1826
      %v2763 = vpack.c.b16 %v1831, %v1827
      %v2764 = vpack.c.b16 %v1832, %v1828
      %v2765 = vpack.c.b16 %v1837, %v1833
      %v2766 = vpack.c.b16 %v1838, %v1834
      %v2767 = vpack.c.b16 %v1839, %v1835
      %v2768 = vpack.c.b16 %v1840, %v1836
      %v2769 = vpack.c.b16 %v1845, %v1841
      %v2770 = vpack.c.b16 %v1846, %v1842
      %v2771 = vpack.c.b16 %v1847, %v1843
      %v2772 = vpack.c.b16 %v1848, %v1844
      %v2773 = vpack.c.b16 %v1853, %v1849
      %v2774 = vpack.c.b16 %v1854, %v1850
      %v2775 = vpack.c.b16 %v1855, %v1851
      %v2776 = vpack.c.b16 %v1856, %v1852
      %v2777 = vpack.c.b16 %v1861, %v1857
      %v2778 = vpack.c.b16 %v1862, %v1858
      %v2779 = vpack.c.b16 %v1863, %v1859
      %v2780 = vpack.c.b16 %v1864, %v1860
      %v2781 = vpack.c.b16 %v1869, %v1865
      %v2782 = vpack.c.b16 %v1870, %v1866
      %v2783 = vpack.c.b16 %v1871, %v1867
      %v2784 = vpack.c.b16 %v1872, %v1868
      %v2785 = vpack.c.b16 %v1877, %v1873
      %v2786 = vpack.c.b16 %v1878, %v1874
      %v2787 = vpack.c.b16 %v1879, %v1875
      %v2788 = vpack.c.b16 %v1880, %v1876
      %v2789 = vpack.c.b16 %v1885, %v1881
      %v2790 = vpack.c.b16 %v1886, %v1882
      %v2791 = vpack.c.b16 %v1887, %v1883
      %v2792 = vpack.c.b16 %v1888, %v1884
      %v2793 = vpack.c.b16 %v1893, %v1889
      %v2794 = vpack.c.b16 %v1894, %v1890
      %v2795 = vpack.c.b16 %v1895, %v1891
      %v2796 = vpack.c.b16 %v1896, %v1892
      %v2797 = vpack.c.b16 %v1901, %v1897
      %v2798 = vpack.c.b16 %v1902, %v1898
      %v2799 = vpack.c.b16 %v1903, %v1899
      %v2800 = vpack.c.b16 %v1904, %v1900
      %v2801 = vpack.c.b16 %v1909, %v1905
      %v2802 = vpack.c.b16 %v1910, %v1906
      %v2803 = vpack.c.b16 %v1911, %v1907
      %v2804 = vpack.c.b16 %v1912, %v1908
      %v2805 = vpack.c.b16 %v1917, %v1913
      %v2806 = vpack.c.b16 %v1918, %v1914
      %v2807 = vpack.c.b16 %v1919, %v1915
      %v2808 = vpack.c.b16 %v1920, %v1916
      %v2809 = vpack.c.b16 %v1925, %v1921
      %v2810 = vpack.c.b16 %v1926, %v1922
      %v2811 = vpack.c.b16 %v1927, %v1923
      %v2812 = vpack.c.b16 %v1928, %v1924
      %v2813 = vpack.c.b16 %v1933, %v1929
      %v2814 = vpack.c.b16 %v1934, %v1930
      %v2815 = vpack.c.b16 %v1935, %v1931
      %v2816 = vpack.c.b16 %v1936, %v1932
      %v2817 = vpack.c.b16 %v1941, %v1937
      %v2818 = vpack.c.b16 %v1942, %v1938
      %v2819 = vpack.c.b16 %v1943, %v1939
      %v2820 = vpack.c.b16 %v1944, %v1940
      %v2821 = vpack.c.b16 %v1949, %v1945
      %v2822 = vpack.c.b16 %v1950, %v1946
      %v2823 = vpack.c.b16 %v1951, %v1947
      %v2824 = vpack.c.b16 %v1952, %v1948
      %v2825 = vpack.c.b16 %v1957, %v1953
      %v2826 = vpack.c.b16 %v1958, %v1954
      %v2827 = vpack.c.b16 %v1959, %v1955
      %v2828 = vpack.c.b16 %v1960, %v1956
      %v2829 = vpack.c.b16 %v1965, %v1961
      %v2830 = vpack.c.b16 %v1966, %v1962
      %v2831 = vpack.c.b16 %v1967, %v1963
      %v2832 = vpack.c.b16 %v1968, %v1964
      %v2833 = vpack.c.b16 %v1973, %v1969
      %v2834 = vpack.c.b16 %v1974, %v1970
      %v2835 = vpack.c.b16 %v1975, %v1971
      %v2836 = vpack.c.b16 %v1976, %v1972
      %v2837 = vpack.c.b16 %v1981, %v1977
      %v2838 = vpack.c.b16 %v1982, %v1978
      %v2839 = vpack.c.b16 %v1983, %v1979
      %v2840 = vpack.c.b16 %v1984, %v1980
      %v2841 = vpack.c.b16 %v1989, %v1985
      %v2842 = vpack.c.b16 %v1990, %v1986
      %v2843 = vpack.c.b16 %v1991, %v1987
      %v2844 = vpack.c.b16 %v1992, %v1988
      %v2845 = vpack.c.b16 %v1997, %v1993
      %v2846 = vpack.c.b16 %v1998, %v1994
      %v2847 = vpack.c.b16 %v1999, %v1995
      %v2848 = vpack.c.b16 %v2000, %v1996
      %v2849 = vpack.c.b16 %v2005, %v2001
      %v2850 = vpack.c.b16 %v2006, %v2002
      %v2851 = vpack.c.b16 %v2007, %v2003
      %v2852 = vpack.c.b16 %v2008, %v2004
      %v2853 = vpack.c.b16 %v2013, %v2009
      %v2854 = vpack.c.b16 %v2014, %v2010
      %v2855 = vpack.c.b16 %v2015, %v2011
      %v2856 = vpack.c.b16 %v2016, %v2012
      %v2857 = vpack.c.b16 %v2021, %v2017
      %v2858 = vpack.c.b16 %v2022, %v2018
      %v2859 = vpack.c.b16 %v2023, %v2019
      %v2860 = vpack.c.b16 %v2024, %v2020
      %v2861 = vpack.c.b16 %v2029, %v2025
      %v2862 = vpack.c.b16 %v2030, %v2026
      %v2863 = vpack.c.b16 %v2031, %v2027
      %v2864 = vpack.c.b16 %v2032, %v2028
      %v2865 = vpack.c.b16 %v2037, %v2033
      %v2866 = vpack.c.b16 %v2038, %v2034
      %v2867 = vpack.c.b16 %v2039, %v2035
      %v2868 = vpack.c.b16 %v2040, %v2036
      %v2869 = vpack.c.b16 %v2045, %v2041
      %v2870 = vpack.c.b16 %v2046, %v2042
      %v2871 = vpack.c.b16 %v2047, %v2043
      %v2872 = vpack.c.b16 %v2048, %v2044
      %v2873 = vpack.c.b16 %v2053, %v2049
      %v2874 = vpack.c.b16 %v2054, %v2050
      %v2875 = vpack.c.b16 %v2055, %v2051
      %v2876 = vpack.c.b16 %v2056, %v2052
      %v2877 = vpack.c.b16 %v2061, %v2057
      %v2878 = vpack.c.b16 %v2062, %v2058
      %v2879 = vpack.c.b16 %v2063, %v2059
      %v2880 = vpack.c.b16 %v2064, %v2060
      %v2881 = vpack.c.b16 %v2069, %v2065
      %v2882 = vpack.c.b16 %v2070, %v2066
      %v2883 = vpack.c.b16 %v2071, %v2067
      %v2884 = vpack.c.b16 %v2072, %v2068
      %v2885 = vpack.c.b16 %v2077, %v2073
      %v2886 = vpack.c.b16 %v2078, %v2074
      %v2887 = vpack.c.b16 %v2079, %v2075
      %v2888 = vpack.c.b16 %v2080, %v2076
      %v2889 = vpack.c.b16 %v2085, %v2081
      %v2890 = vpack.c.b16 %v2086, %v2082
      %v2891 = vpack.c.b16 %v2087, %v2083
      %v2892 = vpack.c.b16 %v2088, %v2084
      %v2893 = vpack.c.b16 %v2093, %v2089
      %v2894 = vpack.c.b16 %v2094, %v2090
      %v2895 = vpack.c.b16 %v2095, %v2091
      %v2896 = vpack.c.b16 %v2096, %v2092
      %v2897 = vpack.c.b16 %v2101, %v2097
      %v2898 = vpack.c.b16 %v2102, %v2098
      %v2899 = vpack.c.b16 %v2103, %v2099
      %v2900 = vpack.c.b16 %v2104, %v2100
      %v2901 = vpack.c.b16 %v2109, %v2105
      %v2902 = vpack.c.b16 %v2110, %v2106
      %v2903 = vpack.c.b16 %v2111, %v2107
      %v2904 = vpack.c.b16 %v2112, %v2108
      %v2905 = vpack.c.b16 %v2117, %v2113
      %v2906 = vpack.c.b16 %v2118, %v2114
      %v2907 = vpack.c.b16 %v2119, %v2115
      %v2908 = vpack.c.b16 %v2120, %v2116
      %v2909 = vpack.c.b16 %v2125, %v2121
      %v2910 = vpack.c.b16 %v2126, %v2122
      %v2911 = vpack.c.b16 %v2127, %v2123
      %v2912 = vpack.c.b16 %v2128, %v2124
      %v2913 = vpack.c.b16 %v2133, %v2129
      %v2914 = vpack.c.b16 %v2134, %v2130
      %v2915 = vpack.c.b16 %v2135, %v2131
      %v2916 = vpack.c.b16 %v2136, %v2132
      %v2917 = vpack.c.b16 %v2141, %v2137
      %v2918 = vpack.c.b16 %v2142, %v2138
      %v2919 = vpack.c.b16 %v2143, %v2139
      %v2920 = vpack.c.b16 %v2144, %v2140
      %v2921 = vpack.c.b16 %v2149, %v2145
      %v2922 = vpack.c.b16 %v2150, %v2146
      %v2923 = vpack.c.b16 %v2151, %v2147
      %v2924 = vpack.c.b16 %v2152, %v2148
      %v2925 = vpack.c.b16 %v2157, %v2153
      %v2926 = vpack.c.b16 %v2158, %v2154
      %v2927 = vpack.c.b16 %v2159, %v2155
      %v2928 = vpack.c.b16 %v2160, %v2156
      %v2929 = vpack.c.b16 %v2165, %v2161
      %v2930 = vpack.c.b16 %v2166, %v2162
      %v2931 = vpack.c.b16 %v2167, %v2163
      %v2932 = vpack.c.b16 %v2168, %v2164
      %v2933 = vpack.c.b16 %v2173, %v2169
      %v2934 = vpack.c.b16 %v2174, %v2170
      %v2935 = vpack.c.b16 %v2175, %v2171
      %v2936 = vpack.c.b16 %v2176, %v2172
      %v2937 = vpack.c.b16 %v2181, %v2177
      %v2938 = vpack.c.b16 %v2182, %v2178
      %v2939 = vpack.c.b16 %v2183, %v2179
      %v2940 = vpack.c.b16 %v2184, %v2180
      %v2941 = vpack.c.b16 %v2189, %v2185
      %v2942 = vpack.c.b16 %v2190, %v2186
      %v2943 = vpack.c.b16 %v2191, %v2187
      %v2944 = vpack.c.b16 %v2192, %v2188
      %v2945 = vpack.c.b16 %v2197, %v2193
      %v2946 = vpack.c.b16 %v2198, %v2194
      %v2947 = vpack.c.b16 %v2199, %v2195
      %v2948 = vpack.c.b16 %v2200, %v2196
      %v2949 = vpack.c.b16 %v2205, %v2201
      %v2950 = vpack.c.b16 %v2206, %v2202
      %v2951 = vpack.c.b16 %v2207, %v2203
      %v2952 = vpack.c.b16 %v2208, %v2204
      %v2953 = vpack.c.b16 %v2213, %v2209
      %v2954 = vpack.c.b16 %v2214, %v2210
      %v2955 = vpack.c.b16 %v2215, %v2211
      %v2956 = vpack.c.b16 %v2216, %v2212
      %v2957 = vpack.c.b16 %v2221, %v2217
      %v2958 = vpack.c.b16 %v2222, %v2218
      %v2959 = vpack.c.b16 %v2223, %v2219
      %v2960 = vpack.c.b16 %v2224, %v2220
      %v2961 = vpack.c.b16 %v2229, %v2225
      %v2962 = vpack.c.b16 %v2230, %v2226
      %v2963 = vpack.c.b16 %v2231, %v2227
      %v2964 = vpack.c.b16 %v2232, %v2228
      %v2965 = vpack.c.b16 %v2237, %v2233
      %v2966 = vpack.c.b16 %v2238, %v2234
      %v2967 = vpack.c.b16 %v2239, %v2235
      %v2968 = vpack.c.b16 %v2240, %v2236
      %v2969 = vpack.c.b16 %v2245, %v2241
      %v2970 = vpack.c.b16 %v2246, %v2242
      %v2971 = vpack.c.b16 %v2247, %v2243
      %v2972 = vpack.c.b16 %v2248, %v2244
      %v2973 = vpack.c.b16 %v2253, %v2249
      %v2974 = vpack.c.b16 %v2254, %v2250
      %v2975 = vpack.c.b16 %v2255, %v2251
      %v2976 = vpack.c.b16 %v2256, %v2252
      %v2977 = vpack.c.b16 %v2261, %v2257
      %v2978 = vpack.c.b16 %v2262, %v2258
      %v2979 = vpack.c.b16 %v2263, %v2259
      %v2980 = vpack.c.b16 %v2264, %v2260
      %v2981 = vpack.c.b16 %v2269, %v2265
      %v2982 = vpack.c.b16 %v2270, %v2266
      %v2983 = vpack.c.b16 %v2271, %v2267
      %v2984 = vpack.c.b16 %v2272, %v2268
      %v2985 = vpack.c.b16 %v2277, %v2273
      %v2986 = vpack.c.b16 %v2278, %v2274
      %v2987 = vpack.c.b16 %v2279, %v2275
      %v2988 = vpack.c.b16 %v2280, %v2276
      %v2989 = vpack.c.b16 %v2285, %v2281
      %v2990 = vpack.c.b16 %v2286, %v2282
      %v2991 = vpack.c.b16 %v2287, %v2283
      %v2992 = vpack.c.b16 %v2288, %v2284
      %v2993 = vpack.c.b16 %v2293, %v2289
      %v2994 = vpack.c.b16 %v2294, %v2290
      %v2995 = vpack.c.b16 %v2295, %v2291
      %v2996 = vpack.c.b16 %v2296, %v2292
      %v2997 = vpack.c.b16 %v2301, %v2297
      %v2998 = vpack.c.b16 %v2302, %v2298
      %v2999 = vpack.c.b16 %v2303, %v2299
      %v3000 = vpack.c.b16 %v2304, %v2300
      %v3001 = vpack.c.b16 %v2309, %v2305
      %v3002 = vpack.c.b16 %v2310, %v2306
      %v3003 = vpack.c.b16 %v2311, %v2307
      %v3004 = vpack.c.b16 %v2312, %v2308
      %v3005 = vpack.c.b16 %v2317, %v2313
      %v3006 = vpack.c.b16 %v2318, %v2314
      %v3007 = vpack.c.b16 %v2319, %v2315
      %v3008 = vpack.c.b16 %v2320, %v2316
      %v3009 = vpack.c.b16 %v2325, %v2321
      %v3010 = vpack.c.b16 %v2326, %v2322
      %v3011 = vpack.c.b16 %v2327, %v2323
      %v3012 = vpack.c.b16 %v2328, %v2324
      %v3013 = vpack.c.b16 %v2333, %v2329
      %v3014 = vpack.c.b16 %v2334, %v2330
      %v3015 = vpack.c.b16 %v2335, %v2331
      %v3016 = vpack.c.b16 %v2336, %v2332
      %v3017 = vpack.c.b16 %v2341, %v2337
      %v3018 = vpack.c.b16 %v2342, %v2338
      %v3019 = vpack.c.b16 %v2343, %v2339
      %v3020 = vpack.c.b16 %v2344, %v2340
      %v3021 = vpack.c.b16 %v2349, %v2345
      %v3022 = vpack.c.b16 %v2350, %v2346
      %v3023 = vpack.c.b16 %v2351, %v2347
      %v3024 = vpack.c.b16 %v2352, %v2348
      %v3025 = vpack.c.b16 %v2357, %v2353
      %v3026 = vpack.c.b16 %v2358, %v2354
      %v3027 = vpack.c.b16 %v2359, %v2355
      %v3028 = vpack.c.b16 %v2360, %v2356
      %v3029 = vpack.c.b16 %v2365, %v2361
      %v3030 = vpack.c.b16 %v2366, %v2362
      %v3031 = vpack.c.b16 %v2367, %v2363
      %v3032 = vpack.c.b16 %v2368, %v2364
      %v3033 = vpack.c.b16 %v2373, %v2369
      %v3034 = vpack.c.b16 %v2374, %v2370
      %v3035 = vpack.c.b16 %v2375, %v2371
      %v3036 = vpack.c.b16 %v2376, %v2372
      %v3037 = vpack.c.b16 %v2381, %v2377
      %v3038 = vpack.c.b16 %v2382, %v2378
      %v3039 = vpack.c.b16 %v2383, %v2379
      %v3040 = vpack.c.b16 %v2384, %v2380
      %v3041 = vpack.c.b16 %v2389, %v2385
      %v3042 = vpack.c.b16 %v2390, %v2386
      %v3043 = vpack.c.b16 %v2391, %v2387
      %v3044 = vpack.c.b16 %v2392, %v2388
      %v3045 = vpack.c.b16 %v2397, %v2393
      %v3046 = vpack.c.b16 %v2398, %v2394
      %v3047 = vpack.c.b16 %v2399, %v2395
      %v3048 = vpack.c.b16 %v2400, %v2396
      %v3049 = vpack.c.b16 %v2405, %v2401
      %v3050 = vpack.c.b16 %v2406, %v2402
      %v3051 = vpack.c.b16 %v2407, %v2403
      %v3052 = vpack.c.b16 %v2408, %v2404
      %v3053 = vpack.c.b16 %v2413, %v2409
      %v3054 = vpack.c.b16 %v2414, %v2410
      %v3055 = vpack.c.b16 %v2415, %v2411
      %v3056 = vpack.c.b16 %v2416, %v2412
      %v3057 = vpack.c.b16 %v2421, %v2417
      %v3058 = vpack.c.b16 %v2422, %v2418
      %v3059 = vpack.c.b16 %v2423, %v2419
      %v3060 = vpack.c.b16 %v2424, %v2420
      %v3061 = vpack.c.b16 %v2429, %v2425
      %v3062 = vpack.c.b16 %v2430, %v2426
      %v3063 = vpack.c.b16 %v2431, %v2427
      %v3064 = vpack.c.b16 %v2432, %v2428
      %v3065 = vpack.c.b16 %v2437, %v2433
      %v3066 = vpack.c.b16 %v2438, %v2434
      %v3067 = vpack.c.b16 %v2439, %v2435
      %v3068 = vpack.c.b16 %v2440, %v2436
      %v3069 = vpack.c.b16 %v2445, %v2441
      %v3070 = vpack.c.b16 %v2446, %v2442
      %v3071 = vpack.c.b16 %v2447, %v2443
      %v3072 = vpack.c.b16 %v2448, %v2444
      %v3073 = vpack.c.b16 %v2453, %v2449
      %v3074 = vpack.c.b16 %v2454, %v2450
      %v3075 = vpack.c.b16 %v2455, %v2451
      %v3076 = vpack.c.b16 %v2456, %v2452
      %v3077 = vpack.c.b16 %v2461, %v2457
      %v3078 = vpack.c.b16 %v2462, %v2458
      %v3079 = vpack.c.b16 %v2463, %v2459
      %v3080 = vpack.c.b16 %v2464, %v2460
      %v3081 = vpack.c.b16 %v2469, %v2465
      %v3082 = vpack.c.b16 %v2470, %v2466
      %v3083 = vpack.c.b16 %v2471, %v2467
      %v3084 = vpack.c.b16 %v2472, %v2468
      %v3085 = vpack.c.b16 %v2477, %v2473
      %v3086 = vpack.c.b16 %v2478, %v2474
      %v3087 = vpack.c.b16 %v2479, %v2475
      %v3088 = vpack.c.b16 %v2480, %v2476
      %v3089 = vpack.c.b16 %v2485, %v2481
      %v3090 = vpack.c.b16 %v2486, %v2482
      %v3091 = vpack.c.b16 %v2487, %v2483
      %v3092 = vpack.c.b16 %v2488, %v2484
      %v3093 = vpack.c.b16 %v2493, %v2489
      %v3094 = vpack.c.b16 %v2494, %v2490
      %v3095 = vpack.c.b16 %v2495, %v2491
      %v3096 = vpack.c.b16 %v2496, %v2492
      %v3097 = vpack.c.b16 %v2501, %v2497
      %v3098 = vpack.c.b16 %v2502, %v2498
      %v3099 = vpack.c.b16 %v2503, %v2499
      %v3100 = vpack.c.b16 %v2504, %v2500
      %v3101 = vpack.c.b16 %v2509, %v2505
      %v3102 = vpack.c.b16 %v2510, %v2506
      %v3103 = vpack.c.b16 %v2511, %v2507
      %v3104 = vpack.c.b16 %v2512, %v2508
      %v3105 = vpack.c.b16 %v2517, %v2513
      %v3106 = vpack.c.b16 %v2518, %v2514
      %v3107 = vpack.c.b16 %v2519, %v2515
      %v3108 = vpack.c.b16 %v2520, %v2516
      %v3109 = vpack.c.b16 %v2525, %v2521
      %v3110 = vpack.c.b16 %v2526, %v2522
      %v3111 = vpack.c.b16 %v2527, %v2523
      %v3112 = vpack.c.b16 %v2528, %v2524
      %v3113 = vpack.c.b16 %v2533, %v2529
      %v3114 = vpack.c.b16 %v2534, %v2530
      %v3115 = vpack.c.b16 %v2535, %v2531
      %v3116 = vpack.c.b16 %v2536, %v2532
      %v3117 = vpack.c.b16 %v2541, %v2537
      %v3118 = vpack.c.b16 %v2542, %v2538
      %v3119 = vpack.c.b16 %v2543, %v2539
      %v3120 = vpack.c.b16 %v2544, %v2540
      %3697 = vmatprep.subr.bf16.mxu0 %v2574
      %3698 = vmatpush1.bf16.msra.mxu0 %v2573
      %3699 = vmatprep.subr.bf16.mxu0 %v2570
      %3700 = vmatpush1.bf16.msra.mxu0 %v2569
      %3701 = vmatprep.subr.bf16.mxu0 %v2566
      %3702 = vmatpush1.bf16.msra.mxu0 %v2565
      %3703 = vmatprep.subr.bf16.mxu0 %v2562
      %3704 = vmatpush1.bf16.msra.mxu0 %v2561
      %3705 = vmatprep.subr.bf16.mxu0 %v2558
      %3706 = vmatpush1.bf16.msra.mxu0 %v2557
      %3707 = vmatprep.subr.bf16.mxu0 %v2554
      %3708 = vmatpush1.bf16.msra.mxu0 %v2553
      %3709 = vmatprep.subr.bf16.mxu0 %v2550
      %3710 = vmatpush1.bf16.msra.mxu0 %v2549
      %3711 = vmatprep.subr.bf16.mxu0 %v2546
      %3712 = vmatpush1.bf16.msra.mxu0 %v2545
      %3713 = vmatprep.subr.bf16.mxu0 %v2606
      %3714 = vmatpush2.bf16.msra.mxu0 %v2605
      %3715 = vmatprep.subr.bf16.mxu0 %v2602
      %3716 = vmatpush2.bf16.msra.mxu0 %v2601
      %3717 = vmatprep.subr.bf16.mxu0 %v2598
      %3718 = vmatpush2.bf16.msra.mxu0 %v2597
      %3719 = vmatprep.subr.bf16.mxu0 %v2594
      %3720 = vmatpush2.bf16.msra.mxu0 %v2593
      %3721 = vmatprep.subr.bf16.mxu0 %v2590
      %3722 = vmatpush2.bf16.msra.mxu0 %v2589
      %3723 = vmatprep.subr.bf16.mxu0 %v2586
      %3724 = vmatpush2.bf16.msra.mxu0 %v2585
      %3725 = vmatprep.subr.bf16.mxu0 %v2582
      %3726 = vmatpush2.bf16.msra.mxu0 %v2581
      %3727 = vmatprep.subr.bf16.mxu0 %v2578
      %3728 = vmatpush2.bf16.msra.mxu0 %v2577
      %3729 = vmatprep.mubr.bf16.mxu0 %v782
      %3730 = vmatmul.mubr.bf16.gmra.mxu0 %v781
      %v3731 = vpop.f32.mrf.mxu0
      %v3732 = vadd.f32 0.0, %v3731
      %v3733 = vpop.f32.mrf.mxu0
      %v3734 = vadd.f32 0.0, %v3733
      %v3735 = vpop.f32.mrf.mxu0
      %v3736 = vpop.f32.mrf.mxu0
      %3737 = vdwg.mxu0
      %3738 = vmatprep.subr.bf16.mxu0 %v2638
      %3739 = vmatpush1.bf16.msra.mxu0 %v2637
      %3740 = vmatprep.subr.bf16.mxu0 %v2634
      %3741 = vmatpush1.bf16.msra.mxu0 %v2633
      %3742 = vmatprep.subr.bf16.mxu0 %v2630
      %3743 = vmatpush1.bf16.msra.mxu0 %v2629
      %3744 = vmatprep.subr.bf16.mxu0 %v2626
      %3745 = vmatpush1.bf16.msra.mxu0 %v2625
      %3746 = vmatprep.subr.bf16.mxu0 %v2622
      %3747 = vmatpush1.bf16.msra.mxu0 %v2621
      %3748 = vmatprep.subr.bf16.mxu0 %v2618
      %3749 = vmatpush1.bf16.msra.mxu0 %v2617
      %3750 = vmatprep.subr.bf16.mxu0 %v2614
      %3751 = vmatpush1.bf16.msra.mxu0 %v2613
      %3752 = vmatprep.subr.bf16.mxu0 %v2610
      %3753 = vmatpush1.bf16.msra.mxu0 %v2609
      %3754 = vmatprep.subr.bf16.mxu0 %v2670
      %3755 = vmatpush2.bf16.msra.mxu0 %v2669
      %3756 = vmatprep.subr.bf16.mxu0 %v2666
      %3757 = vmatpush2.bf16.msra.mxu0 %v2665
      %3758 = vmatprep.subr.bf16.mxu0 %v2662
      %3759 = vmatpush2.bf16.msra.mxu0 %v2661
      %3760 = vmatprep.subr.bf16.mxu0 %v2658
      %3761 = vmatpush2.bf16.msra.mxu0 %v2657
      %3762 = vmatprep.subr.bf16.mxu0 %v2654
      %3763 = vmatpush2.bf16.msra.mxu0 %v2653
      %3764 = vmatprep.subr.bf16.mxu0 %v2650
      %3765 = vmatpush2.bf16.msra.mxu0 %v2649
      %3766 = vmatprep.subr.bf16.mxu0 %v2646
      %3767 = vmatpush2.bf16.msra.mxu0 %v2645
      %3768 = vmatprep.subr.bf16.mxu0 %v2642
      %3769 = vmatpush2.bf16.msra.mxu0 %v2641
      %3770 = vmatprep.mubr.bf16.mxu0 %v784
      %3771 = vmatmul.mubr.bf16.gmra.mxu0 %v783
      %v3772 = vpop.f32.mrf.mxu0
      %v3773 = vadd.f32 %v3732, %v3772
      %v3774 = vpop.f32.mrf.mxu0
      %v3775 = vadd.f32 %v3734, %v3774
      %v3776 = vpop.f32.mrf.mxu0
      %v3777 = vpop.f32.mrf.mxu0
      %3778 = vdwg.mxu0
      %3779 = vmatprep.subr.bf16.mxu0 %v2702
      %3780 = vmatpush1.bf16.msra.mxu0 %v2701
      %3781 = vmatprep.subr.bf16.mxu0 %v2698
      %3782 = vmatpush1.bf16.msra.mxu0 %v2697
      %3783 = vmatprep.subr.bf16.mxu0 %v2694
      %3784 = vmatpush1.bf16.msra.mxu0 %v2693
      %3785 = vmatprep.subr.bf16.mxu0 %v2690
      %3786 = vmatpush1.bf16.msra.mxu0 %v2689
      %3787 = vmatprep.subr.bf16.mxu0 %v2686
      %3788 = vmatpush1.bf16.msra.mxu0 %v2685
      %3789 = vmatprep.subr.bf16.mxu0 %v2682
      %3790 = vmatpush1.bf16.msra.mxu0 %v2681
      %3791 = vmatprep.subr.bf16.mxu0 %v2678
      %3792 = vmatpush1.bf16.msra.mxu0 %v2677
      %3793 = vmatprep.subr.bf16.mxu0 %v2674
      %3794 = vmatpush1.bf16.msra.mxu0 %v2673
      %3795 = vmatprep.subr.bf16.mxu0 %v2734
      %3796 = vmatpush2.bf16.msra.mxu0 %v2733
      %3797 = vmatprep.subr.bf16.mxu0 %v2730
      %3798 = vmatpush2.bf16.msra.mxu0 %v2729
      %3799 = vmatprep.subr.bf16.mxu0 %v2726
      %3800 = vmatpush2.bf16.msra.mxu0 %v2725
      %3801 = vmatprep.subr.bf16.mxu0 %v2722
      %3802 = vmatpush2.bf16.msra.mxu0 %v2721
      %3803 = vmatprep.subr.bf16.mxu0 %v2718
      %3804 = vmatpush2.bf16.msra.mxu0 %v2717
      %3805 = vmatprep.subr.bf16.mxu0 %v2714
      %3806 = vmatpush2.bf16.msra.mxu0 %v2713
      %3807 = vmatprep.subr.bf16.mxu0 %v2710
      %3808 = vmatpush2.bf16.msra.mxu0 %v2709
      %3809 = vmatprep.subr.bf16.mxu0 %v2706
      %3810 = vmatpush2.bf16.msra.mxu0 %v2705
      %3811 = vmatprep.mubr.bf16.mxu0 %v786
      %3812 = vmatmul.mubr.bf16.gmra.mxu0 %v785
      %v3813 = vpop.f32.mrf.mxu0
      %v3814 = vadd.f32 %v3773, %v3813
      %v3815 = vpop.f32.mrf.mxu0
      %v3816 = vadd.f32 %v3775, %v3815
      %v3817 = vpop.f32.mrf.mxu0
      %v3818 = vpop.f32.mrf.mxu0
      %3819 = vdwg.mxu0
      %3820 = vmatprep.subr.bf16.mxu0 %v2766
      %3821 = vmatpush1.bf16.msra.mxu0 %v2765
      %3822 = vmatprep.subr.bf16.mxu0 %v2762
      %3823 = vmatpush1.bf16.msra.mxu0 %v2761
      %3824 = vmatprep.subr.bf16.mxu0 %v2758
      %3825 = vmatpush1.bf16.msra.mxu0 %v2757
      %3826 = vmatprep.subr.bf16.mxu0 %v2754
      %3827 = vmatpush1.bf16.msra.mxu0 %v2753
      %3828 = vmatprep.subr.bf16.mxu0 %v2750
      %3829 = vmatpush1.bf16.msra.mxu0 %v2749
      %3830 = vmatprep.subr.bf16.mxu0 %v2746
      %3831 = vmatpush1.bf16.msra.mxu0 %v2745
      %3832 = vmatprep.subr.bf16.mxu0 %v2742
      %3833 = vmatpush1.bf16.msra.mxu0 %v2741
      %3834 = vmatprep.subr.bf16.mxu0 %v2738
      %3835 = vmatpush1.bf16.msra.mxu0 %v2737
      %3836 = vmatprep.subr.bf16.mxu0 %v2798
      %3837 = vmatpush2.bf16.msra.mxu0 %v2797
      %3838 = vmatprep.subr.bf16.mxu0 %v2794
      %3839 = vmatpush2.bf16.msra.mxu0 %v2793
      %3840 = vmatprep.subr.bf16.mxu0 %v2790
      %3841 = vmatpush2.bf16.msra.mxu0 %v2789
      %3842 = vmatprep.subr.bf16.mxu0 %v2786
      %3843 = vmatpush2.bf16.msra.mxu0 %v2785
      %3844 = vmatprep.subr.bf16.mxu0 %v2782
      %3845 = vmatpush2.bf16.msra.mxu0 %v2781
      %3846 = vmatprep.subr.bf16.mxu0 %v2778
      %3847 = vmatpush2.bf16.msra.mxu0 %v2777
      %3848 = vmatprep.subr.bf16.mxu0 %v2774
      %3849 = vmatpush2.bf16.msra.mxu0 %v2773
      %3850 = vmatprep.subr.bf16.mxu0 %v2770
      %3851 = vmatpush2.bf16.msra.mxu0 %v2769
      %3852 = vmatprep.mubr.bf16.mxu0 %v788
      %3853 = vmatmul.mubr.bf16.gmra.mxu0 %v787
      %v3854 = vpop.f32.mrf.mxu0
      %v3855 = vadd.f32 %v3814, %v3854
      %v3856 = vpop.f32.mrf.mxu0
      %v3857 = vadd.f32 %v3816, %v3856
      %v3858 = vpop.f32.mrf.mxu0
      %v3859 = vpop.f32.mrf.mxu0
      %3860 = vdwg.mxu0
      %3861 = vmatprep.subr.bf16.mxu0 %v2830
      %3862 = vmatpush1.bf16.msra.mxu0 %v2829
      %3863 = vmatprep.subr.bf16.mxu0 %v2826
      %3864 = vmatpush1.bf16.msra.mxu0 %v2825
      %3865 = vmatprep.subr.bf16.mxu0 %v2822
      %3866 = vmatpush1.bf16.msra.mxu0 %v2821
      %3867 = vmatprep.subr.bf16.mxu0 %v2818
      %3868 = vmatpush1.bf16.msra.mxu0 %v2817
      %3869 = vmatprep.subr.bf16.mxu0 %v2814
      %3870 = vmatpush1.bf16.msra.mxu0 %v2813
      %3871 = vmatprep.subr.bf16.mxu0 %v2810
      %3872 = vmatpush1.bf16.msra.mxu0 %v2809
      %3873 = vmatprep.subr.bf16.mxu0 %v2806
      %3874 = vmatpush1.bf16.msra.mxu0 %v2805
      %3875 = vmatprep.subr.bf16.mxu0 %v2802
      %3876 = vmatpush1.bf16.msra.mxu0 %v2801
      %3877 = vmatprep.subr.bf16.mxu0 %v2862
      %3878 = vmatpush2.bf16.msra.mxu0 %v2861
      %3879 = vmatprep.subr.bf16.mxu0 %v2858
      %3880 = vmatpush2.bf16.msra.mxu0 %v2857
      %3881 = vmatprep.subr.bf16.mxu0 %v2854
      %3882 = vmatpush2.bf16.msra.mxu0 %v2853
      %3883 = vmatprep.subr.bf16.mxu0 %v2850
      %3884 = vmatpush2.bf16.msra.mxu0 %v2849
      %3885 = vmatprep.subr.bf16.mxu0 %v2846
      %3886 = vmatpush2.bf16.msra.mxu0 %v2845
      %3887 = vmatprep.subr.bf16.mxu0 %v2842
      %3888 = vmatpush2.bf16.msra.mxu0 %v2841
      %3889 = vmatprep.subr.bf16.mxu0 %v2838
      %3890 = vmatpush2.bf16.msra.mxu0 %v2837
      %3891 = vmatprep.subr.bf16.mxu0 %v2834
      %3892 = vmatpush2.bf16.msra.mxu0 %v2833
      %3893 = vmatprep.mubr.bf16.mxu0 %v790
      %3894 = vmatmul.mubr.bf16.gmra.mxu0 %v789
      %v3895 = vpop.f32.mrf.mxu0
      %v3896 = vadd.f32 %v3855, %v3895
      %v3897 = vpop.f32.mrf.mxu0
      %v3898 = vadd.f32 %v3857, %v3897
      %v3899 = vpop.f32.mrf.mxu0
      %v3900 = vpop.f32.mrf.mxu0
      %3901 = vdwg.mxu0
      %3902 = vmatprep.subr.bf16.mxu0 %v2894
      %3903 = vmatpush1.bf16.msra.mxu0 %v2893
      %3904 = vmatprep.subr.bf16.mxu0 %v2890
      %3905 = vmatpush1.bf16.msra.mxu0 %v2889
      %3906 = vmatprep.subr.bf16.mxu0 %v2886
      %3907 = vmatpush1.bf16.msra.mxu0 %v2885
      %3908 = vmatprep.subr.bf16.mxu0 %v2882
      %3909 = vmatpush1.bf16.msra.mxu0 %v2881
      %3910 = vmatprep.subr.bf16.mxu0 %v2878
      %3911 = vmatpush1.bf16.msra.mxu0 %v2877
      %3912 = vmatprep.subr.bf16.mxu0 %v2874
      %3913 = vmatpush1.bf16.msra.mxu0 %v2873
      %3914 = vmatprep.subr.bf16.mxu0 %v2870
      %3915 = vmatpush1.bf16.msra.mxu0 %v2869
      %3916 = vmatprep.subr.bf16.mxu0 %v2866
      %3917 = vmatpush1.bf16.msra.mxu0 %v2865
      %3918 = vmatprep.subr.bf16.mxu0 %v2926
      %3919 = vmatpush2.bf16.msra.mxu0 %v2925
      %3920 = vmatprep.subr.bf16.mxu0 %v2922
      %3921 = vmatpush2.bf16.msra.mxu0 %v2921
      %3922 = vmatprep.subr.bf16.mxu0 %v2918
      %3923 = vmatpush2.bf16.msra.mxu0 %v2917
      %3924 = vmatprep.subr.bf16.mxu0 %v2914
      %3925 = vmatpush2.bf16.msra.mxu0 %v2913
      %3926 = vmatprep.subr.bf16.mxu0 %v2910
      %3927 = vmatpush2.bf16.msra.mxu0 %v2909
      %3928 = vmatprep.subr.bf16.mxu0 %v2906
      %3929 = vmatpush2.bf16.msra.mxu0 %v2905
      %3930 = vmatprep.subr.bf16.mxu0 %v2902
      %3931 = vmatpush2.bf16.msra.mxu0 %v2901
      %3932 = vmatprep.subr.bf16.mxu0 %v2898
      %3933 = vmatpush2.bf16.msra.mxu0 %v2897
      %3934 = vmatprep.mubr.bf16.mxu0 %v792
      %3935 = vmatmul.mubr.bf16.gmra.mxu0 %v791
      %v3936 = vpop.f32.mrf.mxu0
      %v3937 = vadd.f32 %v3896, %v3936
      %v3938 = vpop.f32.mrf.mxu0
      %v3939 = vadd.f32 %v3898, %v3938
      %v3940 = vpop.f32.mrf.mxu0
      %v3941 = vpop.f32.mrf.mxu0
      %3942 = vdwg.mxu0
      %3943 = vmatprep.subr.bf16.mxu0 %v2958
      %3944 = vmatpush1.bf16.msra.mxu0 %v2957
      %3945 = vmatprep.subr.bf16.mxu0 %v2954
      %3946 = vmatpush1.bf16.msra.mxu0 %v2953
      %3947 = vmatprep.subr.bf16.mxu0 %v2950
      %3948 = vmatpush1.bf16.msra.mxu0 %v2949
      %3949 = vmatprep.subr.bf16.mxu0 %v2946
      %3950 = vmatpush1.bf16.msra.mxu0 %v2945
      %3951 = vmatprep.subr.bf16.mxu0 %v2942
      %3952 = vmatpush1.bf16.msra.mxu0 %v2941
      %3953 = vmatprep.subr.bf16.mxu0 %v2938
      %3954 = vmatpush1.bf16.msra.mxu0 %v2937
      %3955 = vmatprep.subr.bf16.mxu0 %v2934
      %3956 = vmatpush1.bf16.msra.mxu0 %v2933
      %3957 = vmatprep.subr.bf16.mxu0 %v2930
      %3958 = vmatpush1.bf16.msra.mxu0 %v2929
      %3959 = vmatprep.subr.bf16.mxu0 %v2990
      %3960 = vmatpush2.bf16.msra.mxu0 %v2989
      %3961 = vmatprep.subr.bf16.mxu0 %v2986
      %3962 = vmatpush2.bf16.msra.mxu0 %v2985
      %3963 = vmatprep.subr.bf16.mxu0 %v2982
      %3964 = vmatpush2.bf16.msra.mxu0 %v2981
      %3965 = vmatprep.subr.bf16.mxu0 %v2978
      %3966 = vmatpush2.bf16.msra.mxu0 %v2977
      %3967 = vmatprep.subr.bf16.mxu0 %v2974
      %3968 = vmatpush2.bf16.msra.mxu0 %v2973
      %3969 = vmatprep.subr.bf16.mxu0 %v2970
      %3970 = vmatpush2.bf16.msra.mxu0 %v2969
      %3971 = vmatprep.subr.bf16.mxu0 %v2966
      %3972 = vmatpush2.bf16.msra.mxu0 %v2965
      %3973 = vmatprep.subr.bf16.mxu0 %v2962
      %3974 = vmatpush2.bf16.msra.mxu0 %v2961
      %3975 = vmatprep.mubr.bf16.mxu0 %v794
      %3976 = vmatmul.mubr.bf16.gmra.mxu0 %v793
      %v3977 = vpop.f32.mrf.mxu0
      %v3978 = vadd.f32 %v3937, %v3977
      %v3979 = vpop.f32.mrf.mxu0
      %v3980 = vadd.f32 %v3939, %v3979
      %v3981 = vpop.f32.mrf.mxu0
      %v3982 = vpop.f32.mrf.mxu0
      %3983 = vdwg.mxu0
      %3984 = vmatprep.subr.bf16.mxu0 %v3022
      %3985 = vmatpush1.bf16.msra.mxu0 %v3021
      %3986 = vmatprep.subr.bf16.mxu0 %v3018
      %3987 = vmatpush1.bf16.msra.mxu0 %v3017
      %3988 = vmatprep.subr.bf16.mxu0 %v3014
      %3989 = vmatpush1.bf16.msra.mxu0 %v3013
      %3990 = vmatprep.subr.bf16.mxu0 %v3010
      %3991 = vmatpush1.bf16.msra.mxu0 %v3009
      %3992 = vmatprep.subr.bf16.mxu0 %v3006
      %3993 = vmatpush1.bf16.msra.mxu0 %v3005
      %3994 = vmatprep.subr.bf16.mxu0 %v3002
      %3995 = vmatpush1.bf16.msra.mxu0 %v3001
      %3996 = vmatprep.subr.bf16.mxu0 %v2998
      %3997 = vmatpush1.bf16.msra.mxu0 %v2997
      %3998 = vmatprep.subr.bf16.mxu0 %v2994
      %3999 = vmatpush1.bf16.msra.mxu0 %v2993
      %4000 = vmatprep.subr.bf16.mxu0 %v3054
      %4001 = vmatpush2.bf16.msra.mxu0 %v3053
      %4002 = vmatprep.subr.bf16.mxu0 %v3050
      %4003 = vmatpush2.bf16.msra.mxu0 %v3049
      %4004 = vmatprep.subr.bf16.mxu0 %v3046
      %4005 = vmatpush2.bf16.msra.mxu0 %v3045
      %4006 = vmatprep.subr.bf16.mxu0 %v3042
      %4007 = vmatpush2.bf16.msra.mxu0 %v3041
      %4008 = vmatprep.subr.bf16.mxu0 %v3038
      %4009 = vmatpush2.bf16.msra.mxu0 %v3037
      %4010 = vmatprep.subr.bf16.mxu0 %v3034
      %4011 = vmatpush2.bf16.msra.mxu0 %v3033
      %4012 = vmatprep.subr.bf16.mxu0 %v3030
      %4013 = vmatpush2.bf16.msra.mxu0 %v3029
      %4014 = vmatprep.subr.bf16.mxu0 %v3026
      %4015 = vmatpush2.bf16.msra.mxu0 %v3025
      %4016 = vmatprep.mubr.bf16.mxu0 %v796
      %4017 = vmatmul.mubr.bf16.gmra.mxu0 %v795
      %v4018 = vpop.f32.mrf.mxu0
      %v4019 = vadd.f32 %v3978, %v4018
      %v4020 = vpop.f32.mrf.mxu0
      %v4021 = vadd.f32 %v3980, %v4020
      %v4022 = vpop.f32.mrf.mxu0
      %v4023 = vpop.f32.mrf.mxu0
      %4024 = vdwg.mxu0
      %4025 = vmatprep.subr.bf16.mxu0 %v3086
      %4026 = vmatpush1.bf16.msra.mxu0 %v3085
      %4027 = vmatprep.subr.bf16.mxu0 %v3082
      %4028 = vmatpush1.bf16.msra.mxu0 %v3081
      %4029 = vmatprep.subr.bf16.mxu0 %v3078
      %4030 = vmatpush1.bf16.msra.mxu0 %v3077
      %4031 = vmatprep.subr.bf16.mxu0 %v3074
      %4032 = vmatpush1.bf16.msra.mxu0 %v3073
      %4033 = vmatprep.subr.bf16.mxu0 %v3070
      %4034 = vmatpush1.bf16.msra.mxu0 %v3069
      %4035 = vmatprep.subr.bf16.mxu0 %v3066
      %4036 = vmatpush1.bf16.msra.mxu0 %v3065
      %4037 = vmatprep.subr.bf16.mxu0 %v3062
      %4038 = vmatpush1.bf16.msra.mxu0 %v3061
      %4039 = vmatprep.subr.bf16.mxu0 %v3058
      %4040 = vmatpush1.bf16.msra.mxu0 %v3057
      %4041 = vmatprep.subr.bf16.mxu0 %v3118
      %4042 = vmatpush2.bf16.msra.mxu0 %v3117
      %4043 = vmatprep.subr.bf16.mxu0 %v3114
      %4044 = vmatpush2.bf16.msra.mxu0 %v3113
      %4045 = vmatprep.subr.bf16.mxu0 %v3110
      %4046 = vmatpush2.bf16.msra.mxu0 %v3109
      %4047 = vmatprep.subr.bf16.mxu0 %v3106
      %4048 = vmatpush2.bf16.msra.mxu0 %v3105
      %4049 = vmatprep.subr.bf16.mxu0 %v3102
      %4050 = vmatpush2.bf16.msra.mxu0 %v3101
      %4051 = vmatprep.subr.bf16.mxu0 %v3098
      %4052 = vmatpush2.bf16.msra.mxu0 %v3097
      %4053 = vmatprep.subr.bf16.mxu0 %v3094
      %4054 = vmatpush2.bf16.msra.mxu0 %v3093
      %4055 = vmatprep.subr.bf16.mxu0 %v3090
      %4056 = vmatpush2.bf16.msra.mxu0 %v3089
      %4057 = vmatprep.mubr.bf16.mxu0 %v798
      %4058 = vmatmul.mubr.bf16.gmra.mxu0 %v797
      %v4059 = vpop.f32.mrf.mxu0
      %v4060 = vadd.f32 %v4019, %v4059
      %v4061 = vpop.f32.mrf.mxu0
      %v4062 = vadd.f32 %v4021, %v4061
      %v4063 = vpop.f32.mrf.mxu0
      %v4064 = vpop.f32.mrf.mxu0
      %4065 = vdwg.mxu0
      %4066 = vmatprep.subr.bf16.mxu0 %v2576
      %4067 = vmatpush1.bf16.msra.mxu0 %v2575
      %4068 = vmatprep.subr.bf16.mxu0 %v2572
      %4069 = vmatpush1.bf16.msra.mxu0 %v2571
      %4070 = vmatprep.subr.bf16.mxu0 %v2568
      %4071 = vmatpush1.bf16.msra.mxu0 %v2567
      %4072 = vmatprep.subr.bf16.mxu0 %v2564
      %4073 = vmatpush1.bf16.msra.mxu0 %v2563
      %4074 = vmatprep.subr.bf16.mxu0 %v2560
      %4075 = vmatpush1.bf16.msra.mxu0 %v2559
      %4076 = vmatprep.subr.bf16.mxu0 %v2556
      %4077 = vmatpush1.bf16.msra.mxu0 %v2555
      %4078 = vmatprep.subr.bf16.mxu0 %v2552
      %4079 = vmatpush1.bf16.msra.mxu0 %v2551
      %4080 = vmatprep.subr.bf16.mxu0 %v2548
      %4081 = vmatpush1.bf16.msra.mxu0 %v2547
      %4082 = vmatprep.subr.bf16.mxu0 %v2608
      %4083 = vmatpush2.bf16.msra.mxu0 %v2607
      %4084 = vmatprep.subr.bf16.mxu0 %v2604
      %4085 = vmatpush2.bf16.msra.mxu0 %v2603
      %4086 = vmatprep.subr.bf16.mxu0 %v2600
      %4087 = vmatpush2.bf16.msra.mxu0 %v2599
      %4088 = vmatprep.subr.bf16.mxu0 %v2596
      %4089 = vmatpush2.bf16.msra.mxu0 %v2595
      %4090 = vmatprep.subr.bf16.mxu0 %v2592
      %4091 = vmatpush2.bf16.msra.mxu0 %v2591
      %4092 = vmatprep.subr.bf16.mxu0 %v2588
      %4093 = vmatpush2.bf16.msra.mxu0 %v2587
      %4094 = vmatprep.subr.bf16.mxu0 %v2584
      %4095 = vmatpush2.bf16.msra.mxu0 %v2583
      %4096 = vmatprep.subr.bf16.mxu0 %v2580
      %4097 = vmatpush2.bf16.msra.mxu0 %v2579
      %4098 = vmatprep.mubr.bf16.mxu0 %v782
      %4099 = vmatmul.mubr.bf16.gmra.mxu0 %v781
      %v4100 = vpop.f32.mrf.mxu0
      %v4101 = vadd.f32 0.0, %v4100
      %v4102 = vpop.f32.mrf.mxu0
      %v4103 = vadd.f32 0.0, %v4102
      %v4104 = vpop.f32.mrf.mxu0
      %v4105 = vpop.f32.mrf.mxu0
      %4106 = vdwg.mxu0
      %4107 = vmatprep.subr.bf16.mxu0 %v2640
      %4108 = vmatpush1.bf16.msra.mxu0 %v2639
      %4109 = vmatprep.subr.bf16.mxu0 %v2636
      %4110 = vmatpush1.bf16.msra.mxu0 %v2635
      %4111 = vmatprep.subr.bf16.mxu0 %v2632
      %4112 = vmatpush1.bf16.msra.mxu0 %v2631
      %4113 = vmatprep.subr.bf16.mxu0 %v2628
      %4114 = vmatpush1.bf16.msra.mxu0 %v2627
      %4115 = vmatprep.subr.bf16.mxu0 %v2624
      %4116 = vmatpush1.bf16.msra.mxu0 %v2623
      %4117 = vmatprep.subr.bf16.mxu0 %v2620
      %4118 = vmatpush1.bf16.msra.mxu0 %v2619
      %4119 = vmatprep.subr.bf16.mxu0 %v2616
      %4120 = vmatpush1.bf16.msra.mxu0 %v2615
      %4121 = vmatprep.subr.bf16.mxu0 %v2612
      %4122 = vmatpush1.bf16.msra.mxu0 %v2611
      %4123 = vmatprep.subr.bf16.mxu0 %v2672
      %4124 = vmatpush2.bf16.msra.mxu0 %v2671
      %4125 = vmatprep.subr.bf16.mxu0 %v2668
      %4126 = vmatpush2.bf16.msra.mxu0 %v2667
      %4127 = vmatprep.subr.bf16.mxu0 %v2664
      %4128 = vmatpush2.bf16.msra.mxu0 %v2663
      %4129 = vmatprep.subr.bf16.mxu0 %v2660
      %4130 = vmatpush2.bf16.msra.mxu0 %v2659
      %4131 = vmatprep.subr.bf16.mxu0 %v2656
      %4132 = vmatpush2.bf16.msra.mxu0 %v2655
      %4133 = vmatprep.subr.bf16.mxu0 %v2652
      %4134 = vmatpush2.bf16.msra.mxu0 %v2651
      %4135 = vmatprep.subr.bf16.mxu0 %v2648
      %4136 = vmatpush2.bf16.msra.mxu0 %v2647
      %4137 = vmatprep.subr.bf16.mxu0 %v2644
      %4138 = vmatpush2.bf16.msra.mxu0 %v2643
      %4139 = vmatprep.mubr.bf16.mxu0 %v784
      %4140 = vmatmul.mubr.bf16.gmra.mxu0 %v783
      %v4141 = vpop.f32.mrf.mxu0
      %v4142 = vadd.f32 %v4101, %v4141
      %v4143 = vpop.f32.mrf.mxu0
      %v4144 = vadd.f32 %v4103, %v4143
      %v4145 = vpop.f32.mrf.mxu0
      %v4146 = vpop.f32.mrf.mxu0
      %4147 = vdwg.mxu0
      %4148 = vmatprep.subr.bf16.mxu0 %v2704
      %4149 = vmatpush1.bf16.msra.mxu0 %v2703
      %4150 = vmatprep.subr.bf16.mxu0 %v2700
      %4151 = vmatpush1.bf16.msra.mxu0 %v2699
      %4152 = vmatprep.subr.bf16.mxu0 %v2696
      %4153 = vmatpush1.bf16.msra.mxu0 %v2695
      %4154 = vmatprep.subr.bf16.mxu0 %v2692
      %4155 = vmatpush1.bf16.msra.mxu0 %v2691
      %4156 = vmatprep.subr.bf16.mxu0 %v2688
      %4157 = vmatpush1.bf16.msra.mxu0 %v2687
      %4158 = vmatprep.subr.bf16.mxu0 %v2684
      %4159 = vmatpush1.bf16.msra.mxu0 %v2683
      %4160 = vmatprep.subr.bf16.mxu0 %v2680
      %4161 = vmatpush1.bf16.msra.mxu0 %v2679
      %4162 = vmatprep.subr.bf16.mxu0 %v2676
      %4163 = vmatpush1.bf16.msra.mxu0 %v2675
      %4164 = vmatprep.subr.bf16.mxu0 %v2736
      %4165 = vmatpush2.bf16.msra.mxu0 %v2735
      %4166 = vmatprep.subr.bf16.mxu0 %v2732
      %4167 = vmatpush2.bf16.msra.mxu0 %v2731
      %4168 = vmatprep.subr.bf16.mxu0 %v2728
      %4169 = vmatpush2.bf16.msra.mxu0 %v2727
      %4170 = vmatprep.subr.bf16.mxu0 %v2724
      %4171 = vmatpush2.bf16.msra.mxu0 %v2723
      %4172 = vmatprep.subr.bf16.mxu0 %v2720
      %4173 = vmatpush2.bf16.msra.mxu0 %v2719
      %4174 = vmatprep.subr.bf16.mxu0 %v2716
      %4175 = vmatpush2.bf16.msra.mxu0 %v2715
      %4176 = vmatprep.subr.bf16.mxu0 %v2712
      %4177 = vmatpush2.bf16.msra.mxu0 %v2711
      %4178 = vmatprep.subr.bf16.mxu0 %v2708
      %4179 = vmatpush2.bf16.msra.mxu0 %v2707
      %4180 = vmatprep.mubr.bf16.mxu0 %v786
      %4181 = vmatmul.mubr.bf16.gmra.mxu0 %v785
      %v4182 = vpop.f32.mrf.mxu0
      %v4183 = vadd.f32 %v4142, %v4182
      %v4184 = vpop.f32.mrf.mxu0
      %v4185 = vadd.f32 %v4144, %v4184
      %v4186 = vpop.f32.mrf.mxu0
      %v4187 = vpop.f32.mrf.mxu0
      %4188 = vdwg.mxu0
      %4189 = vmatprep.subr.bf16.mxu0 %v2768
      %4190 = vmatpush1.bf16.msra.mxu0 %v2767
      %4191 = vmatprep.subr.bf16.mxu0 %v2764
      %4192 = vmatpush1.bf16.msra.mxu0 %v2763
      %4193 = vmatprep.subr.bf16.mxu0 %v2760
      %4194 = vmatpush1.bf16.msra.mxu0 %v2759
      %4195 = vmatprep.subr.bf16.mxu0 %v2756
      %4196 = vmatpush1.bf16.msra.mxu0 %v2755
      %4197 = vmatprep.subr.bf16.mxu0 %v2752
      %4198 = vmatpush1.bf16.msra.mxu0 %v2751
      %4199 = vmatprep.subr.bf16.mxu0 %v2748
      %4200 = vmatpush1.bf16.msra.mxu0 %v2747
      %4201 = vmatprep.subr.bf16.mxu0 %v2744
      %4202 = vmatpush1.bf16.msra.mxu0 %v2743
      %4203 = vmatprep.subr.bf16.mxu0 %v2740
      %4204 = vmatpush1.bf16.msra.mxu0 %v2739
      %4205 = vmatprep.subr.bf16.mxu0 %v2800
      %4206 = vmatpush2.bf16.msra.mxu0 %v2799
      %4207 = vmatprep.subr.bf16.mxu0 %v2796
      %4208 = vmatpush2.bf16.msra.mxu0 %v2795
      %4209 = vmatprep.subr.bf16.mxu0 %v2792
      %4210 = vmatpush2.bf16.msra.mxu0 %v2791
      %4211 = vmatprep.subr.bf16.mxu0 %v2788
      %4212 = vmatpush2.bf16.msra.mxu0 %v2787
      %4213 = vmatprep.subr.bf16.mxu0 %v2784
      %4214 = vmatpush2.bf16.msra.mxu0 %v2783
      %4215 = vmatprep.subr.bf16.mxu0 %v2780
      %4216 = vmatpush2.bf16.msra.mxu0 %v2779
      %4217 = vmatprep.subr.bf16.mxu0 %v2776
      %4218 = vmatpush2.bf16.msra.mxu0 %v2775
      %4219 = vmatprep.subr.bf16.mxu0 %v2772
      %4220 = vmatpush2.bf16.msra.mxu0 %v2771
      %4221 = vmatprep.mubr.bf16.mxu0 %v788
      %4222 = vmatmul.mubr.bf16.gmra.mxu0 %v787
      %v4223 = vpop.f32.mrf.mxu0
      %v4224 = vadd.f32 %v4183, %v4223
      %v4225 = vpop.f32.mrf.mxu0
      %v4226 = vadd.f32 %v4185, %v4225
      %v4227 = vpop.f32.mrf.mxu0
      %v4228 = vpop.f32.mrf.mxu0
      %4229 = vdwg.mxu0
      %4230 = vmatprep.subr.bf16.mxu0 %v2832
      %4231 = vmatpush1.bf16.msra.mxu0 %v2831
      %4232 = vmatprep.subr.bf16.mxu0 %v2828
      %4233 = vmatpush1.bf16.msra.mxu0 %v2827
      %4234 = vmatprep.subr.bf16.mxu0 %v2824
      %4235 = vmatpush1.bf16.msra.mxu0 %v2823
      %4236 = vmatprep.subr.bf16.mxu0 %v2820
      %4237 = vmatpush1.bf16.msra.mxu0 %v2819
      %4238 = vmatprep.subr.bf16.mxu0 %v2816
      %4239 = vmatpush1.bf16.msra.mxu0 %v2815
      %4240 = vmatprep.subr.bf16.mxu0 %v2812
      %4241 = vmatpush1.bf16.msra.mxu0 %v2811
      %4242 = vmatprep.subr.bf16.mxu0 %v2808
      %4243 = vmatpush1.bf16.msra.mxu0 %v2807
      %4244 = vmatprep.subr.bf16.mxu0 %v2804
      %4245 = vmatpush1.bf16.msra.mxu0 %v2803
      %4246 = vmatprep.subr.bf16.mxu0 %v2864
      %4247 = vmatpush2.bf16.msra.mxu0 %v2863
      %4248 = vmatprep.subr.bf16.mxu0 %v2860
      %4249 = vmatpush2.bf16.msra.mxu0 %v2859
      %4250 = vmatprep.subr.bf16.mxu0 %v2856
      %4251 = vmatpush2.bf16.msra.mxu0 %v2855
      %4252 = vmatprep.subr.bf16.mxu0 %v2852
      %4253 = vmatpush2.bf16.msra.mxu0 %v2851
      %4254 = vmatprep.subr.bf16.mxu0 %v2848
      %4255 = vmatpush2.bf16.msra.mxu0 %v2847
      %4256 = vmatprep.subr.bf16.mxu0 %v2844
      %4257 = vmatpush2.bf16.msra.mxu0 %v2843
      %4258 = vmatprep.subr.bf16.mxu0 %v2840
      %4259 = vmatpush2.bf16.msra.mxu0 %v2839
      %4260 = vmatprep.subr.bf16.mxu0 %v2836
      %4261 = vmatpush2.bf16.msra.mxu0 %v2835
      %4262 = vmatprep.mubr.bf16.mxu0 %v790
      %4263 = vmatmul.mubr.bf16.gmra.mxu0 %v789
      %v4264 = vpop.f32.mrf.mxu0
      %v4265 = vadd.f32 %v4224, %v4264
      %v4266 = vpop.f32.mrf.mxu0
      %v4267 = vadd.f32 %v4226, %v4266
      %v4268 = vpop.f32.mrf.mxu0
      %v4269 = vpop.f32.mrf.mxu0
      %4270 = vdwg.mxu0
      %4271 = vmatprep.subr.bf16.mxu0 %v2896
      %4272 = vmatpush1.bf16.msra.mxu0 %v2895
      %4273 = vmatprep.subr.bf16.mxu0 %v2892
      %4274 = vmatpush1.bf16.msra.mxu0 %v2891
      %4275 = vmatprep.subr.bf16.mxu0 %v2888
      %4276 = vmatpush1.bf16.msra.mxu0 %v2887
      %4277 = vmatprep.subr.bf16.mxu0 %v2884
      %4278 = vmatpush1.bf16.msra.mxu0 %v2883
      %4279 = vmatprep.subr.bf16.mxu0 %v2880
      %4280 = vmatpush1.bf16.msra.mxu0 %v2879
      %4281 = vmatprep.subr.bf16.mxu0 %v2876
      %4282 = vmatpush1.bf16.msra.mxu0 %v2875
      %4283 = vmatprep.subr.bf16.mxu0 %v2872
      %4284 = vmatpush1.bf16.msra.mxu0 %v2871
      %4285 = vmatprep.subr.bf16.mxu0 %v2868
      %4286 = vmatpush1.bf16.msra.mxu0 %v2867
      %4287 = vmatprep.subr.bf16.mxu0 %v2928
      %4288 = vmatpush2.bf16.msra.mxu0 %v2927
      %4289 = vmatprep.subr.bf16.mxu0 %v2924
      %4290 = vmatpush2.bf16.msra.mxu0 %v2923
      %4291 = vmatprep.subr.bf16.mxu0 %v2920
      %4292 = vmatpush2.bf16.msra.mxu0 %v2919
      %4293 = vmatprep.subr.bf16.mxu0 %v2916
      %4294 = vmatpush2.bf16.msra.mxu0 %v2915
      %4295 = vmatprep.subr.bf16.mxu0 %v2912
      %4296 = vmatpush2.bf16.msra.mxu0 %v2911
      %4297 = vmatprep.subr.bf16.mxu0 %v2908
      %4298 = vmatpush2.bf16.msra.mxu0 %v2907
      %4299 = vmatprep.subr.bf16.mxu0 %v2904
      %4300 = vmatpush2.bf16.msra.mxu0 %v2903
      %4301 = vmatprep.subr.bf16.mxu0 %v2900
      %4302 = vmatpush2.bf16.msra.mxu0 %v2899
      %4303 = vmatprep.mubr.bf16.mxu0 %v792
      %4304 = vmatmul.mubr.bf16.gmra.mxu0 %v791
      %v4305 = vpop.f32.mrf.mxu0
      %v4306 = vadd.f32 %v4265, %v4305
      %v4307 = vpop.f32.mrf.mxu0
      %v4308 = vadd.f32 %v4267, %v4307
      %v4309 = vpop.f32.mrf.mxu0
      %v4310 = vpop.f32.mrf.mxu0
      %4311 = vdwg.mxu0
      %4312 = vmatprep.subr.bf16.mxu0 %v2960
      %4313 = vmatpush1.bf16.msra.mxu0 %v2959
      %4314 = vmatprep.subr.bf16.mxu0 %v2956
      %4315 = vmatpush1.bf16.msra.mxu0 %v2955
      %4316 = vmatprep.subr.bf16.mxu0 %v2952
      %4317 = vmatpush1.bf16.msra.mxu0 %v2951
      %4318 = vmatprep.subr.bf16.mxu0 %v2948
      %4319 = vmatpush1.bf16.msra.mxu0 %v2947
      %4320 = vmatprep.subr.bf16.mxu0 %v2944
      %4321 = vmatpush1.bf16.msra.mxu0 %v2943
      %4322 = vmatprep.subr.bf16.mxu0 %v2940
      %4323 = vmatpush1.bf16.msra.mxu0 %v2939
      %4324 = vmatprep.subr.bf16.mxu0 %v2936
      %4325 = vmatpush1.bf16.msra.mxu0 %v2935
      %4326 = vmatprep.subr.bf16.mxu0 %v2932
      %4327 = vmatpush1.bf16.msra.mxu0 %v2931
      %4328 = vmatprep.subr.bf16.mxu0 %v2992
      %4329 = vmatpush2.bf16.msra.mxu0 %v2991
      %4330 = vmatprep.subr.bf16.mxu0 %v2988
      %4331 = vmatpush2.bf16.msra.mxu0 %v2987
      %4332 = vmatprep.subr.bf16.mxu0 %v2984
      %4333 = vmatpush2.bf16.msra.mxu0 %v2983
      %4334 = vmatprep.subr.bf16.mxu0 %v2980
      %4335 = vmatpush2.bf16.msra.mxu0 %v2979
      %4336 = vmatprep.subr.bf16.mxu0 %v2976
      %4337 = vmatpush2.bf16.msra.mxu0 %v2975
      %4338 = vmatprep.subr.bf16.mxu0 %v2972
      %4339 = vmatpush2.bf16.msra.mxu0 %v2971
      %4340 = vmatprep.subr.bf16.mxu0 %v2968
      %4341 = vmatpush2.bf16.msra.mxu0 %v2967
      %4342 = vmatprep.subr.bf16.mxu0 %v2964
      %4343 = vmatpush2.bf16.msra.mxu0 %v2963
      %4344 = vmatprep.mubr.bf16.mxu0 %v794
      %4345 = vmatmul.mubr.bf16.gmra.mxu0 %v793
      %v4346 = vpop.f32.mrf.mxu0
      %v4347 = vadd.f32 %v4306, %v4346
      %v4348 = vpop.f32.mrf.mxu0
      %v4349 = vadd.f32 %v4308, %v4348
      %v4350 = vpop.f32.mrf.mxu0
      %v4351 = vpop.f32.mrf.mxu0
      %4352 = vdwg.mxu0
      %4353 = vmatprep.subr.bf16.mxu0 %v3024
      %4354 = vmatpush1.bf16.msra.mxu0 %v3023
      %4355 = vmatprep.subr.bf16.mxu0 %v3020
      %4356 = vmatpush1.bf16.msra.mxu0 %v3019
      %4357 = vmatprep.subr.bf16.mxu0 %v3016
      %4358 = vmatpush1.bf16.msra.mxu0 %v3015
      %4359 = vmatprep.subr.bf16.mxu0 %v3012
      %4360 = vmatpush1.bf16.msra.mxu0 %v3011
      %4361 = vmatprep.subr.bf16.mxu0 %v3008
      %4362 = vmatpush1.bf16.msra.mxu0 %v3007
      %4363 = vmatprep.subr.bf16.mxu0 %v3004
      %4364 = vmatpush1.bf16.msra.mxu0 %v3003
      %4365 = vmatprep.subr.bf16.mxu0 %v3000
      %4366 = vmatpush1.bf16.msra.mxu0 %v2999
      %4367 = vmatprep.subr.bf16.mxu0 %v2996
      %4368 = vmatpush1.bf16.msra.mxu0 %v2995
      %4369 = vmatprep.subr.bf16.mxu0 %v3056
      %4370 = vmatpush2.bf16.msra.mxu0 %v3055
      %4371 = vmatprep.subr.bf16.mxu0 %v3052
      %4372 = vmatpush2.bf16.msra.mxu0 %v3051
      %4373 = vmatprep.subr.bf16.mxu0 %v3048
      %4374 = vmatpush2.bf16.msra.mxu0 %v3047
      %4375 = vmatprep.subr.bf16.mxu0 %v3044
      %4376 = vmatpush2.bf16.msra.mxu0 %v3043
      %4377 = vmatprep.subr.bf16.mxu0 %v3040
      %4378 = vmatpush2.bf16.msra.mxu0 %v3039
      %4379 = vmatprep.subr.bf16.mxu0 %v3036
      %4380 = vmatpush2.bf16.msra.mxu0 %v3035
      %4381 = vmatprep.subr.bf16.mxu0 %v3032
      %4382 = vmatpush2.bf16.msra.mxu0 %v3031
      %4383 = vmatprep.subr.bf16.mxu0 %v3028
      %4384 = vmatpush2.bf16.msra.mxu0 %v3027
      %4385 = vmatprep.mubr.bf16.mxu0 %v796
      %4386 = vmatmul.mubr.bf16.gmra.mxu0 %v795
      %v4387 = vpop.f32.mrf.mxu0
      %v4388 = vadd.f32 %v4347, %v4387
      %v4389 = vpop.f32.mrf.mxu0
      %v4390 = vadd.f32 %v4349, %v4389
      %v4391 = vpop.f32.mrf.mxu0
      %v4392 = vpop.f32.mrf.mxu0
      %4393 = vdwg.mxu0
      %4394 = vmatprep.subr.bf16.mxu0 %v3088
      %4395 = vmatpush1.bf16.msra.mxu0 %v3087
      %4396 = vmatprep.subr.bf16.mxu0 %v3084
      %4397 = vmatpush1.bf16.msra.mxu0 %v3083
      %4398 = vmatprep.subr.bf16.mxu0 %v3080
      %4399 = vmatpush1.bf16.msra.mxu0 %v3079
      %4400 = vmatprep.subr.bf16.mxu0 %v3076
      %4401 = vmatpush1.bf16.msra.mxu0 %v3075
      %4402 = vmatprep.subr.bf16.mxu0 %v3072
      %4403 = vmatpush1.bf16.msra.mxu0 %v3071
      %4404 = vmatprep.subr.bf16.mxu0 %v3068
      %4405 = vmatpush1.bf16.msra.mxu0 %v3067
      %4406 = vmatprep.subr.bf16.mxu0 %v3064
      %4407 = vmatpush1.bf16.msra.mxu0 %v3063
      %4408 = vmatprep.subr.bf16.mxu0 %v3060
      %4409 = vmatpush1.bf16.msra.mxu0 %v3059
      %4410 = vmatprep.subr.bf16.mxu0 %v3120
      %4411 = vmatpush2.bf16.msra.mxu0 %v3119
      %4412 = vmatprep.subr.bf16.mxu0 %v3116
      %4413 = vmatpush2.bf16.msra.mxu0 %v3115
      %4414 = vmatprep.subr.bf16.mxu0 %v3112
      %4415 = vmatpush2.bf16.msra.mxu0 %v3111
      %4416 = vmatprep.subr.bf16.mxu0 %v3108
      %4417 = vmatpush2.bf16.msra.mxu0 %v3107
      %4418 = vmatprep.subr.bf16.mxu0 %v3104
      %4419 = vmatpush2.bf16.msra.mxu0 %v3103
      %4420 = vmatprep.subr.bf16.mxu0 %v3100
      %4421 = vmatpush2.bf16.msra.mxu0 %v3099
      %4422 = vmatprep.subr.bf16.mxu0 %v3096
      %4423 = vmatpush2.bf16.msra.mxu0 %v3095
      %4424 = vmatprep.subr.bf16.mxu0 %v3092
      %4425 = vmatpush2.bf16.msra.mxu0 %v3091
      %4426 = vmatprep.mubr.bf16.mxu0 %v798
      %4427 = vmatmul.mubr.bf16.gmra.mxu0 %v797
      %v4428 = vpop.f32.mrf.mxu0
      %v4429 = vadd.f32 %v4388, %v4428
      %v4430 = vpop.f32.mrf.mxu0
      %v4431 = vadd.f32 %v4390, %v4430
      %v4432 = vpop.f32.mrf.mxu0
      %v4433 = vpop.f32.mrf.mxu0
      %4434 = vdwg.mxu0
      %v4435 = vmax.f32 %v4060, %v4062
      %v4436 = vmax.f32 %v4429, %v4431
      %v4437 = vmax.f32 %v4435, %v4436
      %v4438 = vld [vmem:[%s2] sm:$0x1]
      %v4440 = vlaneseq
      %v4441 = vshrl.u32 %v4440, 7
      %v4442 = vsub.s32 0, %v4441
      %v4443 = vrot.slane %v4438, %v4442
      %v4445 = vadd.f32 %v4437, %v4443
      %v4446 = vmax.f32 %v4445, 0.0
      %v4447 = vpack.c.bf16 %v4446, %v4446
      %4448 = vst [vmem:[%s168] sm:$0xf] %v4447
      %p4449 = scmp.lt.s32.totalorder %s14, 6
      %s4450 = scalar_select %p4449, %s14, 6
      %s4451 = smul.addr %s4450, 4
      %s4452 = scalar_lea.vmem %s3, %s4451
      // Predicated region
      $region33: #{forward.4} parent=31 // pred_check
        %p4453 = pneg %p100
      $region34: #{forward.4} parent=31 // pred_check_branch
        %4455 = sbr.rel (%p4453) target = $region36
      $region35: #{forward.4} parent=31 // pred_region
        _
      $region36: #{forward.4} parent=31 // pred_fallthru
        _
    $region32: #{forward.4} parent=5 // pred_fallthru
      _
    %p4456 = scmp.le.s32.totalorder 2, %s9
    // Predicated region
    $region37: #{forward.4} parent=5 // pred_check
      %p4457 = pneg %p4456
    $region38: #{forward.4} parent=5 // pred_check_branch
      %4459 = sbr.rel (%p4457) target = $region40
    $region39: #{forward.4} parent=5 // pred_region
      %s4460 = ssub.s32 %s9, 2
      // Predicated region
      $region41: #{forward.4} parent=39 // pred_check
        %p4461 = pneg %p106
      $region42: #{forward.4} parent=39 // pred_check_branch
        %4463 = sbr.rel (%p4461) target = $region44
      $region43: #{forward.4} parent=39 // pred_region
        %p4464 = scmp.lt.s32.totalorder %s15, 6
        %s4465 = scalar_select %p4464, %s15, 6
        %s4466 = smul.addr %s4465, 4
        %s4467 = scalar_lea.vmem %s3, %s4466
      $region44: #{forward.4} parent=39 // pred_fallthru
        _
    $region40: #{forward.4} parent=5 // pred_fallthru
      _
  $region6: #{forward.4} parent=0 // loop_footer
    %s13 = sadd.s32 1, %s9
  $region7: #{forward.4} parent=0 // loop_footer_branch
    %8 = sbr.rel target = $region3
  $region8: #{forward.4} parent=0 // loop_exit
    _

</llo_original>
